<compile_context>
chip_gen: v6e
topology: v6e:2x2x1
jax: 0.10.0
libtpu: 0.0.40
codegen_flags: <defaults>
</compile_context>

<pallas_src>
import math
import functools

import jax
import jax.numpy as jnp
from jax.experimental import pallas as pl
from jax.experimental.pallas import tpu as pltpu

EPS = 1e-6


def _layer_norm(x, alpha, bias):
    """Matches the torch `Norm` module: unbiased std (divide by D-1), eps
    added to the std (not the variance).  Exact reciprocal (f32)."""
    d = x.shape[-1]
    mean = jnp.mean(x, axis=-1, keepdims=True)
    xc = x - mean
    var = jnp.sum(xc * xc, axis=-1, keepdims=True) * (1.0 / (d - 1))
    inv = 1.0 / (jnp.sqrt(var) + EPS)
    return alpha * (xc * inv) + bias


def transformer_kernel(x_ref, mask_ref,
                       n1a_ref, n1b_ref, wqkv_ref, bqkv_ref, wo_ref, bo_ref,
                       n2a_ref, n2b_ref, w1_ref, b1_ref, w2_ref, b2_ref,
                       fa_ref, fb_ref,
                       out_ref,
                       ctx_scr,
                       *, heads, d_k, n_layers, ff_chunk):
    f32 = jnp.float32
    bf16 = jnp.bfloat16
    l = pl.program_id(1)

    # Layer 0: copy this batch row into the resident output block; it then
    # carries the activations across the (innermost) layer grid axis.
    @pl.when(l == 0)
    def _():
        out_ref[...] = x_ref[...]

    x = out_ref[0]                          # (S, D) f32, carried across layers
    S, D = x.shape

    m = mask_ref[0]                         # (1, S) {0,1}
    neg_k = (m - 1.0) * 1e9                 # rank-1 additive key mask
    mq = jnp.transpose(m)                   # (S, 1) query-valid indicator

    # ---------------- self-attention sub-layer ----------------
    x2 = _layer_norm(x, n1a_ref[0], n1b_ref[0])
    x2b = x2.astype(bf16)
    # fused lane-dense QKV projection; 1/sqrt(d_k) is folded into Wq/bq.
    qkv = jnp.dot(x2b, wqkv_ref[0], preferred_element_type=f32) + bqkv_ref[0]

    for h in range(heads):                  # static unroll; heads is small
        o = h * d_k
        qh = qkv[:, o:o + d_k].astype(bf16)
        kh = qkv[:, D + o:D + o + d_k].astype(bf16)
        vh = qkv[:, 2 * D + o:2 * D + o + d_k]
        # scores: (S, d_k) x (S, d_k)^T, contraction over d_k
        s = jax.lax.dot_general(qh, kh, (((1,), (1,)), ((), ())),
                                preferred_element_type=f32)     # (S, S)
        s = s + neg_k                        # masked keys -> <= -1e9
        s_max = jnp.max(s, axis=-1, keepdims=True)
        e = jnp.exp(s - s_max)
        p = e * pl.reciprocal(jnp.sum(e, axis=-1, keepdims=True), approx=True)
        ctx_h = jnp.dot(p.astype(bf16), vh.astype(bf16),
                        preferred_element_type=f32)              # (S, d_k)
        # torch semantics: a fully-masked query row is -1e9 everywhere ->
        # uniform softmax over ALL keys -> mean of v.
        v_mean = jnp.mean(vh, axis=0, keepdims=True)             # (1, d_k)
        ctx_h = jnp.where(mq > 0.0, ctx_h, v_mean)
        ctx_scr[:, o:o + d_k] = ctx_h        # build (S, D) ctx, no concat

    # single full-depth output projection (contracts all H*d_k = D at once)
    attn = jnp.dot(ctx_scr[...].astype(bf16), wo_ref[0],
                   preferred_element_type=f32) + bo_ref[0]
    # TODO(synk): nn.Dropout layers are identity here (eval-mode semantics).
    x = x + attn

    # ---------------- feed-forward sub-layer -------------------
    x2 = _layer_norm(x, n2a_ref[0], n2b_ref[0])
    x2b = x2.astype(bf16)
    d_ff = w1_ref.shape[-1]
    ff = jnp.zeros((S, D), f32)
    for c in range(0, d_ff, ff_chunk):       # fused chunked FFN, no (S,d_ff)
        h1 = jnp.dot(x2b, w1_ref[0, :, c:c + ff_chunk],
                     preferred_element_type=f32) + b1_ref[0, :, c:c + ff_chunk]
        h1 = jnp.maximum(h1, 0.0)
        ff = ff + jnp.dot(h1.astype(bf16), w2_ref[0, c:c + ff_chunk, :],
                          preferred_element_type=f32)
    y = x + ff + b2_ref[0]

    out_ref[0] = y                            # carried to the next layer

    @pl.when(l == n_layers - 1)               # fused Encoder.norm epilogue
    def _():
        out_ref[0] = _layer_norm(y, fa_ref[...], fb_ref[...])


def _prep_params(layer_params, final_params, heads):
    """Host-side stacking (leading layer axis), QKV fusion, scale folding,
    and bf16 casts for all MXU weight operands."""
    D = layer_params[0]["wq"].shape[0]
    d_k = D // heads
    scale = 1.0 / math.sqrt(d_k)
    bf16 = jnp.bfloat16

    def stack(fn):
        return jnp.stack([fn(p) for p in layer_params], axis=0)

    return dict(
        n1a=stack(lambda p: p["n1_a"]), n1b=stack(lambda p: p["n1_b"]),
        wqkv=stack(lambda p: jnp.concatenate(
            [p["wq"] * scale, p["wk"], p["wv"]], axis=1).astype(bf16)),
        bqkv=stack(lambda p: jnp.concatenate(
            [p["bq"] * scale, p["bk"], p["bv"]], axis=1)),
        wo=stack(lambda p: p["wo"].astype(bf16)),
        bo=stack(lambda p: p["bo"]),
        n2a=stack(lambda p: p["n2_a"]), n2b=stack(lambda p: p["n2_b"]),
        w1=stack(lambda p: p["w1"].astype(bf16)),
        b1=stack(lambda p: p["b1"]),
        w2=stack(lambda p: p["w2"].astype(bf16)),
        b2=stack(lambda p: p["b2"]),
        fa=final_params["a"], fb=final_params["b"],
    )


def _vmem_limit_bytes(S, D, d_ff, heads):
    """Generation-aware limit: size from the real working set, capped at
    ~85% of physical VMEM for this chip."""
    try:
        cap = int(pltpu.get_tpu_info().vmem_capacity_bytes)
    except Exception:
        cap = 128 * 1024 * 1024
    weights = 2 * 2 * (4 * D * D + 2 * D * d_ff)        # bf16, double-buffered
    acts = 4 * (8 * S * D + 4 * S * S + 3 * S * min(d_ff, 512))
    est = weights + acts + (8 << 20)
    return int(min(int(0.85 * cap), max(32 << 20, est)))


def transformer_forward(src, src_mask, layer_params, final_params, heads):
    B, S, D = src.shape
    d_k = D // heads
    assert heads * d_k == D
    n_layers = len(layer_params)
    d_ff = layer_params[0]["w1"].shape[1]
    ff_chunk = 512 if (d_ff > 512 and d_ff % 512 == 0) else d_ff

    pp = _prep_params(layer_params, final_params, heads)
    mask3 = src_mask[:, None, :].astype(jnp.float32)     # (B, 1, S)

    def act_spec():
        return pl.BlockSpec((1, S, D), lambda b, l: (b, 0, 0))

    def lyr(*tail):          # layer-indexed (stacked) parameter
        nt = len(tail)
        return pl.BlockSpec((1,) + tuple(tail),
                            lambda b, l, _n=nt: (l,) + (0,) * _n)

    def rep(shape):          # replicated (constant) parameter
        nz = len(shape)
        return pl.BlockSpec(tuple(shape), lambda b, l, _n=nz: (0,) * _n)

    in_specs = [
        act_spec(),                                        # x
        pl.BlockSpec((1, 1, S), lambda b, l: (b, 0, 0)),   # mask
        lyr(1, D), lyr(1, D),                              # norm1 a/b
        lyr(D, 3 * D), lyr(1, 3 * D),                      # Wqkv, bqkv
        lyr(D, D), lyr(1, D),                              # Wo, bo
        lyr(1, D), lyr(1, D),                              # norm2 a/b
        lyr(D, d_ff), lyr(1, d_ff),                        # W1, b1
        lyr(d_ff, D), lyr(1, D),                           # W2, b2
        rep((1, D)), rep((1, D)),                          # final norm a/b
    ]

    kernel = functools.partial(transformer_kernel, heads=heads, d_k=d_k,
                               n_layers=n_layers, ff_chunk=ff_chunk)

    return pl.pallas_call(
        kernel,
        out_shape=jax.ShapeDtypeStruct((B, S, D), jnp.float32),
        grid=(B, n_layers),                 # layer axis innermost (carried)
        in_specs=in_specs,
        out_specs=act_spec(),
        scratch_shapes=[pltpu.VMEM((S, D), jnp.float32)],  # per-head ctx slab
        compiler_params=pltpu.CompilerParams(
            dimension_semantics=("parallel", "arbitrary"),
            vmem_limit_bytes=_vmem_limit_bytes(S, D, d_ff, heads)),
    )(src, mask3,
      pp["n1a"], pp["n1b"], pp["wqkv"], pp["bqkv"], pp["wo"], pp["bo"],
      pp["n2a"], pp["n2b"], pp["w1"], pp["b1"], pp["w2"], pp["b2"],
      pp["fa"], pp["fb"])


# --------------------- deterministic parameter init ---------------------
def init_params(key, d_model, N, d_ff=2048):
    def dense(k, fan_in, fan_out):
        k1, k2 = jax.random.split(k)
        bound = 1.0 / math.sqrt(fan_in)
        w = jax.random.uniform(k1, (fan_in, fan_out), jnp.float32, -bound, bound)
        b = jax.random.uniform(k2, (1, fan_out), jnp.float32, -bound, bound)
        return w, b

    layers = []
    for _ in range(N):
        key, *ks = jax.random.split(key, 7)
        wq, bq = dense(ks[0], d_model, d_model)
        wk, bk = dense(ks[1], d_model, d_model)
        wv, bv = dense(ks[2], d_model, d_model)
        wo, bo = dense(ks[3], d_model, d_model)
        w1, b1 = dense(ks[4], d_model, d_ff)
        w2, b2 = dense(ks[5], d_ff, d_model)
        layers.append(dict(
            n1_a=jnp.ones((1, d_model), jnp.float32),
            n1_b=jnp.zeros((1, d_model), jnp.float32),
            n2_a=jnp.ones((1, d_model), jnp.float32),
            n2_b=jnp.zeros((1, d_model), jnp.float32),
            wq=wq, bq=bq, wk=wk, bk=bk, wv=wv, bv=bv, wo=wo, bo=bo,
            w1=w1, b1=b1, w2=w2, b2=b2))
    final = dict(a=jnp.ones((1, d_model), jnp.float32),
                 b=jnp.zeros((1, d_model), jnp.float32))
    return layers, final


# --------------------- pure-JAX f32 reference (torch-faithful) ---------------------
def _ref_forward(src, src_mask, layer_params, final_params, heads):
    def norm(x, a, b):
        d = x.shape[-1]
        mean = jnp.mean(x, axis=-1, keepdims=True)
        xc = x - mean
        std = jnp.sqrt(jnp.sum(xc * xc, axis=-1, keepdims=True) / (d - 1))
        return a * xc / (std + EPS) + b

    B, S, D = src.shape
    d_k = D // heads
    m = src_mask.astype(jnp.float32)
    mask4 = (m[:, None, :, None] * m[:, None, None, :])   # (B,1,S,S)
    x = src
    for p in layer_params:
        x2 = norm(x, p["n1_a"], p["n1_b"])
        q = (x2 @ p["wq"] + p["bq"]).reshape(B, S, heads, d_k).transpose(0, 2, 1, 3)
        k = (x2 @ p["wk"] + p["bk"]).reshape(B, S, heads, d_k).transpose(0, 2, 1, 3)
        v = (x2 @ p["wv"] + p["bv"]).reshape(B, S, heads, d_k).transpose(0, 2, 1, 3)
        s = jnp.einsum("bhqd,bhkd->bhqk", q, k) / math.sqrt(d_k)
        s = jnp.where(mask4 == 0.0, -1e9, s)
        s = jax.nn.softmax(s, axis=-1)
        o = jnp.einsum("bhqk,bhkd->bhqd", s, v).transpose(0, 2, 1, 3).reshape(B, S, D)
        x = x + (o @ p["wo"] + p["bo"])
        x2 = norm(x, p["n2_a"], p["n2_b"])
        h1 = jnp.maximum(x2 @ p["w1"] + p["b1"], 0.0)
        x = x + (h1 @ p["w2"] + p["b2"])
    return norm(x, final_params["a"], final_params["b"])


if __name__ == "__main__":
    d_model, N, heads = 32, 2, 4
    B, S = 2, 8

    root = jax.random.PRNGKey(0)
    k_params, k_src = jax.random.split(root)
    layer_params, final_params = init_params(k_params, d_model, N)

    src = jax.random.normal(k_src, (B, S, d_model), jnp.float32)
    src_mask = jnp.ones((B, S), jnp.float32).at[1, S - 2:].set(0.0)  # pad 2 tokens

    out = transformer_forward(src, src_mask, layer_params, final_params, heads)
    out = jax.block_until_ready(out)

    ref = _ref_forward(src, src_mask, layer_params, final_params, heads)
    assert out.shape == (B, S, d_model)
    # Tolerance sized for bf16 MXU operands (f32 accumulation) vs f32 reference.
    assert jnp.allclose(out, ref, atol=1e-1, rtol=1e-1), "mismatch vs JAX reference"

    print("KERNEL_OK")
</pallas_src>

<mosaic_0001>
module attributes {stable_mosaic.version = 11 : i64} {
  func.func @transformer_kernel(%arg0: i32, %arg1: i32, %arg2: memref<1x8x32xf32, #tpu.memory_space<vmem>>, %arg3: memref<1x1x8xf32, #tpu.memory_space<vmem>>, %arg4: memref<1x1x32xf32, #tpu.memory_space<vmem>>, %arg5: memref<1x1x32xf32, #tpu.memory_space<vmem>>, %arg6: memref<1x32x96xbf16, #tpu.memory_space<vmem>>, %arg7: memref<1x1x96xf32, #tpu.memory_space<vmem>>, %arg8: memref<1x32x32xbf16, #tpu.memory_space<vmem>>, %arg9: memref<1x1x32xf32, #tpu.memory_space<vmem>>, %arg10: memref<1x1x32xf32, #tpu.memory_space<vmem>>, %arg11: memref<1x1x32xf32, #tpu.memory_space<vmem>>, %arg12: memref<1x32x2048xbf16, #tpu.memory_space<vmem>>, %arg13: memref<1x1x2048xf32, #tpu.memory_space<vmem>>, %arg14: memref<1x2048x32xbf16, #tpu.memory_space<vmem>>, %arg15: memref<1x1x32xf32, #tpu.memory_space<vmem>>, %arg16: memref<1x32xf32, #tpu.memory_space<vmem>>, %arg17: memref<1x32xf32, #tpu.memory_space<vmem>>, %arg18: memref<1x8x32xf32, #tpu.memory_space<vmem>>, %arg19: memref<8x32xf32, #tpu.memory_space<vmem>>) attributes {dimension_semantics = [#tpu.dimension_semantics<parallel>, #tpu.dimension_semantics<arbitrary>], iteration_bounds = array<i64: 2, 2>, scalar_prefetch = 0 : i64, scratch_operands = 1 : i64, tpu.core_type = #tpu.core_type<tc>, window_params = [{transform_indices = @transform_0, window_bounds = array<i64: 1, 8, 32>}, {transform_indices = @transform_1, window_bounds = array<i64: 1, 1, 8>}, {transform_indices = @transform_2, window_bounds = array<i64: 1, 1, 32>}, {transform_indices = @transform_3, window_bounds = array<i64: 1, 1, 32>}, {transform_indices = @transform_4, window_bounds = array<i64: 1, 32, 96>}, {transform_indices = @transform_5, window_bounds = array<i64: 1, 1, 96>}, {transform_indices = @transform_6, window_bounds = array<i64: 1, 32, 32>}, {transform_indices = @transform_7, window_bounds = array<i64: 1, 1, 32>}, {transform_indices = @transform_8, window_bounds = array<i64: 1, 1, 32>}, {transform_indices = @transform_9, window_bounds = array<i64: 1, 1, 32>}, {transform_indices = @transform_10, window_bounds = array<i64: 1, 32, 2048>}, {transform_indices = @transform_11, window_bounds = array<i64: 1, 1, 2048>}, {transform_indices = @transform_12, window_bounds = array<i64: 1, 2048, 32>}, {transform_indices = @transform_13, window_bounds = array<i64: 1, 1, 32>}, {pipeline_mode = #tpu.pipeline_mode<synchronous>, transform_indices = @transform_14, window_bounds = array<i64: 1, 32>}, {pipeline_mode = #tpu.pipeline_mode<synchronous>, transform_indices = @transform_15, window_bounds = array<i64: 1, 32>}, {transform_indices = @transform_16, window_bounds = array<i64: 1, 8, 32>}]} {
    %c0_i32 = arith.constant 0 : i32
    %0 = arith.cmpi eq, %arg1, %c0_i32 : i32
    %1 = arith.extui %0 : i1 to i32
    %c0_i32_0 = arith.constant 0 : i32
    %2 = arith.cmpi ne, %1, %c0_i32_0 : i32
    scf.if %2 {
      %c0_133 = arith.constant 0 : index
      %c0_134 = arith.constant 0 : index
      %c0_135 = arith.constant 0 : index
      %283 = vector.load %arg2[%c0_133, %c0_134, %c0_135] : memref<1x8x32xf32, #tpu.memory_space<vmem>>, vector<1x8x32xf32>
      %c0_136 = arith.constant 0 : index
      %c0_137 = arith.constant 0 : index
      %c0_138 = arith.constant 0 : index
      %284 = vector.load %arg18[%c0_136, %c0_137, %c0_138] : memref<1x8x32xf32, #tpu.memory_space<vmem>>, vector<1x8x32xf32>
      tpu.vector_store %arg18[%c0_136, %c0_137, %c0_138], %283 {strides = array<i32>} : memref<1x8x32xf32, #tpu.memory_space<vmem>>, vector<1x8x32xf32>,
    } else {
    }
    %c0 = arith.constant 0 : index
    %c0_1 = arith.constant 0 : index
    %c0_2 = arith.constant 0 : index
    %3 = vector.load %arg18[%c0, %c0_1, %c0_2] : memref<1x8x32xf32, #tpu.memory_space<vmem>>, vector<1x8x32xf32>
    %4 = vector.shape_cast %3 : vector<1x8x32xf32> to vector<8x32xf32>
    %c0_3 = arith.constant 0 : index
    %c0_4 = arith.constant 0 : index
    %c0_5 = arith.constant 0 : index
    %5 = vector.load %arg3[%c0_3, %c0_4, %c0_5] : memref<1x1x8xf32, #tpu.memory_space<vmem>>, vector<1x1x8xf32>
    %6 = vector.shape_cast %5 : vector<1x1x8xf32> to vector<1x8xf32>
    %cst = arith.constant 1.000000e+00 : f32
    %7 = vector.broadcast %cst : f32 to vector<1x8xf32>
    %8 = arith.subf %6, %7 : vector<1x8xf32>
    %cst_6 = arith.constant 1.000000e+09 : f32
    %9 = vector.broadcast %cst_6 : f32 to vector<1x8xf32>
    %10 = arith.mulf %8, %9 : vector<1x8xf32>
    %11 = tpu.transpose %6, [1, 0] : vector<1x8xf32> -> vector<8x1xf32>
    %c0_7 = arith.constant 0 : index
    %c0_8 = arith.constant 0 : index
    %c0_9 = arith.constant 0 : index
    %12 = vector.load %arg4[%c0_7, %c0_8, %c0_9] : memref<1x1x32xf32, #tpu.memory_space<vmem>>, vector<1x1x32xf32>
    %13 = vector.shape_cast %12 : vector<1x1x32xf32> to vector<1x32xf32>
    %c0_10 = arith.constant 0 : index
    %c0_11 = arith.constant 0 : index
    %c0_12 = arith.constant 0 : index
    %14 = vector.load %arg5[%c0_10, %c0_11, %c0_12] : memref<1x1x32xf32, #tpu.memory_space<vmem>>, vector<1x1x32xf32>
    %15 = vector.shape_cast %14 : vector<1x1x32xf32> to vector<1x32xf32>
    %cst_13 = arith.constant dense<0.000000e+00> : vector<8xf32>
    %16 = vector.multi_reduction <add>, %4, %cst_13 [1] : vector<8x32xf32> to vector<8xf32>
    %17 = vector.shape_cast %16 : vector<8xf32> to vector<8x1xf32>
    %cst_14 = arith.constant 3.200000e+01 : f32
    %18 = vector.broadcast %cst_14 : f32 to vector<8x1xf32>
    %19 = arith.divf %17, %18 : vector<8x1xf32>
    %20 = vector.broadcast %19 : vector<8x1xf32> to vector<8x32xf32>
    %21 = arith.subf %4, %20 : vector<8x32xf32>
    %22 = arith.mulf %21, %21 : vector<8x32xf32>
    %cst_15 = arith.constant dense<0.000000e+00> : vector<8xf32>
    %23 = vector.multi_reduction <add>, %22, %cst_15 [1] : vector<8x32xf32> to vector<8xf32>
    %24 = vector.shape_cast %23 : vector<8xf32> to vector<8x1xf32>
    %cst_16 = arith.constant 0.0322580636 : f32
    %25 = vector.broadcast %cst_16 : f32 to vector<8x1xf32>
    %26 = arith.mulf %24, %25 : vector<8x1xf32>
    %27 = math.sqrt %26 : vector<8x1xf32>
    %cst_17 = arith.constant 9.99999997E-7 : f32
    %28 = vector.broadcast %cst_17 : f32 to vector<8x1xf32>
    %29 = arith.addf %27, %28 : vector<8x1xf32>
    %cst_18 = arith.constant 1.000000e+00 : f32
    %30 = vector.broadcast %cst_18 : f32 to vector<8x1xf32>
    %31 = arith.divf %30, %29 : vector<8x1xf32>
    %32 = vector.broadcast %31 : vector<8x1xf32> to vector<8x32xf32>
    %33 = arith.mulf %21, %32 : vector<8x32xf32>
    %34 = vector.broadcast %13 : vector<1x32xf32> to vector<8x32xf32>
    %35 = arith.mulf %34, %33 : vector<8x32xf32>
    %36 = vector.broadcast %15 : vector<1x32xf32> to vector<8x32xf32>
    %37 = arith.addf %35, %36 : vector<8x32xf32>
    %38 = arith.truncf %37 : vector<8x32xf32> to vector<8x32xbf16>
    %c0_19 = arith.constant 0 : index
    %c0_20 = arith.constant 0 : index
    %c0_21 = arith.constant 0 : index
    %39 = vector.load %arg6[%c0_19, %c0_20, %c0_21] : memref<1x32x96xbf16, #tpu.memory_space<vmem>>, vector<1x32x96xbf16>
    %40 = vector.shape_cast %39 : vector<1x32x96xbf16> to vector<32x96xbf16>
    %cst_22 = arith.constant dense<0.000000e+00> : vector<8x96xf32>
    %41 = tpu.matmul %38, %40, %cst_22 {dimension_numbers = #tpu.dot_dimension_numbers<[1], [0], [0], [1], [0, 0, 1, 1], [], []>} : vector<8x32xbf16>, vector<32x96xbf16>, vector<8x96xf32> -> vector<8x96xf32>
    %c0_23 = arith.constant 0 : index
    %c0_24 = arith.constant 0 : index
    %c0_25 = arith.constant 0 : index
    %42 = vector.load %arg7[%c0_23, %c0_24, %c0_25] : memref<1x1x96xf32, #tpu.memory_space<vmem>>, vector<1x1x96xf32>
    %43 = vector.shape_cast %42 : vector<1x1x96xf32> to vector<1x96xf32>
    %44 = vector.broadcast %43 : vector<1x96xf32> to vector<8x96xf32>
    %45 = arith.addf %41, %44 : vector<8x96xf32>
    %46 = vector.extract_strided_slice %45 {offsets = [0, 0], sizes = [8, 8], strides = [1, 1]} : vector<8x96xf32> to vector<8x8xf32>
    %47 = arith.truncf %46 : vector<8x8xf32> to vector<8x8xbf16>
    %48 = vector.extract_strided_slice %45 {offsets = [0, 32], sizes = [8, 8], strides = [1, 1]} : vector<8x96xf32> to vector<8x8xf32>
    %49 = arith.truncf %48 : vector<8x8xf32> to vector<8x8xbf16>
    %50 = vector.extract_strided_slice %45 {offsets = [0, 64], sizes = [8, 8], strides = [1, 1]} : vector<8x96xf32> to vector<8x8xf32>
    %cst_26 = arith.constant dense<0.000000e+00> : vector<8x8xf32>
    %51 = tpu.matmul %47, %49, %cst_26 {dimension_numbers = #tpu.dot_dimension_numbers<[1], [1], [0], [0], [0, 0, 1, 0], [], []>} : vector<8x8xbf16>, vector<8x8xbf16>, vector<8x8xf32> -> vector<8x8xf32>
    %52 = vector.broadcast %10 : vector<1x8xf32> to vector<8x8xf32>
    %53 = arith.addf %51, %52 : vector<8x8xf32>
    %cst_27 = arith.constant dense<0xFF800000> : vector<8xf32>
    %54 = vector.multi_reduction <maximumf>, %53, %cst_27 [1] : vector<8x8xf32> to vector<8xf32>
    %55 = vector.shape_cast %54 : vector<8xf32> to vector<8x1xf32>
    %56 = vector.broadcast %55 : vector<8x1xf32> to vector<8x8xf32>
    %57 = arith.subf %53, %56 : vector<8x8xf32>
    %58 = math.exp %57 : vector<8x8xf32>
    %cst_28 = arith.constant dense<0.000000e+00> : vector<8xf32>
    %59 = vector.multi_reduction <add>, %58, %cst_28 [1] : vector<8x8xf32> to vector<8xf32>
    %60 = vector.shape_cast %59 : vector<8xf32> to vector<8x1xf32>
    %61 = tpu.reciprocal %60 {approx = true} : vector<8x1xf32> -> vector<8x1xf32>
    %62 = vector.broadcast %61 : vector<8x1xf32> to vector<8x8xf32>
    %63 = arith.mulf %58, %62 : vector<8x8xf32>
    %64 = arith.truncf %63 : vector<8x8xf32> to vector<8x8xbf16>
    %65 = arith.truncf %50 : vector<8x8xf32> to vector<8x8xbf16>
    %cst_29 = arith.constant dense<0.000000e+00> : vector<8x8xf32>
    %66 = tpu.matmul %64, %65, %cst_29 {dimension_numbers = #tpu.dot_dimension_numbers<[1], [0], [0], [1], [0, 0, 1, 1], [], []>} : vector<8x8xbf16>, vector<8x8xbf16>, vector<8x8xf32> -> vector<8x8xf32>
    %cst_30 = arith.constant dense<0.000000e+00> : vector<8xf32>
    %67 = vector.multi_reduction <add>, %50, %cst_30 [0] : vector<8x8xf32> to vector<8xf32>
    %68 = vector.shape_cast %67 : vector<8xf32> to vector<1x8xf32>
    %cst_31 = arith.constant 8.000000e+00 : f32
    %69 = vector.broadcast %cst_31 : f32 to vector<1x8xf32>
    %70 = arith.divf %68, %69 : vector<1x8xf32>
    %cst_32 = arith.constant 0.000000e+00 : f32
    %71 = vector.broadcast %cst_32 : f32 to vector<8x1xf32>
    %72 = arith.cmpf ogt, %11, %71 : vector<8x1xf32>
    %73 = vector.shape_cast %72 : vector<8x1xi1> to vector<8x1xi1>
    %74 = vector.broadcast %73 : vector<8x1xi1> to vector<8x8xi1>
    %75 = vector.shape_cast %70 : vector<1x8xf32> to vector<1x8xf32>
    %76 = vector.broadcast %75 : vector<1x8xf32> to vector<8x8xf32>
    %77 = arith.select %74, %66, %76 : vector<8x8xi1>, vector<8x8xf32>
    %c0_33 = arith.constant 0 : index
    %c0_34 = arith.constant 0 : index
    %78 = vector.load %arg19[%c0_33, %c0_34] : memref<8x32xf32, #tpu.memory_space<vmem>>, vector<8x8xf32>
    tpu.vector_store %arg19[%c0_33, %c0_34], %77 {strides = array<i32>} : memref<8x32xf32, #tpu.memory_space<vmem>>, vector<8x8xf32>,
    %79 = vector.extract_strided_slice %45 {offsets = [0, 8], sizes = [8, 8], strides = [1, 1]} : vector<8x96xf32> to vector<8x8xf32>
    %80 = arith.truncf %79 : vector<8x8xf32> to vector<8x8xbf16>
    %81 = vector.extract_strided_slice %45 {offsets = [0, 40], sizes = [8, 8], strides = [1, 1]} : vector<8x96xf32> to vector<8x8xf32>
    %82 = arith.truncf %81 : vector<8x8xf32> to vector<8x8xbf16>
    %83 = vector.extract_strided_slice %45 {offsets = [0, 72], sizes = [8, 8], strides = [1, 1]} : vector<8x96xf32> to vector<8x8xf32>
    %cst_35 = arith.constant dense<0.000000e+00> : vector<8x8xf32>
    %84 = tpu.matmul %80, %82, %cst_35 {dimension_numbers = #tpu.dot_dimension_numbers<[1], [1], [0], [0], [0, 0, 1, 0], [], []>} : vector<8x8xbf16>, vector<8x8xbf16>, vector<8x8xf32> -> vector<8x8xf32>
    %85 = vector.broadcast %10 : vector<1x8xf32> to vector<8x8xf32>
    %86 = arith.addf %84, %85 : vector<8x8xf32>
    %cst_36 = arith.constant dense<0xFF800000> : vector<8xf32>
    %87 = vector.multi_reduction <maximumf>, %86, %cst_36 [1] : vector<8x8xf32> to vector<8xf32>
    %88 = vector.shape_cast %87 : vector<8xf32> to vector<8x1xf32>
    %89 = vector.broadcast %88 : vector<8x1xf32> to vector<8x8xf32>
    %90 = arith.subf %86, %89 : vector<8x8xf32>
    %91 = math.exp %90 : vector<8x8xf32>
    %cst_37 = arith.constant dense<0.000000e+00> : vector<8xf32>
    %92 = vector.multi_reduction <add>, %91, %cst_37 [1] : vector<8x8xf32> to vector<8xf32>
    %93 = vector.shape_cast %92 : vector<8xf32> to vector<8x1xf32>
    %94 = tpu.reciprocal %93 {approx = true} : vector<8x1xf32> -> vector<8x1xf32>
    %95 = vector.broadcast %94 : vector<8x1xf32> to vector<8x8xf32>
    %96 = arith.mulf %91, %95 : vector<8x8xf32>
    %97 = arith.truncf %96 : vector<8x8xf32> to vector<8x8xbf16>
    %98 = arith.truncf %83 : vector<8x8xf32> to vector<8x8xbf16>
    %cst_38 = arith.constant dense<0.000000e+00> : vector<8x8xf32>
    %99 = tpu.matmul %97, %98, %cst_38 {dimension_numbers = #tpu.dot_dimension_numbers<[1], [0], [0], [1], [0, 0, 1, 1], [], []>} : vector<8x8xbf16>, vector<8x8xbf16>, vector<8x8xf32> -> vector<8x8xf32>
    %cst_39 = arith.constant dense<0.000000e+00> : vector<8xf32>
    %100 = vector.multi_reduction <add>, %83, %cst_39 [0] : vector<8x8xf32> to vector<8xf32>
    %101 = vector.shape_cast %100 : vector<8xf32> to vector<1x8xf32>
    %cst_40 = arith.constant 8.000000e+00 : f32
    %102 = vector.broadcast %cst_40 : f32 to vector<1x8xf32>
    %103 = arith.divf %101, %102 : vector<1x8xf32>
    %cst_41 = arith.constant 0.000000e+00 : f32
    %104 = vector.broadcast %cst_41 : f32 to vector<8x1xf32>
    %105 = arith.cmpf ogt, %11, %104 : vector<8x1xf32>
    %106 = vector.shape_cast %105 : vector<8x1xi1> to vector<8x1xi1>
    %107 = vector.broadcast %106 : vector<8x1xi1> to vector<8x8xi1>
    %108 = vector.shape_cast %103 : vector<1x8xf32> to vector<1x8xf32>
    %109 = vector.broadcast %108 : vector<1x8xf32> to vector<8x8xf32>
    %110 = arith.select %107, %99, %109 : vector<8x8xi1>, vector<8x8xf32>
    %c0_42 = arith.constant 0 : index
    %c8 = arith.constant 8 : index
    %111 = vector.load %arg19[%c0_42, %c8] : memref<8x32xf32, #tpu.memory_space<vmem>>, vector<8x8xf32>
    tpu.vector_store %arg19[%c0_42, %c8], %110 {strides = array<i32>} : memref<8x32xf32, #tpu.memory_space<vmem>>, vector<8x8xf32>,
    %112 = vector.extract_strided_slice %45 {offsets = [0, 16], sizes = [8, 8], strides = [1, 1]} : vector<8x96xf32> to vector<8x8xf32>
    %113 = arith.truncf %112 : vector<8x8xf32> to vector<8x8xbf16>
    %114 = vector.extract_strided_slice %45 {offsets = [0, 48], sizes = [8, 8], strides = [1, 1]} : vector<8x96xf32> to vector<8x8xf32>
    %115 = arith.truncf %114 : vector<8x8xf32> to vector<8x8xbf16>
    %116 = vector.extract_strided_slice %45 {offsets = [0, 80], sizes = [8, 8], strides = [1, 1]} : vector<8x96xf32> to vector<8x8xf32>
    %cst_43 = arith.constant dense<0.000000e+00> : vector<8x8xf32>
    %117 = tpu.matmul %113, %115, %cst_43 {dimension_numbers = #tpu.dot_dimension_numbers<[1], [1], [0], [0], [0, 0, 1, 0], [], []>} : vector<8x8xbf16>, vector<8x8xbf16>, vector<8x8xf32> -> vector<8x8xf32>
    %118 = vector.broadcast %10 : vector<1x8xf32> to vector<8x8xf32>
    %119 = arith.addf %117, %118 : vector<8x8xf32>
    %cst_44 = arith.constant dense<0xFF800000> : vector<8xf32>
    %120 = vector.multi_reduction <maximumf>, %119, %cst_44 [1] : vector<8x8xf32> to vector<8xf32>
    %121 = vector.shape_cast %120 : vector<8xf32> to vector<8x1xf32>
    %122 = vector.broadcast %121 : vector<8x1xf32> to vector<8x8xf32>
    %123 = arith.subf %119, %122 : vector<8x8xf32>
    %124 = math.exp %123 : vector<8x8xf32>
    %cst_45 = arith.constant dense<0.000000e+00> : vector<8xf32>
    %125 = vector.multi_reduction <add>, %124, %cst_45 [1] : vector<8x8xf32> to vector<8xf32>
    %126 = vector.shape_cast %125 : vector<8xf32> to vector<8x1xf32>
    %127 = tpu.reciprocal %126 {approx = true} : vector<8x1xf32> -> vector<8x1xf32>
    %128 = vector.broadcast %127 : vector<8x1xf32> to vector<8x8xf32>
    %129 = arith.mulf %124, %128 : vector<8x8xf32>
    %130 = arith.truncf %129 : vector<8x8xf32> to vector<8x8xbf16>
    %131 = arith.truncf %116 : vector<8x8xf32> to vector<8x8xbf16>
    %cst_46 = arith.constant dense<0.000000e+00> : vector<8x8xf32>
    %132 = tpu.matmul %130, %131, %cst_46 {dimension_numbers = #tpu.dot_dimension_numbers<[1], [0], [0], [1], [0, 0, 1, 1], [], []>} : vector<8x8xbf16>, vector<8x8xbf16>, vector<8x8xf32> -> vector<8x8xf32>
    %cst_47 = arith.constant dense<0.000000e+00> : vector<8xf32>
    %133 = vector.multi_reduction <add>, %116, %cst_47 [0] : vector<8x8xf32> to vector<8xf32>
    %134 = vector.shape_cast %133 : vector<8xf32> to vector<1x8xf32>
    %cst_48 = arith.constant 8.000000e+00 : f32
    %135 = vector.broadcast %cst_48 : f32 to vector<1x8xf32>
    %136 = arith.divf %134, %135 : vector<1x8xf32>
    %cst_49 = arith.constant 0.000000e+00 : f32
    %137 = vector.broadcast %cst_49 : f32 to vector<8x1xf32>
    %138 = arith.cmpf ogt, %11, %137 : vector<8x1xf32>
    %139 = vector.shape_cast %138 : vector<8x1xi1> to vector<8x1xi1>
    %140 = vector.broadcast %139 : vector<8x1xi1> to vector<8x8xi1>
    %141 = vector.shape_cast %136 : vector<1x8xf32> to vector<1x8xf32>
    %142 = vector.broadcast %141 : vector<1x8xf32> to vector<8x8xf32>
    %143 = arith.select %140, %132, %142 : vector<8x8xi1>, vector<8x8xf32>
    %c0_50 = arith.constant 0 : index
    %c16 = arith.constant 16 : index
    %144 = vector.load %arg19[%c0_50, %c16] : memref<8x32xf32, #tpu.memory_space<vmem>>, vector<8x8xf32>
    tpu.vector_store %arg19[%c0_50, %c16], %143 {strides = array<i32>} : memref<8x32xf32, #tpu.memory_space<vmem>>, vector<8x8xf32>,
    %145 = vector.extract_strided_slice %45 {offsets = [0, 24], sizes = [8, 8], strides = [1, 1]} : vector<8x96xf32> to vector<8x8xf32>
    %146 = arith.truncf %145 : vector<8x8xf32> to vector<8x8xbf16>
    %147 = vector.extract_strided_slice %45 {offsets = [0, 56], sizes = [8, 8], strides = [1, 1]} : vector<8x96xf32> to vector<8x8xf32>
    %148 = arith.truncf %147 : vector<8x8xf32> to vector<8x8xbf16>
    %149 = vector.extract_strided_slice %45 {offsets = [0, 88], sizes = [8, 8], strides = [1, 1]} : vector<8x96xf32> to vector<8x8xf32>
    %cst_51 = arith.constant dense<0.000000e+00> : vector<8x8xf32>
    %150 = tpu.matmul %146, %148, %cst_51 {dimension_numbers = #tpu.dot_dimension_numbers<[1], [1], [0], [0], [0, 0, 1, 0], [], []>} : vector<8x8xbf16>, vector<8x8xbf16>, vector<8x8xf32> -> vector<8x8xf32>
    %151 = vector.broadcast %10 : vector<1x8xf32> to vector<8x8xf32>
    %152 = arith.addf %150, %151 : vector<8x8xf32>
    %cst_52 = arith.constant dense<0xFF800000> : vector<8xf32>
    %153 = vector.multi_reduction <maximumf>, %152, %cst_52 [1] : vector<8x8xf32> to vector<8xf32>
    %154 = vector.shape_cast %153 : vector<8xf32> to vector<8x1xf32>
    %155 = vector.broadcast %154 : vector<8x1xf32> to vector<8x8xf32>
    %156 = arith.subf %152, %155 : vector<8x8xf32>
    %157 = math.exp %156 : vector<8x8xf32>
    %cst_53 = arith.constant dense<0.000000e+00> : vector<8xf32>
    %158 = vector.multi_reduction <add>, %157, %cst_53 [1] : vector<8x8xf32> to vector<8xf32>
    %159 = vector.shape_cast %158 : vector<8xf32> to vector<8x1xf32>
    %160 = tpu.reciprocal %159 {approx = true} : vector<8x1xf32> -> vector<8x1xf32>
    %161 = vector.broadcast %160 : vector<8x1xf32> to vector<8x8xf32>
    %162 = arith.mulf %157, %161 : vector<8x8xf32>
    %163 = arith.truncf %162 : vector<8x8xf32> to vector<8x8xbf16>
    %164 = arith.truncf %149 : vector<8x8xf32> to vector<8x8xbf16>
    %cst_54 = arith.constant dense<0.000000e+00> : vector<8x8xf32>
    %165 = tpu.matmul %163, %164, %cst_54 {dimension_numbers = #tpu.dot_dimension_numbers<[1], [0], [0], [1], [0, 0, 1, 1], [], []>} : vector<8x8xbf16>, vector<8x8xbf16>, vector<8x8xf32> -> vector<8x8xf32>
    %cst_55 = arith.constant dense<0.000000e+00> : vector<8xf32>
    %166 = vector.multi_reduction <add>, %149, %cst_55 [0] : vector<8x8xf32> to vector<8xf32>
    %167 = vector.shape_cast %166 : vector<8xf32> to vector<1x8xf32>
    %cst_56 = arith.constant 8.000000e+00 : f32
    %168 = vector.broadcast %cst_56 : f32 to vector<1x8xf32>
    %169 = arith.divf %167, %168 : vector<1x8xf32>
    %cst_57 = arith.constant 0.000000e+00 : f32
    %170 = vector.broadcast %cst_57 : f32 to vector<8x1xf32>
    %171 = arith.cmpf ogt, %11, %170 : vector<8x1xf32>
    %172 = vector.shape_cast %171 : vector<8x1xi1> to vector<8x1xi1>
    %173 = vector.broadcast %172 : vector<8x1xi1> to vector<8x8xi1>
    %174 = vector.shape_cast %169 : vector<1x8xf32> to vector<1x8xf32>
    %175 = vector.broadcast %174 : vector<1x8xf32> to vector<8x8xf32>
    %176 = arith.select %173, %165, %175 : vector<8x8xi1>, vector<8x8xf32>
    %c0_58 = arith.constant 0 : index
    %c24 = arith.constant 24 : index
    %177 = vector.load %arg19[%c0_58, %c24] : memref<8x32xf32, #tpu.memory_space<vmem>>, vector<8x8xf32>
    tpu.vector_store %arg19[%c0_58, %c24], %176 {strides = array<i32>} : memref<8x32xf32, #tpu.memory_space<vmem>>, vector<8x8xf32>,
    %c0_59 = arith.constant 0 : index
    %c0_60 = arith.constant 0 : index
    %178 = vector.load %arg19[%c0_59, %c0_60] : memref<8x32xf32, #tpu.memory_space<vmem>>, vector<8x32xf32>
    %179 = arith.truncf %178 : vector<8x32xf32> to vector<8x32xbf16>
    %c0_61 = arith.constant 0 : index
    %c0_62 = arith.constant 0 : index
    %c0_63 = arith.constant 0 : index
    %180 = vector.load %arg8[%c0_61, %c0_62, %c0_63] : memref<1x32x32xbf16, #tpu.memory_space<vmem>>, vector<1x32x32xbf16>
    %181 = vector.shape_cast %180 : vector<1x32x32xbf16> to vector<32x32xbf16>
    %cst_64 = arith.constant dense<0.000000e+00> : vector<8x32xf32>
    %182 = tpu.matmul %179, %181, %cst_64 {dimension_numbers = #tpu.dot_dimension_numbers<[1], [0], [0], [1], [0, 0, 1, 1], [], []>} : vector<8x32xbf16>, vector<32x32xbf16>, vector<8x32xf32> -> vector<8x32xf32>
    %c0_65 = arith.constant 0 : index
    %c0_66 = arith.constant 0 : index
    %c0_67 = arith.constant 0 : index
    %183 = vector.load %arg9[%c0_65, %c0_66, %c0_67] : memref<1x1x32xf32, #tpu.memory_space<vmem>>, vector<1x1x32xf32>
    %184 = vector.shape_cast %183 : vector<1x1x32xf32> to vector<1x32xf32>
    %185 = vector.broadcast %184 : vector<1x32xf32> to vector<8x32xf32>
    %186 = arith.addf %182, %185 : vector<8x32xf32>
    %187 = arith.addf %4, %186 : vector<8x32xf32>
    %c0_68 = arith.constant 0 : index
    %c0_69 = arith.constant 0 : index
    %c0_70 = arith.constant 0 : index
    %188 = vector.load %arg10[%c0_68, %c0_69, %c0_70] : memref<1x1x32xf32, #tpu.memory_space<vmem>>, vector<1x1x32xf32>
    %189 = vector.shape_cast %188 : vector<1x1x32xf32> to vector<1x32xf32>
    %c0_71 = arith.constant 0 : index
    %c0_72 = arith.constant 0 : index
    %c0_73 = arith.constant 0 : index
    %190 = vector.load %arg11[%c0_71, %c0_72, %c0_73] : memref<1x1x32xf32, #tpu.memory_space<vmem>>, vector<1x1x32xf32>
    %191 = vector.shape_cast %190 : vector<1x1x32xf32> to vector<1x32xf32>
    %cst_74 = arith.constant dense<0.000000e+00> : vector<8xf32>
    %192 = vector.multi_reduction <add>, %187, %cst_74 [1] : vector<8x32xf32> to vector<8xf32>
    %193 = vector.shape_cast %192 : vector<8xf32> to vector<8x1xf32>
    %cst_75 = arith.constant 3.200000e+01 : f32
    %194 = vector.broadcast %cst_75 : f32 to vector<8x1xf32>
    %195 = arith.divf %193, %194 : vector<8x1xf32>
    %196 = vector.broadcast %195 : vector<8x1xf32> to vector<8x32xf32>
    %197 = arith.subf %187, %196 : vector<8x32xf32>
    %198 = arith.mulf %197, %197 : vector<8x32xf32>
    %cst_76 = arith.constant dense<0.000000e+00> : vector<8xf32>
    %199 = vector.multi_reduction <add>, %198, %cst_76 [1] : vector<8x32xf32> to vector<8xf32>
    %200 = vector.shape_cast %199 : vector<8xf32> to vector<8x1xf32>
    %cst_77 = arith.constant 0.0322580636 : f32
    %201 = vector.broadcast %cst_77 : f32 to vector<8x1xf32>
    %202 = arith.mulf %200, %201 : vector<8x1xf32>
    %203 = math.sqrt %202 : vector<8x1xf32>
    %cst_78 = arith.constant 9.99999997E-7 : f32
    %204 = vector.broadcast %cst_78 : f32 to vector<8x1xf32>
    %205 = arith.addf %203, %204 : vector<8x1xf32>
    %cst_79 = arith.constant 1.000000e+00 : f32
    %206 = vector.broadcast %cst_79 : f32 to vector<8x1xf32>
    %207 = arith.divf %206, %205 : vector<8x1xf32>
    %208 = vector.broadcast %207 : vector<8x1xf32> to vector<8x32xf32>
    %209 = arith.mulf %197, %208 : vector<8x32xf32>
    %210 = vector.broadcast %189 : vector<1x32xf32> to vector<8x32xf32>
    %211 = arith.mulf %210, %209 : vector<8x32xf32>
    %212 = vector.broadcast %191 : vector<1x32xf32> to vector<8x32xf32>
    %213 = arith.addf %211, %212 : vector<8x32xf32>
    %214 = arith.truncf %213 : vector<8x32xf32> to vector<8x32xbf16>
    %cst_80 = arith.constant 0.000000e+00 : f32
    %215 = vector.broadcast %cst_80 : f32 to vector<8x32xf32>
    %c0_81 = arith.constant 0 : index
    %c0_82 = arith.constant 0 : index
    %c0_83 = arith.constant 0 : index
    %216 = vector.load %arg12[%c0_81, %c0_82, %c0_83] : memref<1x32x2048xbf16, #tpu.memory_space<vmem>>, vector<1x32x512xbf16>
    %217 = vector.shape_cast %216 : vector<1x32x512xbf16> to vector<32x512xbf16>
    %cst_84 = arith.constant dense<0.000000e+00> : vector<8x512xf32>
    %218 = tpu.matmul %214, %217, %cst_84 {dimension_numbers = #tpu.dot_dimension_numbers<[1], [0], [0], [1], [0, 0, 1, 1], [], []>} : vector<8x32xbf16>, vector<32x512xbf16>, vector<8x512xf32> -> vector<8x512xf32>
    %c0_85 = arith.constant 0 : index
    %c0_86 = arith.constant 0 : index
    %c0_87 = arith.constant 0 : index
    %219 = vector.load %arg13[%c0_85, %c0_86, %c0_87] : memref<1x1x2048xf32, #tpu.memory_space<vmem>>, vector<1x1x512xf32>
    %220 = vector.shape_cast %219 : vector<1x1x512xf32> to vector<1x512xf32>
    %221 = vector.broadcast %220 : vector<1x512xf32> to vector<8x512xf32>
    %222 = arith.addf %218, %221 : vector<8x512xf32>
    %cst_88 = arith.constant 0.000000e+00 : f32
    %223 = vector.broadcast %cst_88 : f32 to vector<8x512xf32>
    %224 = arith.maximumf %222, %223 : vector<8x512xf32>
    %225 = arith.truncf %224 : vector<8x512xf32> to vector<8x512xbf16>
    %c0_89 = arith.constant 0 : index
    %c0_90 = arith.constant 0 : index
    %c0_91 = arith.constant 0 : index
    %226 = vector.load %arg14[%c0_89, %c0_90, %c0_91] : memref<1x2048x32xbf16, #tpu.memory_space<vmem>>, vector<1x512x32xbf16>
    %227 = vector.shape_cast %226 : vector<1x512x32xbf16> to vector<512x32xbf16>
    %cst_92 = arith.constant dense<0.000000e+00> : vector<8x32xf32>
    %228 = tpu.matmul %225, %227, %cst_92 {dimension_numbers = #tpu.dot_dimension_numbers<[1], [0], [0], [1], [0, 0, 1, 1], [], []>} : vector<8x512xbf16>, vector<512x32xbf16>, vector<8x32xf32> -> vector<8x32xf32>
    %229 = arith.addf %215, %228 : vector<8x32xf32>
    %c0_93 = arith.constant 0 : index
    %c0_94 = arith.constant 0 : index
    %c512 = arith.constant 512 : index
    %230 = vector.load %arg12[%c0_93, %c0_94, %c512] : memref<1x32x2048xbf16, #tpu.memory_space<vmem>>, vector<1x32x512xbf16>
    %231 = vector.shape_cast %230 : vector<1x32x512xbf16> to vector<32x512xbf16>
    %cst_95 = arith.constant dense<0.000000e+00> : vector<8x512xf32>
    %232 = tpu.matmul %214, %231, %cst_95 {dimension_numbers = #tpu.dot_dimension_numbers<[1], [0], [0], [1], [0, 0, 1, 1], [], []>} : vector<8x32xbf16>, vector<32x512xbf16>, vector<8x512xf32> -> vector<8x512xf32>
    %c0_96 = arith.constant 0 : index
    %c0_97 = arith.constant 0 : index
    %c512_98 = arith.constant 512 : index
    %233 = vector.load %arg13[%c0_96, %c0_97, %c512_98] : memref<1x1x2048xf32, #tpu.memory_space<vmem>>, vector<1x1x512xf32>
    %234 = vector.shape_cast %233 : vector<1x1x512xf32> to vector<1x512xf32>
    %235 = vector.broadcast %234 : vector<1x512xf32> to vector<8x512xf32>
    %236 = arith.addf %232, %235 : vector<8x512xf32>
    %cst_99 = arith.constant 0.000000e+00 : f32
    %237 = vector.broadcast %cst_99 : f32 to vector<8x512xf32>
    %238 = arith.maximumf %236, %237 : vector<8x512xf32>
    %239 = arith.truncf %238 : vector<8x512xf32> to vector<8x512xbf16>
    %c0_100 = arith.constant 0 : index
    %c512_101 = arith.constant 512 : index
    %c0_102 = arith.constant 0 : index
    %240 = vector.load %arg14[%c0_100, %c512_101, %c0_102] : memref<1x2048x32xbf16, #tpu.memory_space<vmem>>, vector<1x512x32xbf16>
    %241 = vector.shape_cast %240 : vector<1x512x32xbf16> to vector<512x32xbf16>
    %cst_103 = arith.constant dense<0.000000e+00> : vector<8x32xf32>
    %242 = tpu.matmul %239, %241, %cst_103 {dimension_numbers = #tpu.dot_dimension_numbers<[1], [0], [0], [1], [0, 0, 1, 1], [], []>} : vector<8x512xbf16>, vector<512x32xbf16>, vector<8x32xf32> -> vector<8x32xf32>
    %243 = arith.addf %229, %242 : vector<8x32xf32>
    %c0_104 = arith.constant 0 : index
    %c0_105 = arith.constant 0 : index
    %c1024 = arith.constant 1024 : index
    %244 = vector.load %arg12[%c0_104, %c0_105, %c1024] : memref<1x32x2048xbf16, #tpu.memory_space<vmem>>, vector<1x32x512xbf16>
    %245 = vector.shape_cast %244 : vector<1x32x512xbf16> to vector<32x512xbf16>
    %cst_106 = arith.constant dense<0.000000e+00> : vector<8x512xf32>
    %246 = tpu.matmul %214, %245, %cst_106 {dimension_numbers = #tpu.dot_dimension_numbers<[1], [0], [0], [1], [0, 0, 1, 1], [], []>} : vector<8x32xbf16>, vector<32x512xbf16>, vector<8x512xf32> -> vector<8x512xf32>
    %c0_107 = arith.constant 0 : index
    %c0_108 = arith.constant 0 : index
    %c1024_109 = arith.constant 1024 : index
    %247 = vector.load %arg13[%c0_107, %c0_108, %c1024_109] : memref<1x1x2048xf32, #tpu.memory_space<vmem>>, vector<1x1x512xf32>
    %248 = vector.shape_cast %247 : vector<1x1x512xf32> to vector<1x512xf32>
    %249 = vector.broadcast %248 : vector<1x512xf32> to vector<8x512xf32>
    %250 = arith.addf %246, %249 : vector<8x512xf32>
    %cst_110 = arith.constant 0.000000e+00 : f32
    %251 = vector.broadcast %cst_110 : f32 to vector<8x512xf32>
    %252 = arith.maximumf %250, %251 : vector<8x512xf32>
    %253 = arith.truncf %252 : vector<8x512xf32> to vector<8x512xbf16>
    %c0_111 = arith.constant 0 : index
    %c1024_112 = arith.constant 1024 : index
    %c0_113 = arith.constant 0 : index
    %254 = vector.load %arg14[%c0_111, %c1024_112, %c0_113] : memref<1x2048x32xbf16, #tpu.memory_space<vmem>>, vector<1x512x32xbf16>
    %255 = vector.shape_cast %254 : vector<1x512x32xbf16> to vector<512x32xbf16>
    %cst_114 = arith.constant dense<0.000000e+00> : vector<8x32xf32>
    %256 = tpu.matmul %253, %255, %cst_114 {dimension_numbers = #tpu.dot_dimension_numbers<[1], [0], [0], [1], [0, 0, 1, 1], [], []>} : vector<8x512xbf16>, vector<512x32xbf16>, vector<8x32xf32> -> vector<8x32xf32>
    %257 = arith.addf %243, %256 : vector<8x32xf32>
    %c0_115 = arith.constant 0 : index
    %c0_116 = arith.constant 0 : index
    %c1536 = arith.constant 1536 : index
    %258 = vector.load %arg12[%c0_115, %c0_116, %c1536] : memref<1x32x2048xbf16, #tpu.memory_space<vmem>>, vector<1x32x512xbf16>
    %259 = vector.shape_cast %258 : vector<1x32x512xbf16> to vector<32x512xbf16>
    %cst_117 = arith.constant dense<0.000000e+00> : vector<8x512xf32>
    %260 = tpu.matmul %214, %259, %cst_117 {dimension_numbers = #tpu.dot_dimension_numbers<[1], [0], [0], [1], [0, 0, 1, 1], [], []>} : vector<8x32xbf16>, vector<32x512xbf16>, vector<8x512xf32> -> vector<8x512xf32>
    %c0_118 = arith.constant 0 : index
    %c0_119 = arith.constant 0 : index
    %c1536_120 = arith.constant 1536 : index
    %261 = vector.load %arg13[%c0_118, %c0_119, %c1536_120] : memref<1x1x2048xf32, #tpu.memory_space<vmem>>, vector<1x1x512xf32>
    %262 = vector.shape_cast %261 : vector<1x1x512xf32> to vector<1x512xf32>
    %263 = vector.broadcast %262 : vector<1x512xf32> to vector<8x512xf32>
    %264 = arith.addf %260, %263 : vector<8x512xf32>
    %cst_121 = arith.constant 0.000000e+00 : f32
    %265 = vector.broadcast %cst_121 : f32 to vector<8x512xf32>
    %266 = arith.maximumf %264, %265 : vector<8x512xf32>
    %267 = arith.truncf %266 : vector<8x512xf32> to vector<8x512xbf16>
    %c0_122 = arith.constant 0 : index
    %c1536_123 = arith.constant 1536 : index
    %c0_124 = arith.constant 0 : index
    %268 = vector.load %arg14[%c0_122, %c1536_123, %c0_124] : memref<1x2048x32xbf16, #tpu.memory_space<vmem>>, vector<1x512x32xbf16>
    %269 = vector.shape_cast %268 : vector<1x512x32xbf16> to vector<512x32xbf16>
    %cst_125 = arith.constant dense<0.000000e+00> : vector<8x32xf32>
    %270 = tpu.matmul %267, %269, %cst_125 {dimension_numbers = #tpu.dot_dimension_numbers<[1], [0], [0], [1], [0, 0, 1, 1], [], []>} : vector<8x512xbf16>, vector<512x32xbf16>, vector<8x32xf32> -> vector<8x32xf32>
    %271 = arith.addf %257, %270 : vector<8x32xf32>
    %272 = arith.addf %187, %271 : vector<8x32xf32>
    %c0_126 = arith.constant 0 : index
    %c0_127 = arith.constant 0 : index
    %c0_128 = arith.constant 0 : index
    %273 = vector.load %arg15[%c0_126, %c0_127, %c0_128] : memref<1x1x32xf32, #tpu.memory_space<vmem>>, vector<1x1x32xf32>
    %274 = vector.shape_cast %273 : vector<1x1x32xf32> to vector<1x32xf32>
    %275 = vector.broadcast %274 : vector<1x32xf32> to vector<8x32xf32>
    %276 = arith.addf %272, %275 : vector<8x32xf32>
    %c0_129 = arith.constant 0 : index
    %c0_130 = arith.constant 0 : index
    %c0_131 = arith.constant 0 : index
    %277 = vector.load %arg18[%c0_129, %c0_130, %c0_131] : memref<1x8x32xf32, #tpu.memory_space<vmem>>, vector<1x8x32xf32>
    %278 = vector.shape_cast %277 : vector<1x8x32xf32> to vector<8x32xf32>
    %279 = vector.shape_cast %276 : vector<8x32xf32> to vector<1x8x32xf32>
    tpu.vector_store %arg18[%c0_129, %c0_130, %c0_131], %279 {strides = array<i32>} : memref<1x8x32xf32, #tpu.memory_space<vmem>>, vector<1x8x32xf32>,
    %c1_i32 = arith.constant 1 : i32
    %280 = arith.cmpi eq, %arg1, %c1_i32 : i32
    %281 = arith.extui %280 : i1 to i32
    %c0_i32_132 = arith.constant 0 : i32
    %282 = arith.cmpi ne, %281, %c0_i32_132 : i32
    scf.if %282 {
      %c0_133 = arith.constant 0 : index
      %c0_134 = arith.constant 0 : index
      %283 = vector.load %arg16[%c0_133, %c0_134] : memref<1x32xf32, #tpu.memory_space<vmem>>, vector<1x32xf32>
      %c0_135 = arith.constant 0 : index
      %c0_136 = arith.constant 0 : index
      %284 = vector.load %arg17[%c0_135, %c0_136] : memref<1x32xf32, #tpu.memory_space<vmem>>, vector<1x32xf32>
      %cst_137 = arith.constant dense<0.000000e+00> : vector<8xf32>
      %285 = vector.multi_reduction <add>, %276, %cst_137 [1] : vector<8x32xf32> to vector<8xf32>
      %286 = vector.shape_cast %285 : vector<8xf32> to vector<8x1xf32>
      %cst_138 = arith.constant 3.200000e+01 : f32
      %287 = vector.broadcast %cst_138 : f32 to vector<8x1xf32>
      %288 = arith.divf %286, %287 : vector<8x1xf32>
      %289 = vector.broadcast %288 : vector<8x1xf32> to vector<8x32xf32>
      %290 = arith.subf %276, %289 : vector<8x32xf32>
      %291 = arith.mulf %290, %290 : vector<8x32xf32>
      %cst_139 = arith.constant dense<0.000000e+00> : vector<8xf32>
      %292 = vector.multi_reduction <add>, %291, %cst_139 [1] : vector<8x32xf32> to vector<8xf32>
      %293 = vector.shape_cast %292 : vector<8xf32> to vector<8x1xf32>
      %cst_140 = arith.constant 0.0322580636 : f32
      %294 = vector.broadcast %cst_140 : f32 to vector<8x1xf32>
      %295 = arith.mulf %293, %294 : vector<8x1xf32>
      %296 = math.sqrt %295 : vector<8x1xf32>
      %cst_141 = arith.constant 9.99999997E-7 : f32
      %297 = vector.broadcast %cst_141 : f32 to vector<8x1xf32>
      %298 = arith.addf %296, %297 : vector<8x1xf32>
      %cst_142 = arith.constant 1.000000e+00 : f32
      %299 = vector.broadcast %cst_142 : f32 to vector<8x1xf32>
      %300 = arith.divf %299, %298 : vector<8x1xf32>
      %301 = vector.broadcast %300 : vector<8x1xf32> to vector<8x32xf32>
      %302 = arith.mulf %290, %301 : vector<8x32xf32>
      %303 = vector.broadcast %283 : vector<1x32xf32> to vector<8x32xf32>
      %304 = arith.mulf %303, %302 : vector<8x32xf32>
      %305 = vector.broadcast %284 : vector<1x32xf32> to vector<8x32xf32>
      %306 = arith.addf %304, %305 : vector<8x32xf32>
      %c0_143 = arith.constant 0 : index
      %c0_144 = arith.constant 0 : index
      %c0_145 = arith.constant 0 : index
      %307 = vector.load %arg18[%c0_143, %c0_144, %c0_145] : memref<1x8x32xf32, #tpu.memory_space<vmem>>, vector<1x8x32xf32>
      %308 = vector.shape_cast %307 : vector<1x8x32xf32> to vector<8x32xf32>
      %309 = vector.shape_cast %306 : vector<8x32xf32> to vector<1x8x32xf32>
      tpu.vector_store %arg18[%c0_143, %c0_144, %c0_145], %309 {strides = array<i32>} : memref<1x8x32xf32, #tpu.memory_space<vmem>>, vector<1x8x32xf32>,
    } else {
    }
    return
  }
  func.func @transform_0(%arg0: i32, %arg1: i32) -> (i32, i32, i32) {
    %c0_i32 = arith.constant 0 : i32
    %c0_i32_0 = arith.constant 0 : i32
    %c0_i32_1 = arith.constant 0 : i32
    return %arg0, %c0_i32, %c0_i32_0 : i32, i32, i32
  }
  func.func @transform_1(%arg0: i32, %arg1: i32) -> (i32, i32, i32) {
    %c0_i32 = arith.constant 0 : i32
    %c0_i32_0 = arith.constant 0 : i32
    %c0_i32_1 = arith.constant 0 : i32
    return %arg0, %c0_i32, %c0_i32_0 : i32, i32, i32
  }
  func.func @transform_2(%arg0: i32, %arg1: i32) -> (i32, i32, i32) {
    %c0_i32 = arith.constant 0 : i32
    %c0_i32_0 = arith.constant 0 : i32
    %c0_i32_1 = arith.constant 0 : i32
    return %arg1, %c0_i32, %c0_i32_0 : i32, i32, i32
  }
  func.func @transform_3(%arg0: i32, %arg1: i32) -> (i32, i32, i32) {
    %c0_i32 = arith.constant 0 : i32
    %c0_i32_0 = arith.constant 0 : i32
    %c0_i32_1 = arith.constant 0 : i32
    return %arg1, %c0_i32, %c0_i32_0 : i32, i32, i32
  }
  func.func @transform_4(%arg0: i32, %arg1: i32) -> (i32, i32, i32) {
    %c0_i32 = arith.constant 0 : i32
    %c0_i32_0 = arith.constant 0 : i32
    %c0_i32_1 = arith.constant 0 : i32
    return %arg1, %c0_i32, %c0_i32_0 : i32, i32, i32
  }
  func.func @transform_5(%arg0: i32, %arg1: i32) -> (i32, i32, i32) {
    %c0_i32 = arith.constant 0 : i32
    %c0_i32_0 = arith.constant 0 : i32
    %c0_i32_1 = arith.constant 0 : i32
    return %arg1, %c0_i32, %c0_i32_0 : i32, i32, i32
  }
  func.func @transform_6(%arg0: i32, %arg1: i32) -> (i32, i32, i32) {
    %c0_i32 = arith.constant 0 : i32
    %c0_i32_0 = arith.constant 0 : i32
    %c0_i32_1 = arith.constant 0 : i32
    return %arg1, %c0_i32, %c0_i32_0 : i32, i32, i32
  }
  func.func @transform_7(%arg0: i32, %arg1: i32) -> (i32, i32, i32) {
    %c0_i32 = arith.constant 0 : i32
    %c0_i32_0 = arith.constant 0 : i32
    %c0_i32_1 = arith.constant 0 : i32
    return %arg1, %c0_i32, %c0_i32_0 : i32, i32, i32
  }
  func.func @transform_8(%arg0: i32, %arg1: i32) -> (i32, i32, i32) {
    %c0_i32 = arith.constant 0 : i32
    %c0_i32_0 = arith.constant 0 : i32
    %c0_i32_1 = arith.constant 0 : i32
    return %arg1, %c0_i32, %c0_i32_0 : i32, i32, i32
  }
  func.func @transform_9(%arg0: i32, %arg1: i32) -> (i32, i32, i32) {
    %c0_i32 = arith.constant 0 : i32
    %c0_i32_0 = arith.constant 0 : i32
    %c0_i32_1 = arith.constant 0 : i32
    return %arg1, %c0_i32, %c0_i32_0 : i32, i32, i32
  }
  func.func @transform_10(%arg0: i32, %arg1: i32) -> (i32, i32, i32) {
    %c0_i32 = arith.constant 0 : i32
    %c0_i32_0 = arith.constant 0 : i32
    %c0_i32_1 = arith.constant 0 : i32
    return %arg1, %c0_i32, %c0_i32_0 : i32, i32, i32
  }
  func.func @transform_11(%arg0: i32, %arg1: i32) -> (i32, i32, i32) {
    %c0_i32 = arith.constant 0 : i32
    %c0_i32_0 = arith.constant 0 : i32
    %c0_i32_1 = arith.constant 0 : i32
    return %arg1, %c0_i32, %c0_i32_0 : i32, i32, i32
  }
  func.func @transform_12(%arg0: i32, %arg1: i32) -> (i32, i32, i32) {
    %c0_i32 = arith.constant 0 : i32
    %c0_i32_0 = arith.constant 0 : i32
    %c0_i32_1 = arith.constant 0 : i32
    return %arg1, %c0_i32, %c0_i32_0 : i32, i32, i32
  }
  func.func @transform_13(%arg0: i32, %arg1: i32) -> (i32, i32, i32) {
    %c0_i32 = arith.constant 0 : i32
    %c0_i32_0 = arith.constant 0 : i32
    %c0_i32_1 = arith.constant 0 : i32
    return %arg1, %c0_i32, %c0_i32_0 : i32, i32, i32
  }
  func.func @transform_14(%arg0: i32, %arg1: i32) -> (i32, i32) {
    %c0_i32 = arith.constant 0 : i32
    %c0_i32_0 = arith.constant 0 : i32
    %c0_i32_1 = arith.constant 0 : i32
    return %c0_i32, %c0_i32_0 : i32, i32
  }
  func.func @transform_15(%arg0: i32, %arg1: i32) -> (i32, i32) {
    %c0_i32 = arith.constant 0 : i32
    %c0_i32_0 = arith.constant 0 : i32
    %c0_i32_1 = arith.constant 0 : i32
    return %c0_i32, %c0_i32_0 : i32, i32
  }
  func.func @transform_16(%arg0: i32, %arg1: i32) -> (i32, i32, i32) {
    %c0_i32 = arith.constant 0 : i32
    %c0_i32_0 = arith.constant 0 : i32
    %c0_i32_1 = arith.constant 0 : i32
    return %arg0, %c0_i32, %c0_i32_0 : i32, i32, i32
  }
}

</mosaic_0001>

<llo_original>
// kernel: tpu_custom_call.1
$region0: #{tpu_custom_call.1}
  #allocation0 [shape = 'u32[]', space=smem, size = 0x4, offset = 0x4, fixed_abs, tag = 'smem constant byte address 0x4 - core index']
  #allocation1 [shape = 'u32[144,128]{1,0:T(1,128)}', space=vmem, size = 0x12000, scoped, tag = 'internal scratch']
  #allocation2 [shape = 'f32[8,32]{1,0:T(8,128)}', space=vmem, size = 0x1000, scoped, tag = 'scratch operand']
  %s0 = inlined_call_operand.vmem [shape: f32[2,8,32], index: 0, kind: input, shape index: {}]
  %s1 = inlined_call_operand.vmem [shape: f32[2,1,8], index: 1, kind: input, shape index: {}]
  %s2 = inlined_call_operand.vmem [shape: f32[2,1,32], index: 2, kind: input, shape index: {}]
  %s3 = inlined_call_operand.vmem [shape: f32[2,1,32], index: 3, kind: input, shape index: {}]
  %s4 = inlined_call_operand.vmem [shape: bf16[2,32,96], index: 4, kind: input, shape index: {}]
  %s5 = inlined_call_operand.vmem [shape: f32[2,1,96], index: 5, kind: input, shape index: {}]
  %s6 = inlined_call_operand.vmem [shape: bf16[2,32,32], index: 6, kind: input, shape index: {}]
  %s7 = inlined_call_operand.vmem [shape: f32[2,1,32], index: 7, kind: input, shape index: {}]
  %s8 = inlined_call_operand.vmem [shape: f32[2,1,32], index: 8, kind: input, shape index: {}]
  %s9 = inlined_call_operand.vmem [shape: f32[2,1,32], index: 9, kind: input, shape index: {}]
  %s10 = inlined_call_operand.vmem [shape: bf16[2,32,2048], index: 10, kind: input, shape index: {}]
  %s11 = inlined_call_operand.vmem [shape: f32[2,1,2048], index: 11, kind: input, shape index: {}]
  %s12 = inlined_call_operand.vmem [shape: bf16[2,2048,32], index: 12, kind: input, shape index: {}]
  %s13 = inlined_call_operand.vmem [shape: f32[2,1,32], index: 13, kind: input, shape index: {}]
  %s14 = inlined_call_operand.vmem [shape: f32[1,32], index: 14, kind: input, shape index: {}]
  %s15 = inlined_call_operand.vmem [shape: f32[1,32], index: 15, kind: input, shape index: {}]
  %s16 = inlined_call_operand.hbm [shape: f32[2,8,32], index: 16, kind: output, shape index: {}]
  %s17 = sld [smem:[#allocation0]]
  $region105: #{tpu_custom_call.1} parent=0
    _
  %s19 = ssub.s32 1, %s17
  %s20 = scalar_select 0, %s19, %s17
  $region1: #{tpu_custom_call.1} parent=0
    #allocation3 [shape = 'u8[8192]{0}', space=vmem, size = 0x2000, scoped, tag = 'output window, operand 0']
    #allocation4 [shape = 's32[2]{0}', space=sflag, size = 0x8, scoped, tag = 'scoped memory for tpu_custom_call.1']
    %21 = vsyncpa [#allocation4], 0
    %s22 = scalar_lea.sflag [#allocation4], 1
    %23 = vsyncpa %s22, 0
    loop: start=0, step=1, limit=6
    $region2: #{tpu_custom_call.1} parent=1 // loop_pre_header
      _
    $region3: #{tpu_custom_call.1} parent=1 // loop_header
      %s25 = sphi 0, %s29
      %p26 = scmp.ge.s32.totalorder %s25, 6
      %s32 = sphi 0, %s44
      %s33 = sphi 0, %s40
      %s34 = sphi 0, %s32
      %s35 = sphi 0, %s33
      %s36 = sphi 0, %s34
      %s37 = sphi 0, %s35
      %s47 = sphi 0, %s49
      %s50 = sphi 0, %s47
      %s51 = sphi 0, %s50
      %s67 = sphi 0, %s51
      %s73 = sphi 0, %s75
      %s76 = sphi 0, %s73
      %s77 = sphi 0, %s76
      %s93 = sphi 0, %s77
      %s99 = sphi 0, %s101
      %s102 = sphi 0, %s99
      %s103 = sphi 0, %s102
      %s119 = sphi 0, %s103
      %s125 = sphi 0, %s127
      %s128 = sphi 0, %s125
      %s129 = sphi 0, %s128
      %s145 = sphi 0, %s129
      %s151 = sphi 0, %s153
      %s154 = sphi 0, %s151
      %s155 = sphi 0, %s154
      %s171 = sphi 0, %s155
      %s177 = sphi 0, %s179
      %s180 = sphi 0, %s177
      %s181 = sphi 0, %s180
      %s197 = sphi 0, %s181
      %s203 = sphi 0, %s205
      %s206 = sphi 0, %s203
      %s207 = sphi 0, %s206
      %s223 = sphi 0, %s207
      %s229 = sphi 0, %s231
      %s232 = sphi 0, %s229
      %s233 = sphi 0, %s232
      %s249 = sphi 0, %s233
      %s255 = sphi 0, %s257
      %s258 = sphi 0, %s255
      %s259 = sphi 0, %s258
      %s275 = sphi 0, %s259
      %s281 = sphi 0, %s283
      %s284 = sphi 0, %s281
      %s285 = sphi 0, %s284
      %s301 = sphi 0, %s285
      %s307 = sphi 0, %s309
      %s310 = sphi 0, %s307
      %s311 = sphi 0, %s310
      %s327 = sphi 0, %s311
      %s333 = sphi 0, %s335
      %s336 = sphi 0, %s333
      %s337 = sphi 0, %s336
      %s353 = sphi 0, %s337
      %s359 = sphi 0, %s361
      %s362 = sphi 0, %s359
      %s363 = sphi 0, %s362
      %s379 = sphi 0, %s363
      %s385 = sphi 0, %s387
      %s388 = sphi 0, %s385
      %s389 = sphi 0, %s388
      %s405 = sphi 0, %s389
      %s409 = sphi 0, %s409
      %s411 = sphi 0, %s409
      %s412 = sphi 0, %s411
      %s426 = sphi 0, %s412
      %s430 = sphi 0, %s430
      %s432 = sphi 0, %s430
      %s433 = sphi 0, %s432
      %s447 = sphi 0, %s433
      %s453 = sphi 0, %s455
      %s456 = sphi 0, %s453
      %s457 = sphi 0, %s456
      %s473 = sphi 0, %s457
    $region4: #{tpu_custom_call.1} parent=1 // loop_header_branch
      %28 = sbr.rel (%p26) target = $region8
    $region5: #{tpu_custom_call.1} parent=1 // loop_body
      %s30 = ssub.s32 %s25, 1
      %s31 = ssub.s32 %s25, 2
      %s38 = sadd.s32 1, %s33
      %p39 = scmp.ge.s32.totalorder %s38, 2
      %s40 = scalar_select %p39, 0, %s38
      %s41 = sadd.s32 1, %s32
      %s42 = scalar_select %p39, %s41, %s32
      %p43 = scmp.ge.s32.totalorder %s42, 2
      %s44 = scalar_select %p43, 0, %s42
      %s45 = ssub.s32 %s32, %s44
      %p46 = scmp.eq.s32.totalorder %s45, 0
      %s48 = sadd.s32 %s47, 1
      %s49 = scalar_select %p46, %s47, %s48
      %p52 = pneg %p46
      %p53 = scmp.eq.s32.totalorder %s25, 3
      %p54 = por %p52, %p53
      %p55 = scmp.ne.s32.totalorder %s47, %s50
      %p56 = scmp.eq.s32.totalorder %s25, 0
      %p57 = por %p55, %p56
      %p58 = scmp.ne.s32.totalorder %s47, %s50
      %p59 = scmp.eq.s32.totalorder %s30, 3
      %p60 = por %p58, %p59
      %p61 = scmp.ne.s32.totalorder %s50, %s51
      %p62 = scmp.eq.s32.totalorder %s30, 0
      %p63 = por %p61, %p62
      %p64 = scmp.ne.s32.totalorder %s50, %s51
      %p65 = scmp.eq.s32.totalorder %s31, 3
      %p66 = por %p64, %p65
      %p68 = scmp.ne.s32.totalorder %s51, %s67
      %p69 = scmp.eq.s32.totalorder %s31, 0
      %p70 = por %p68, %p69
      %s71 = ssub.s32 %s32, %s44
      %p72 = scmp.eq.s32.totalorder %s71, 0
      %s74 = sadd.s32 %s73, 1
      %s75 = scalar_select %p72, %s73, %s74
      %p78 = pneg %p72
      %p79 = scmp.eq.s32.totalorder %s25, 3
      %p80 = por %p78, %p79
      %p81 = scmp.ne.s32.totalorder %s73, %s76
      %p82 = scmp.eq.s32.totalorder %s25, 0
      %p83 = por %p81, %p82
      %p84 = scmp.ne.s32.totalorder %s73, %s76
      %p85 = scmp.eq.s32.totalorder %s30, 3
      %p86 = por %p84, %p85
      %p87 = scmp.ne.s32.totalorder %s76, %s77
      %p88 = scmp.eq.s32.totalorder %s30, 0
      %p89 = por %p87, %p88
      %p90 = scmp.ne.s32.totalorder %s76, %s77
      %p91 = scmp.eq.s32.totalorder %s31, 3
      %p92 = por %p90, %p91
      %p94 = scmp.ne.s32.totalorder %s77, %s93
      %p95 = scmp.eq.s32.totalorder %s31, 0
      %p96 = por %p94, %p95
      %s97 = ssub.s32 %s33, %s40
      %p98 = scmp.eq.s32.totalorder %s97, 0
      %s100 = sadd.s32 %s99, 1
      %s101 = scalar_select %p98, %s99, %s100
      %p104 = pneg %p98
      %p105 = scmp.eq.s32.totalorder %s25, 3
      %p106 = por %p104, %p105
      %p107 = scmp.ne.s32.totalorder %s99, %s102
      %p108 = scmp.eq.s32.totalorder %s25, 0
      %p109 = por %p107, %p108
      %p110 = scmp.ne.s32.totalorder %s99, %s102
      %p111 = scmp.eq.s32.totalorder %s30, 3
      %p112 = por %p110, %p111
      %p113 = scmp.ne.s32.totalorder %s102, %s103
      %p114 = scmp.eq.s32.totalorder %s30, 0
      %p115 = por %p113, %p114
      %p116 = scmp.ne.s32.totalorder %s102, %s103
      %p117 = scmp.eq.s32.totalorder %s31, 3
      %p118 = por %p116, %p117
      %p120 = scmp.ne.s32.totalorder %s103, %s119
      %p121 = scmp.eq.s32.totalorder %s31, 0
      %p122 = por %p120, %p121
      %s123 = ssub.s32 %s33, %s40
      %p124 = scmp.eq.s32.totalorder %s123, 0
      %s126 = sadd.s32 %s125, 1
      %s127 = scalar_select %p124, %s125, %s126
      %p130 = pneg %p124
      %p131 = scmp.eq.s32.totalorder %s25, 3
      %p132 = por %p130, %p131
      %p133 = scmp.ne.s32.totalorder %s125, %s128
      %p134 = scmp.eq.s32.totalorder %s25, 0
      %p135 = por %p133, %p134
      %p136 = scmp.ne.s32.totalorder %s125, %s128
      %p137 = scmp.eq.s32.totalorder %s30, 3
      %p138 = por %p136, %p137
      %p139 = scmp.ne.s32.totalorder %s128, %s129
      %p140 = scmp.eq.s32.totalorder %s30, 0
      %p141 = por %p139, %p140
      %p142 = scmp.ne.s32.totalorder %s128, %s129
      %p143 = scmp.eq.s32.totalorder %s31, 3
      %p144 = por %p142, %p143
      %p146 = scmp.ne.s32.totalorder %s129, %s145
      %p147 = scmp.eq.s32.totalorder %s31, 0
      %p148 = por %p146, %p147
      %s149 = ssub.s32 %s33, %s40
      %p150 = scmp.eq.s32.totalorder %s149, 0
      %s152 = sadd.s32 %s151, 1
      %s153 = scalar_select %p150, %s151, %s152
      %p156 = pneg %p150
      %p157 = scmp.eq.s32.totalorder %s25, 3
      %p158 = por %p156, %p157
      %p159 = scmp.ne.s32.totalorder %s151, %s154
      %p160 = scmp.eq.s32.totalorder %s25, 0
      %p161 = por %p159, %p160
      %p162 = scmp.ne.s32.totalorder %s151, %s154
      %p163 = scmp.eq.s32.totalorder %s30, 3
      %p164 = por %p162, %p163
      %p165 = scmp.ne.s32.totalorder %s154, %s155
      %p166 = scmp.eq.s32.totalorder %s30, 0
      %p167 = por %p165, %p166
      %p168 = scmp.ne.s32.totalorder %s154, %s155
      %p169 = scmp.eq.s32.totalorder %s31, 3
      %p170 = por %p168, %p169
      %p172 = scmp.ne.s32.totalorder %s155, %s171
      %p173 = scmp.eq.s32.totalorder %s31, 0
      %p174 = por %p172, %p173
      %s175 = ssub.s32 %s33, %s40
      %p176 = scmp.eq.s32.totalorder %s175, 0
      %s178 = sadd.s32 %s177, 1
      %s179 = scalar_select %p176, %s177, %s178
      %p182 = pneg %p176
      %p183 = scmp.eq.s32.totalorder %s25, 3
      %p184 = por %p182, %p183
      %p185 = scmp.ne.s32.totalorder %s177, %s180
      %p186 = scmp.eq.s32.totalorder %s25, 0
      %p187 = por %p185, %p186
      %p188 = scmp.ne.s32.totalorder %s177, %s180
      %p189 = scmp.eq.s32.totalorder %s30, 3
      %p190 = por %p188, %p189
      %p191 = scmp.ne.s32.totalorder %s180, %s181
      %p192 = scmp.eq.s32.totalorder %s30, 0
      %p193 = por %p191, %p192
      %p194 = scmp.ne.s32.totalorder %s180, %s181
      %p195 = scmp.eq.s32.totalorder %s31, 3
      %p196 = por %p194, %p195
      %p198 = scmp.ne.s32.totalorder %s181, %s197
      %p199 = scmp.eq.s32.totalorder %s31, 0
      %p200 = por %p198, %p199
      %s201 = ssub.s32 %s33, %s40
      %p202 = scmp.eq.s32.totalorder %s201, 0
      %s204 = sadd.s32 %s203, 1
      %s205 = scalar_select %p202, %s203, %s204
      %p208 = pneg %p202
      %p209 = scmp.eq.s32.totalorder %s25, 3
      %p210 = por %p208, %p209
      %p211 = scmp.ne.s32.totalorder %s203, %s206
      %p212 = scmp.eq.s32.totalorder %s25, 0
      %p213 = por %p211, %p212
      %p214 = scmp.ne.s32.totalorder %s203, %s206
      %p215 = scmp.eq.s32.totalorder %s30, 3
      %p216 = por %p214, %p215
      %p217 = scmp.ne.s32.totalorder %s206, %s207
      %p218 = scmp.eq.s32.totalorder %s30, 0
      %p219 = por %p217, %p218
      %p220 = scmp.ne.s32.totalorder %s206, %s207
      %p221 = scmp.eq.s32.totalorder %s31, 3
      %p222 = por %p220, %p221
      %p224 = scmp.ne.s32.totalorder %s207, %s223
      %p225 = scmp.eq.s32.totalorder %s31, 0
      %p226 = por %p224, %p225
      %s227 = ssub.s32 %s33, %s40
      %p228 = scmp.eq.s32.totalorder %s227, 0
      %s230 = sadd.s32 %s229, 1
      %s231 = scalar_select %p228, %s229, %s230
      %p234 = pneg %p228
      %p235 = scmp.eq.s32.totalorder %s25, 3
      %p236 = por %p234, %p235
      %p237 = scmp.ne.s32.totalorder %s229, %s232
      %p238 = scmp.eq.s32.totalorder %s25, 0
      %p239 = por %p237, %p238
      %p240 = scmp.ne.s32.totalorder %s229, %s232
      %p241 = scmp.eq.s32.totalorder %s30, 3
      %p242 = por %p240, %p241
      %p243 = scmp.ne.s32.totalorder %s232, %s233
      %p244 = scmp.eq.s32.totalorder %s30, 0
      %p245 = por %p243, %p244
      %p246 = scmp.ne.s32.totalorder %s232, %s233
      %p247 = scmp.eq.s32.totalorder %s31, 3
      %p248 = por %p246, %p247
      %p250 = scmp.ne.s32.totalorder %s233, %s249
      %p251 = scmp.eq.s32.totalorder %s31, 0
      %p252 = por %p250, %p251
      %s253 = ssub.s32 %s33, %s40
      %p254 = scmp.eq.s32.totalorder %s253, 0
      %s256 = sadd.s32 %s255, 1
      %s257 = scalar_select %p254, %s255, %s256
      %p260 = pneg %p254
      %p261 = scmp.eq.s32.totalorder %s25, 3
      %p262 = por %p260, %p261
      %p263 = scmp.ne.s32.totalorder %s255, %s258
      %p264 = scmp.eq.s32.totalorder %s25, 0
      %p265 = por %p263, %p264
      %p266 = scmp.ne.s32.totalorder %s255, %s258
      %p267 = scmp.eq.s32.totalorder %s30, 3
      %p268 = por %p266, %p267
      %p269 = scmp.ne.s32.totalorder %s258, %s259
      %p270 = scmp.eq.s32.totalorder %s30, 0
      %p271 = por %p269, %p270
      %p272 = scmp.ne.s32.totalorder %s258, %s259
      %p273 = scmp.eq.s32.totalorder %s31, 3
      %p274 = por %p272, %p273
      %p276 = scmp.ne.s32.totalorder %s259, %s275
      %p277 = scmp.eq.s32.totalorder %s31, 0
      %p278 = por %p276, %p277
      %s279 = ssub.s32 %s33, %s40
      %p280 = scmp.eq.s32.totalorder %s279, 0
      %s282 = sadd.s32 %s281, 1
      %s283 = scalar_select %p280, %s281, %s282
      %p286 = pneg %p280
      %p287 = scmp.eq.s32.totalorder %s25, 3
      %p288 = por %p286, %p287
      %p289 = scmp.ne.s32.totalorder %s281, %s284
      %p290 = scmp.eq.s32.totalorder %s25, 0
      %p291 = por %p289, %p290
      %p292 = scmp.ne.s32.totalorder %s281, %s284
      %p293 = scmp.eq.s32.totalorder %s30, 3
      %p294 = por %p292, %p293
      %p295 = scmp.ne.s32.totalorder %s284, %s285
      %p296 = scmp.eq.s32.totalorder %s30, 0
      %p297 = por %p295, %p296
      %p298 = scmp.ne.s32.totalorder %s284, %s285
      %p299 = scmp.eq.s32.totalorder %s31, 3
      %p300 = por %p298, %p299
      %p302 = scmp.ne.s32.totalorder %s285, %s301
      %p303 = scmp.eq.s32.totalorder %s31, 0
      %p304 = por %p302, %p303
      %s305 = ssub.s32 %s33, %s40
      %p306 = scmp.eq.s32.totalorder %s305, 0
      %s308 = sadd.s32 %s307, 1
      %s309 = scalar_select %p306, %s307, %s308
      %p312 = pneg %p306
      %p313 = scmp.eq.s32.totalorder %s25, 3
      %p314 = por %p312, %p313
      %p315 = scmp.ne.s32.totalorder %s307, %s310
      %p316 = scmp.eq.s32.totalorder %s25, 0
      %p317 = por %p315, %p316
      %p318 = scmp.ne.s32.totalorder %s307, %s310
      %p319 = scmp.eq.s32.totalorder %s30, 3
      %p320 = por %p318, %p319
      %p321 = scmp.ne.s32.totalorder %s310, %s311
      %p322 = scmp.eq.s32.totalorder %s30, 0
      %p323 = por %p321, %p322
      %p324 = scmp.ne.s32.totalorder %s310, %s311
      %p325 = scmp.eq.s32.totalorder %s31, 3
      %p326 = por %p324, %p325
      %p328 = scmp.ne.s32.totalorder %s311, %s327
      %p329 = scmp.eq.s32.totalorder %s31, 0
      %p330 = por %p328, %p329
      %s331 = ssub.s32 %s33, %s40
      %p332 = scmp.eq.s32.totalorder %s331, 0
      %s334 = sadd.s32 %s333, 1
      %s335 = scalar_select %p332, %s333, %s334
      %p338 = pneg %p332
      %p339 = scmp.eq.s32.totalorder %s25, 3
      %p340 = por %p338, %p339
      %p341 = scmp.ne.s32.totalorder %s333, %s336
      %p342 = scmp.eq.s32.totalorder %s25, 0
      %p343 = por %p341, %p342
      %p344 = scmp.ne.s32.totalorder %s333, %s336
      %p345 = scmp.eq.s32.totalorder %s30, 3
      %p346 = por %p344, %p345
      %p347 = scmp.ne.s32.totalorder %s336, %s337
      %p348 = scmp.eq.s32.totalorder %s30, 0
      %p349 = por %p347, %p348
      %p350 = scmp.ne.s32.totalorder %s336, %s337
      %p351 = scmp.eq.s32.totalorder %s31, 3
      %p352 = por %p350, %p351
      %p354 = scmp.ne.s32.totalorder %s337, %s353
      %p355 = scmp.eq.s32.totalorder %s31, 0
      %p356 = por %p354, %p355
      %s357 = ssub.s32 %s33, %s40
      %p358 = scmp.eq.s32.totalorder %s357, 0
      %s360 = sadd.s32 %s359, 1
      %s361 = scalar_select %p358, %s359, %s360
      %p364 = pneg %p358
      %p365 = scmp.eq.s32.totalorder %s25, 3
      %p366 = por %p364, %p365
      %p367 = scmp.ne.s32.totalorder %s359, %s362
      %p368 = scmp.eq.s32.totalorder %s25, 0
      %p369 = por %p367, %p368
      %p370 = scmp.ne.s32.totalorder %s359, %s362
      %p371 = scmp.eq.s32.totalorder %s30, 3
      %p372 = por %p370, %p371
      %p373 = scmp.ne.s32.totalorder %s362, %s363
      %p374 = scmp.eq.s32.totalorder %s30, 0
      %p375 = por %p373, %p374
      %p376 = scmp.ne.s32.totalorder %s362, %s363
      %p377 = scmp.eq.s32.totalorder %s31, 3
      %p378 = por %p376, %p377
      %p380 = scmp.ne.s32.totalorder %s363, %s379
      %p381 = scmp.eq.s32.totalorder %s31, 0
      %p382 = por %p380, %p381
      %s383 = ssub.s32 %s33, %s40
      %p384 = scmp.eq.s32.totalorder %s383, 0
      %s386 = sadd.s32 %s385, 1
      %s387 = scalar_select %p384, %s385, %s386
      %p390 = pneg %p384
      %p391 = scmp.eq.s32.totalorder %s25, 3
      %p392 = por %p390, %p391
      %p393 = scmp.ne.s32.totalorder %s385, %s388
      %p394 = scmp.eq.s32.totalorder %s25, 0
      %p395 = por %p393, %p394
      %p396 = scmp.ne.s32.totalorder %s385, %s388
      %p397 = scmp.eq.s32.totalorder %s30, 3
      %p398 = por %p396, %p397
      %p399 = scmp.ne.s32.totalorder %s388, %s389
      %p400 = scmp.eq.s32.totalorder %s30, 0
      %p401 = por %p399, %p400
      %p402 = scmp.ne.s32.totalorder %s388, %s389
      %p403 = scmp.eq.s32.totalorder %s31, 3
      %p404 = por %p402, %p403
      %p406 = scmp.ne.s32.totalorder %s389, %s405
      %p407 = scmp.eq.s32.totalorder %s31, 0
      %p408 = por %p406, %p407
      %s410 = sadd.s32 %s409, 1
      %p413 = scmp.eq.s32.totalorder %s25, 3
      %p414 = scmp.ne.s32.totalorder %s409, %s411
      %p415 = scmp.eq.s32.totalorder %s25, 0
      %p416 = por %p414, %p415
      %p417 = scmp.ne.s32.totalorder %s409, %s411
      %p418 = scmp.eq.s32.totalorder %s30, 3
      %p419 = por %p417, %p418
      %p420 = scmp.ne.s32.totalorder %s411, %s412
      %p421 = scmp.eq.s32.totalorder %s30, 0
      %p422 = por %p420, %p421
      %p423 = scmp.ne.s32.totalorder %s411, %s412
      %p424 = scmp.eq.s32.totalorder %s31, 3
      %p425 = por %p423, %p424
      %p427 = scmp.ne.s32.totalorder %s412, %s426
      %p428 = scmp.eq.s32.totalorder %s31, 0
      %p429 = por %p427, %p428
      %s431 = sadd.s32 %s430, 1
      %p434 = scmp.eq.s32.totalorder %s25, 3
      %p435 = scmp.ne.s32.totalorder %s430, %s432
      %p436 = scmp.eq.s32.totalorder %s25, 0
      %p437 = por %p435, %p436
      %p438 = scmp.ne.s32.totalorder %s430, %s432
      %p439 = scmp.eq.s32.totalorder %s30, 3
      %p440 = por %p438, %p439
      %p441 = scmp.ne.s32.totalorder %s432, %s433
      %p442 = scmp.eq.s32.totalorder %s30, 0
      %p443 = por %p441, %p442
      %p444 = scmp.ne.s32.totalorder %s432, %s433
      %p445 = scmp.eq.s32.totalorder %s31, 3
      %p446 = por %p444, %p445
      %p448 = scmp.ne.s32.totalorder %s433, %s447
      %p449 = scmp.eq.s32.totalorder %s31, 0
      %p450 = por %p448, %p449
      %s451 = ssub.s32 %s32, %s44
      %p452 = scmp.eq.s32.totalorder %s451, 0
      %s454 = sadd.s32 %s453, 1
      %s455 = scalar_select %p452, %s453, %s454
      %p458 = pneg %p452
      %p459 = scmp.eq.s32.totalorder %s25, 3
      %p460 = por %p458, %p459
      %p461 = scmp.ne.s32.totalorder %s453, %s456
      %p462 = scmp.eq.s32.totalorder %s25, 0
      %p463 = por %p461, %p462
      %p464 = scmp.ne.s32.totalorder %s453, %s456
      %p465 = scmp.eq.s32.totalorder %s30, 3
      %p466 = por %p464, %p465
      %p467 = scmp.ne.s32.totalorder %s456, %s457
      %p468 = scmp.eq.s32.totalorder %s30, 0
      %p469 = por %p467, %p468
      %p470 = scmp.ne.s32.totalorder %s456, %s457
      %p471 = scmp.eq.s32.totalorder %s31, 3
      %p472 = por %p470, %p471
      %p474 = scmp.ne.s32.totalorder %s457, %s473
      %p475 = scmp.eq.s32.totalorder %s31, 0
      %p476 = por %p474, %p475
      %p477 = scmp.le.s32.totalorder 1, %s25
      %p478 = scmp.lt.s32.totalorder %s25, 5
      %p479 = pnand %p477, %p478
      %p480 = pneg %p479
      // Predicated region
      $region9: #{tpu_custom_call.1} parent=5 // pred_check
        _
      $region10: #{tpu_custom_call.1} parent=5 // pred_check_branch
        %482 = sbr.rel (%p479) target = $region12
      $region11: #{tpu_custom_call.1} parent=5 // pred_region
        %s483 = ssub.s32 %s25, 1
        // Predicated region
        $region13: #{tpu_custom_call.1} parent=11 // pred_check
          %p484 = pneg %p422
        $region14: #{tpu_custom_call.1} parent=11 // pred_check_branch
          %486 = sbr.rel (%p484) target = $region16
        $region15: #{tpu_custom_call.1} parent=11 // pred_region
          _
        $region16: #{tpu_custom_call.1} parent=11 // pred_fallthru
          _
        // Predicated region
        $region17: #{tpu_custom_call.1} parent=11 // pred_check
          %p487 = pneg %p443
        $region18: #{tpu_custom_call.1} parent=11 // pred_check_branch
          %489 = sbr.rel (%p487) target = $region20
        $region19: #{tpu_custom_call.1} parent=11 // pred_region
          _
        $region20: #{tpu_custom_call.1} parent=11 // pred_fallthru
          _
      $region12: #{tpu_custom_call.1} parent=5 // pred_fallthru
        _
      %p490 = scmp.lt.s32.totalorder %s25, 4
      // Predicated region
      $region21: #{tpu_custom_call.1} parent=5 // pred_check
        %p491 = pneg %p490
      $region22: #{tpu_custom_call.1} parent=5 // pred_check_branch
        %493 = sbr.rel (%p491) target = $region24
      $region23: #{tpu_custom_call.1} parent=5 // pred_region
        // Predicated region
        $region25: #{tpu_custom_call.1} parent=23 // pred_check
          %p494 = pneg %p57
        $region26: #{tpu_custom_call.1} parent=23 // pred_check_branch
          %496 = sbr.rel (%p494) target = $region28
        $region27: #{tpu_custom_call.1} parent=23 // pred_region
          %p497 = scmp.lt.s32.totalorder %s32, 1
          %s498 = scalar_select %p497, %s32, 1
          %s499 = smul.addr %s498, 8
          %s500 = scalar_lea.vmem %s0, %s499
        $region28: #{tpu_custom_call.1} parent=23 // pred_fallthru
          _
        // Predicated region
        $region29: #{tpu_custom_call.1} parent=23 // pred_check
          %p501 = pneg %p83
        $region30: #{tpu_custom_call.1} parent=23 // pred_check_branch
          %503 = sbr.rel (%p501) target = $region32
        $region31: #{tpu_custom_call.1} parent=23 // pred_region
          %p504 = scmp.lt.s32.totalorder %s32, 1
          %s505 = scalar_select %p504, %s32, 1
          %s506 = scalar_lea.vmem %s1, %s505
        $region32: #{tpu_custom_call.1} parent=23 // pred_fallthru
          _
        // Predicated region
        $region33: #{tpu_custom_call.1} parent=23 // pred_check
          %p507 = pneg %p109
        $region34: #{tpu_custom_call.1} parent=23 // pred_check_branch
          %509 = sbr.rel (%p507) target = $region36
        $region35: #{tpu_custom_call.1} parent=23 // pred_region
          %p510 = scmp.lt.s32.totalorder %s33, 1
          %s511 = scalar_select %p510, %s33, 1
          %s512 = scalar_lea.vmem %s2, %s511
        $region36: #{tpu_custom_call.1} parent=23 // pred_fallthru
          _
        // Predicated region
        $region37: #{tpu_custom_call.1} parent=23 // pred_check
          %p513 = pneg %p135
        $region38: #{tpu_custom_call.1} parent=23 // pred_check_branch
          %515 = sbr.rel (%p513) target = $region40
        $region39: #{tpu_custom_call.1} parent=23 // pred_region
          %p516 = scmp.lt.s32.totalorder %s33, 1
          %s517 = scalar_select %p516, %s33, 1
          %s518 = scalar_lea.vmem %s3, %s517
        $region40: #{tpu_custom_call.1} parent=23 // pred_fallthru
          _
        // Predicated region
        $region41: #{tpu_custom_call.1} parent=23 // pred_check
          %p519 = pneg %p161
        $region42: #{tpu_custom_call.1} parent=23 // pred_check_branch
          %521 = sbr.rel (%p519) target = $region44
        $region43: #{tpu_custom_call.1} parent=23 // pred_region
          %p522 = scmp.lt.s32.totalorder %s33, 1
          %s523 = scalar_select %p522, %s33, 1
          %s524 = smul.addr %s523, 4
          %s525 = smul.addr %s524, 4
          %s526 = scalar_lea.vmem %s4, %s525
        $region44: #{tpu_custom_call.1} parent=23 // pred_fallthru
          _
        // Predicated region
        $region45: #{tpu_custom_call.1} parent=23 // pred_check
          %p527 = pneg %p187
        $region46: #{tpu_custom_call.1} parent=23 // pred_check_branch
          %529 = sbr.rel (%p527) target = $region48
        $region47: #{tpu_custom_call.1} parent=23 // pred_region
          %p530 = scmp.lt.s32.totalorder %s33, 1
          %s531 = scalar_select %p530, %s33, 1
          %s532 = scalar_lea.vmem %s5, %s531
        $region48: #{tpu_custom_call.1} parent=23 // pred_fallthru
          _
        // Predicated region
        $region49: #{tpu_custom_call.1} parent=23 // pred_check
          %p533 = pneg %p213
        $region50: #{tpu_custom_call.1} parent=23 // pred_check_branch
          %535 = sbr.rel (%p533) target = $region52
        $region51: #{tpu_custom_call.1} parent=23 // pred_region
          %p536 = scmp.lt.s32.totalorder %s33, 1
          %s537 = scalar_select %p536, %s33, 1
          %s538 = smul.addr %s537, 4
          %s539 = smul.addr %s538, 4
          %s540 = scalar_lea.vmem %s6, %s539
        $region52: #{tpu_custom_call.1} parent=23 // pred_fallthru
          _
        // Predicated region
        $region53: #{tpu_custom_call.1} parent=23 // pred_check
          %p541 = pneg %p239
        $region54: #{tpu_custom_call.1} parent=23 // pred_check_branch
          %543 = sbr.rel (%p541) target = $region56
        $region55: #{tpu_custom_call.1} parent=23 // pred_region
          %p544 = scmp.lt.s32.totalorder %s33, 1
          %s545 = scalar_select %p544, %s33, 1
          %s546 = scalar_lea.vmem %s7, %s545
        $region56: #{tpu_custom_call.1} parent=23 // pred_fallthru
          _
        // Predicated region
        $region57: #{tpu_custom_call.1} parent=23 // pred_check
          %p547 = pneg %p265
        $region58: #{tpu_custom_call.1} parent=23 // pred_check_branch
          %549 = sbr.rel (%p547) target = $region60
        $region59: #{tpu_custom_call.1} parent=23 // pred_region
          %p550 = scmp.lt.s32.totalorder %s33, 1
          %s551 = scalar_select %p550, %s33, 1
          %s552 = scalar_lea.vmem %s8, %s551
        $region60: #{tpu_custom_call.1} parent=23 // pred_fallthru
          _
        // Predicated region
        $region61: #{tpu_custom_call.1} parent=23 // pred_check
          %p553 = pneg %p291
        $region62: #{tpu_custom_call.1} parent=23 // pred_check_branch
          %555 = sbr.rel (%p553) target = $region64
        $region63: #{tpu_custom_call.1} parent=23 // pred_region
          %p556 = scmp.lt.s32.totalorder %s33, 1
          %s557 = scalar_select %p556, %s33, 1
          %s558 = scalar_lea.vmem %s9, %s557
        $region64: #{tpu_custom_call.1} parent=23 // pred_fallthru
          _
        // Predicated region
        $region65: #{tpu_custom_call.1} parent=23 // pred_check
          %p559 = pneg %p317
        $region66: #{tpu_custom_call.1} parent=23 // pred_check_branch
          %561 = sbr.rel (%p559) target = $region68
        $region67: #{tpu_custom_call.1} parent=23 // pred_region
          %p562 = scmp.lt.s32.totalorder %s33, 1
          %s563 = scalar_select %p562, %s33, 1
          %s564 = smul.addr %s563, 64
          %s565 = smul.addr %s564, 4
          %s566 = scalar_lea.vmem %s10, %s565
        $region68: #{tpu_custom_call.1} parent=23 // pred_fallthru
          _
        // Predicated region
        $region69: #{tpu_custom_call.1} parent=23 // pred_check
          %p567 = pneg %p343
        $region70: #{tpu_custom_call.1} parent=23 // pred_check_branch
          %569 = sbr.rel (%p567) target = $region72
        $region71: #{tpu_custom_call.1} parent=23 // pred_region
          %p570 = scmp.lt.s32.totalorder %s33, 1
          %s571 = scalar_select %p570, %s33, 1
          %s572 = smul.addr %s571, 16
          %s573 = scalar_lea.vmem %s11, %s572
        $region72: #{tpu_custom_call.1} parent=23 // pred_fallthru
          _
        // Predicated region
        $region73: #{tpu_custom_call.1} parent=23 // pred_check
          %p574 = pneg %p369
        $region74: #{tpu_custom_call.1} parent=23 // pred_check_branch
          %576 = sbr.rel (%p574) target = $region76
        $region75: #{tpu_custom_call.1} parent=23 // pred_region
          %p577 = scmp.lt.s32.totalorder %s33, 1
          %s578 = scalar_select %p577, %s33, 1
          %s579 = smul.addr %s578, 256
          %s580 = smul.addr %s579, 4
          %s581 = scalar_lea.vmem %s12, %s580
        $region76: #{tpu_custom_call.1} parent=23 // pred_fallthru
          _
        // Predicated region
        $region77: #{tpu_custom_call.1} parent=23 // pred_check
          %p582 = pneg %p395
        $region78: #{tpu_custom_call.1} parent=23 // pred_check_branch
          %584 = sbr.rel (%p582) target = $region80
        $region79: #{tpu_custom_call.1} parent=23 // pred_region
          %p585 = scmp.lt.s32.totalorder %s33, 1
          %s586 = scalar_select %p585, %s33, 1
          %s587 = scalar_lea.vmem %s13, %s586
        $region80: #{tpu_custom_call.1} parent=23 // pred_fallthru
          _
      $region24: #{tpu_custom_call.1} parent=5 // pred_fallthru
        _
      %p588 = scmp.le.s32.totalorder 1, %s25
      %p589 = scmp.lt.s32.totalorder %s25, 5
      %p590 = pnand %p588, %p589
      %p591 = pneg %p590
      // Predicated region
      $region81: #{tpu_custom_call.1} parent=5 // pred_check
        _
      $region82: #{tpu_custom_call.1} parent=5 // pred_check_branch
        %593 = sbr.rel (%p590) target = $region84
      $region83: #{tpu_custom_call.1} parent=5 // pred_region
        %s594 = ssub.s32 %s25, 1
        %p595 = scmp.lt.s32.totalorder %s34, 1
        %s596 = scalar_select %p595, %s34, 1
        %s597 = smul.addr %s596, 8
        %s598 = scalar_lea.vmem %s0, %s597
        %p599 = pneg %p63
        %p600 = pneg %p60
        %p601 = scmp.lt.s32.totalorder %s34, 1
        %s602 = scalar_select %p601, %s34, 1
        %s603 = scalar_lea.vmem %s1, %s602
        %p604 = pneg %p89
        %p605 = pneg %p86
        %p606 = scmp.lt.s32.totalorder %s35, 1
        %s607 = scalar_select %p606, %s35, 1
        %s608 = scalar_lea.vmem %s2, %s607
        %p609 = pneg %p115
        %p610 = pneg %p112
        %p611 = scmp.lt.s32.totalorder %s35, 1
        %s612 = scalar_select %p611, %s35, 1
        %s613 = scalar_lea.vmem %s3, %s612
        %p614 = pneg %p141
        %p615 = pneg %p138
        %p616 = scmp.lt.s32.totalorder %s35, 1
        %s617 = scalar_select %p616, %s35, 1
        %s618 = smul.addr %s617, 4
        %s619 = smul.addr %s618, 4
        %s620 = scalar_lea.vmem %s4, %s619
        %p621 = pneg %p167
        %p622 = pneg %p164
        %p623 = scmp.lt.s32.totalorder %s35, 1
        %s624 = scalar_select %p623, %s35, 1
        %s625 = scalar_lea.vmem %s5, %s624
        %p626 = pneg %p193
        %p627 = pneg %p190
        %p628 = scmp.lt.s32.totalorder %s35, 1
        %s629 = scalar_select %p628, %s35, 1
        %s630 = smul.addr %s629, 4
        %s631 = smul.addr %s630, 4
        %s632 = scalar_lea.vmem %s6, %s631
        %p633 = pneg %p219
        %p634 = pneg %p216
        %p635 = scmp.lt.s32.totalorder %s35, 1
        %s636 = scalar_select %p635, %s35, 1
        %s637 = scalar_lea.vmem %s7, %s636
        %p638 = pneg %p245
        %p639 = pneg %p242
        %p640 = scmp.lt.s32.totalorder %s35, 1
        %s641 = scalar_select %p640, %s35, 1
        %s642 = scalar_lea.vmem %s8, %s641
        %p643 = pneg %p271
        %p644 = pneg %p268
        %p645 = scmp.lt.s32.totalorder %s35, 1
        %s646 = scalar_select %p645, %s35, 1
        %s647 = scalar_lea.vmem %s9, %s646
        %p648 = pneg %p297
        %p649 = pneg %p294
        %p650 = scmp.lt.s32.totalorder %s35, 1
        %s651 = scalar_select %p650, %s35, 1
        %s652 = smul.addr %s651, 64
        %s653 = smul.addr %s652, 4
        %s654 = scalar_lea.vmem %s10, %s653
        %p655 = pneg %p323
        %p656 = pneg %p320
        %p657 = scmp.lt.s32.totalorder %s35, 1
        %s658 = scalar_select %p657, %s35, 1
        %s659 = smul.addr %s658, 16
        %s660 = scalar_lea.vmem %s11, %s659
        %p661 = pneg %p349
        %p662 = pneg %p346
        %p663 = scmp.lt.s32.totalorder %s35, 1
        %s664 = scalar_select %p663, %s35, 1
        %s665 = smul.addr %s664, 256
        %s666 = smul.addr %s665, 4
        %s667 = scalar_lea.vmem %s12, %s666
        %p668 = pneg %p375
        %p669 = pneg %p372
        %p670 = scmp.lt.s32.totalorder %s35, 1
        %s671 = scalar_select %p670, %s35, 1
        %s672 = scalar_lea.vmem %s13, %s671
        %p673 = pneg %p401
        %p674 = pneg %p398
        %p675 = pneg %p422
        %p676 = pneg %p419
        %p677 = pneg %p443
        %p678 = pneg %p440
        %p679 = pneg %p469
        %p680 = pneg %p466
        %s681 = sand.u32 %s456, 1
        %s682 = scalar_lea.sflag [#allocation4], %s681
        %s683 = sand.u32 %s456, 1
        %s684 = smul.addr %s683, 8
        %s685 = scalar_lea.vmem [#allocation3], %s684
        %p686 = scmp.lt.s32.totalorder %s34, 1
        %s687 = scalar_select %p686, %s34, 1
        %s688 = smul.addr %s687, 8
        %s689 = scalar_lea.vmem %s0, %s688
        %p690 = scmp.lt.s32.totalorder %s34, 1
        %s691 = scalar_select %p690, %s34, 1
        %s692 = scalar_lea.vmem %s1, %s691
        %p693 = scmp.lt.s32.totalorder %s35, 1
        %s694 = scalar_select %p693, %s35, 1
        %s695 = scalar_lea.vmem %s2, %s694
        %p696 = scmp.lt.s32.totalorder %s35, 1
        %s697 = scalar_select %p696, %s35, 1
        %s698 = scalar_lea.vmem %s3, %s697
        %p699 = scmp.lt.s32.totalorder %s35, 1
        %s700 = scalar_select %p699, %s35, 1
        %s701 = smul.addr %s700, 4
        %s702 = smul.addr %s701, 4
        %s703 = scalar_lea.vmem %s4, %s702
        %p704 = scmp.lt.s32.totalorder %s35, 1
        %s705 = scalar_select %p704, %s35, 1
        %s706 = scalar_lea.vmem %s5, %s705
        %p707 = scmp.lt.s32.totalorder %s35, 1
        %s708 = scalar_select %p707, %s35, 1
        %s709 = smul.addr %s708, 4
        %s710 = smul.addr %s709, 4
        %s711 = scalar_lea.vmem %s6, %s710
        %p712 = scmp.lt.s32.totalorder %s35, 1
        %s713 = scalar_select %p712, %s35, 1
        %s714 = scalar_lea.vmem %s7, %s713
        %p715 = scmp.lt.s32.totalorder %s35, 1
        %s716 = scalar_select %p715, %s35, 1
        %s717 = scalar_lea.vmem %s8, %s716
        %p718 = scmp.lt.s32.totalorder %s35, 1
        %s719 = scalar_select %p718, %s35, 1
        %s720 = scalar_lea.vmem %s9, %s719
        %p721 = scmp.lt.s32.totalorder %s35, 1
        %s722 = scalar_select %p721, %s35, 1
        %s723 = smul.addr %s722, 64
        %s724 = smul.addr %s723, 4
        %s725 = scalar_lea.vmem %s10, %s724
        %p726 = scmp.lt.s32.totalorder %s35, 1
        %s727 = scalar_select %p726, %s35, 1
        %s728 = smul.addr %s727, 16
        %s729 = scalar_lea.vmem %s11, %s728
        %p730 = scmp.lt.s32.totalorder %s35, 1
        %s731 = scalar_select %p730, %s35, 1
        %s732 = smul.addr %s731, 256
        %s733 = smul.addr %s732, 4
        %s734 = scalar_lea.vmem %s12, %s733
        %p735 = scmp.lt.s32.totalorder %s35, 1
        %s736 = scalar_select %p735, %s35, 1
        %s737 = scalar_lea.vmem %s13, %s736
        %p739 = scmp.eq.s32.totalorder %s35, 0
        // Predicated region
        $region85: #{tpu_custom_call.1} parent=83 // pred_check
          %p740 = pneg %p739
        $region86: #{tpu_custom_call.1} parent=83 // pred_check_branch
          %742 = sbr.rel (%p740) target = $region88
        $region87: #{tpu_custom_call.1} parent=83 // pred_region
          %v743 = vld [vmem:[%s689] sm:$0xff]
          %vm744 = vcmask 261120
          %745 = vst.msk [vmem:[%s685] sm:$0xff] %vm744, %v743
        $region88: #{tpu_custom_call.1} parent=83 // pred_fallthru
          _
        %v746 = vld [vmem:[%s685] sm:$0xff]
        %v747 = vld [vmem:[%s692] sm:$0x1]
        %v748 = vsub.f32 %v747, 1.0
        %v749 = vmul.f32 %v748, 1e+09
        %750 = vxpose.xlu0.b32.start [1/16] %v747, 128
        %751 = vxpose.xlu0.b32.cont [2/16] 0.0, 128
        %752 = vxpose.xlu0.b32.cont [3/16] 0.0, 128
        %753 = vxpose.xlu0.b32.cont [4/16] 0.0, 128
        %754 = vxpose.xlu0.b32.cont [5/16] 0.0, 128
        %755 = vxpose.xlu0.b32.cont [6/16] 0.0, 128
        %756 = vxpose.xlu0.b32.cont [7/16] 0.0, 128
        %757 = vxpose.xlu0.b32.cont [8/16] 0.0, 128
        %758 = vxpose.xlu0.b32.cont [9/16] 0.0, 128
        %759 = vxpose.xlu0.b32.cont [10/16] 0.0, 128
        %760 = vxpose.xlu0.b32.cont [11/16] 0.0, 128
        %761 = vxpose.xlu0.b32.cont [12/16] 0.0, 128
        %762 = vxpose.xlu0.b32.cont [13/16] 0.0, 128
        %763 = vxpose.xlu0.b32.cont [14/16] 0.0, 128
        %764 = vxpose.xlu0.b32.cont [15/16] 0.0, 128
        %765 = vxpose.xlu0.b32.end [16/16] 0.0, 128
        %v766 = vpop.trf.xlu0
        %v767 = vpop.trf.xlu0
        %v768 = vpop.trf.xlu0
        %v769 = vpop.trf.xlu0
        %v770 = vpop.trf.xlu0
        %v771 = vpop.trf.xlu0
        %v772 = vpop.trf.xlu0
        %v773 = vpop.trf.xlu0
        %v774 = vpop.trf.xlu0
        %v775 = vpop.trf.xlu0
        %v776 = vpop.trf.xlu0
        %v777 = vpop.trf.xlu0
        %v778 = vpop.trf.xlu0
        %v779 = vpop.trf.xlu0
        %v780 = vpop.trf.xlu0
        %v781 = vpop.trf.xlu0
        %v782 = vld [vmem:[%s695] sm:$0x1]
        %v783 = vld [vmem:[%s698] sm:$0x1]
        %vm784 = vcmask 261120
        %v785 = vsel %vm784, %v746, 0.0
        %786 = vadd.xlane.f32.xlu0 %v785
        %v787 = vpop.xlane.xlu0 %786
        %v788 = vrcp.pop 32.0
        %v789 = vmul.f32 %v787, %v788
        %v790 = vsub.f32 %v746, %v789
        %v791 = vmul.f32 %v790, %v790
        %v792 = vsel %vm784, %v791, 0.0
        %793 = vadd.xlane.f32.xlu0 %v792
        %v794 = vpop.xlane.xlu0 %793
        %v795 = vmul.f32 %v794, 0.032258064
        %v796 = vrsqrt.pop %v795
        %v797 = vmul.f32 %v795, %v796
        %vm798 = vcmp.eq.f32.partialorder %v795, inf
        %v799 = vsel %vm798, %v795, %v797
        %vm800 = vcmp.eq.f32.partialorder %v795, 0.0
        %v801 = vand.u32 %v795, 2147483648
        %v802 = vsel %vm800, %v801, %v799
        %v803 = vadd.f32 %v802, 1e-06
        %v804 = vrcp.pop %v803
        %v805 = vmul.f32 1.0, %v804
        %v806 = vmul.f32 %v790, %v805
        %v808 = vlaneseq
        %v809 = vshrl.u32 %v808, 7
        %v810 = vsub.s32 0, %v809
        %v811 = vrot.slane %v782, %v810
        %v813 = vmul.f32 %v811, %v806
        %v815 = vlaneseq
        %v816 = vshrl.u32 %v815, 7
        %v817 = vsub.s32 0, %v816
        %v818 = vrot.slane %v783, %v817
        %v820 = vadd.f32 %v813, %v818
        %v821 = vpack.c.bf16 %v820, %v820
        %v822 = vld [vmem:[%s703] sm:$0xf]
        %v823 = vld [vmem:[%s703 + $0x4] sm:$0xf]
        %v824 = vld [vmem:[%s703 + $0x8] sm:$0xf]
        %v825 = vld [vmem:[%s703 + $0xc] sm:$0xf]
        %v826 = vld [vmem:[%s706] sm:$0x1]
        %v828 = vlaneseq
        %v829 = vshrl.u32 %v828, 7
        %v830 = vsub.s32 0, %v829
        %v831 = vrot.slane %v826, %v830
        %v837 = vunpack.c.l.b16 %v822
        %v838 = vunpack.c.l.b16 %v823
        %v839 = vunpack.c.l.b16 %v824
        %v840 = vunpack.c.l.b16 %v825
        %v841 = vpack.c.b16 %v838, %v837
        %v842 = vpack.c.b16 %v840, %v839
        %v846 = vsel %vm784, %v821, 0
        %848 = vmatprep.subr.bf16.mxu0 0
        %849 = vmatpush1.bf16.msra.mxu0 0
        %850 = vmatprep.subr.bf16.mxu0 0
        %851 = vmatpush1.bf16.msra.mxu0 0
        %852 = vmatprep.subr.bf16.mxu0 0
        %853 = vmatpush1.bf16.msra.mxu0 0
        %854 = vmatprep.subr.bf16.mxu0 0
        %855 = vmatpush1.bf16.msra.mxu0 0
        %856 = vmatprep.subr.bf16.mxu0 0
        %857 = vmatpush1.bf16.msra.mxu0 0
        %858 = vmatprep.subr.bf16.mxu0 0
        %859 = vmatpush1.bf16.msra.mxu0 0
        %860 = vmatprep.subr.bf16.mxu0 0
        %861 = vmatpush1.bf16.msra.mxu0 %v842
        %862 = vmatprep.subr.bf16.mxu0 0
        %863 = vmatpush1.bf16.msra.mxu0 %v841
        %864 = vmatprep.subr.bf16.mxu0 0
        %865 = vmatpush2.bf16.msra.mxu0 0
        %866 = vmatprep.subr.bf16.mxu0 0
        %867 = vmatpush2.bf16.msra.mxu0 0
        %868 = vmatprep.subr.bf16.mxu0 0
        %869 = vmatpush2.bf16.msra.mxu0 0
        %870 = vmatprep.subr.bf16.mxu0 0
        %871 = vmatpush2.bf16.msra.mxu0 0
        %872 = vmatprep.subr.bf16.mxu0 0
        %873 = vmatpush2.bf16.msra.mxu0 0
        %874 = vmatprep.subr.bf16.mxu0 0
        %875 = vmatpush2.bf16.msra.mxu0 0
        %876 = vmatprep.subr.bf16.mxu0 0
        %877 = vmatpush2.bf16.msra.mxu0 0
        %878 = vmatprep.subr.bf16.mxu0 0
        %879 = vmatpush2.bf16.msra.mxu0 0
        %880 = vmatprep.mubr.bf16.mxu0 0
        %881 = vmatmul.mubr.bf16.gmra.mxu0 %v846
        %v882 = vpop.f32.mrf.mxu0
        %v883 = vadd.f32 %v831, %v882
        %v884 = vpop.f32.mrf.mxu0
        %v885 = vpop.f32.mrf.mxu0
        %v886 = vpop.f32.mrf.mxu0
        %887 = vdwg.mxu0
        %v888 = vpack.c.bf16 %v883, %v883
        %v890 = vlaneseq
        %v891 = vshrl.u32 %v890, 7
        %v892 = vsub.s32 0, %v891
        %v893 = vrot.slane %v749, %v892
        %896 = vrot.lane.b32.xlu0 %v888, 96
        %v897 = vpop.permute.xlu0 %896
        %vm898 = vcmask 64512
        %v900 = vsel %vm898, %v888, 0
        %v903 = vsel %vm898, %v897, 0
        %905 = vmatprep.subr.bf16.mxu0 0
        %906 = vmatpush1.bf16.xpose.msra.mxu0 0
        %907 = vmatprep.subr.bf16.mxu0 0
        %908 = vmatpush1.bf16.xpose.msra.mxu0 0
        %909 = vmatprep.subr.bf16.mxu0 0
        %910 = vmatpush1.bf16.xpose.msra.mxu0 0
        %911 = vmatprep.subr.bf16.mxu0 0
        %912 = vmatpush1.bf16.xpose.msra.mxu0 0
        %913 = vmatprep.subr.bf16.mxu0 0
        %914 = vmatpush1.bf16.xpose.msra.mxu0 0
        %915 = vmatprep.subr.bf16.mxu0 0
        %916 = vmatpush1.bf16.xpose.msra.mxu0 0
        %917 = vmatprep.subr.bf16.mxu0 0
        %918 = vmatpush1.bf16.xpose.msra.mxu0 0
        %919 = vmatprep.subr.bf16.mxu0 0
        %920 = vmatpush1.bf16.xpose.msra.mxu0 %v903
        %921 = vmatprep.subr.bf16.mxu0 0
        %922 = vmatpush2.bf16.xpose.msra.mxu0 0
        %923 = vmatprep.subr.bf16.mxu0 0
        %924 = vmatpush2.bf16.xpose.msra.mxu0 0
        %925 = vmatprep.subr.bf16.mxu0 0
        %926 = vmatpush2.bf16.xpose.msra.mxu0 0
        %927 = vmatprep.subr.bf16.mxu0 0
        %928 = vmatpush2.bf16.xpose.msra.mxu0 0
        %929 = vmatprep.subr.bf16.mxu0 0
        %930 = vmatpush2.bf16.xpose.msra.mxu0 0
        %931 = vmatprep.subr.bf16.mxu0 0
        %932 = vmatpush2.bf16.xpose.msra.mxu0 0
        %933 = vmatprep.subr.bf16.mxu0 0
        %934 = vmatpush2.bf16.xpose.msra.mxu0 0
        %935 = vmatprep.subr.bf16.mxu0 0
        %936 = vmatpush2.bf16.xpose.msra.mxu0 0
        %937 = vmatprep.mubr.bf16.mxu0 0
        %938 = vmatmul.mubr.bf16.gmra.mxu0 %v900
        %v939 = vpop.f32.mrf.mxu0
        %v940 = vadd.f32 %v893, %v939
        %v941 = vpop.f32.mrf.mxu0
        %v942 = vpop.f32.mrf.mxu0
        %v943 = vpop.f32.mrf.mxu0
        %944 = vdwg.mxu0
        %v945 = vsel %vm898, %v940, -inf
        %946 = vmax.xlane.f32.xlu0 %v945
        %v947 = vpop.xlane.xlu0 %946
        %v948 = vsub.f32 %v940, %v947
        %v949 = vmul.f32 %v948, 1.442695
        %v950 = vpow.pop %v949
        %v951 = vsel %vm898, %v950, 0.0
        %952 = vadd.xlane.f32.xlu0 %v951
        %v953 = vpop.xlane.xlu0 %952
        %v954 = vrcp.pop %v953
        %v955 = vmul.f32 %v950, %v954
        %v956 = vpack.c.bf16 %v955, %v955
        %957 = vrot.lane.b32.xlu0 %v888, 64
        %v958 = vpop.permute.xlu0 %957
        %v960 = vsel %vm898, %v956, 0
        %vm962 = vcmask 1043456
        %v964 = vsel %vm962, %v958, 0
        %966 = vmatprep.subr.bf16.mxu0 0
        %967 = vmatpush1.bf16.msra.mxu0 0
        %968 = vmatprep.subr.bf16.mxu0 0
        %969 = vmatpush1.bf16.msra.mxu0 0
        %970 = vmatprep.subr.bf16.mxu0 0
        %971 = vmatpush1.bf16.msra.mxu0 0
        %972 = vmatprep.subr.bf16.mxu0 0
        %973 = vmatpush1.bf16.msra.mxu0 0
        %974 = vmatprep.subr.bf16.mxu0 0
        %975 = vmatpush1.bf16.msra.mxu0 0
        %976 = vmatprep.subr.bf16.mxu0 0
        %977 = vmatpush1.bf16.msra.mxu0 0
        %978 = vmatprep.subr.bf16.mxu0 0
        %979 = vmatpush1.bf16.msra.mxu0 0
        %980 = vmatprep.subr.bf16.mxu0 0
        %981 = vmatpush1.bf16.msra.mxu0 %v964
        %982 = vmatprep.subr.bf16.mxu0 0
        %983 = vmatpush2.bf16.msra.mxu0 0
        %984 = vmatprep.subr.bf16.mxu0 0
        %985 = vmatpush2.bf16.msra.mxu0 0
        %986 = vmatprep.subr.bf16.mxu0 0
        %987 = vmatpush2.bf16.msra.mxu0 0
        %988 = vmatprep.subr.bf16.mxu0 0
        %989 = vmatpush2.bf16.msra.mxu0 0
        %990 = vmatprep.subr.bf16.mxu0 0
        %991 = vmatpush2.bf16.msra.mxu0 0
        %992 = vmatprep.subr.bf16.mxu0 0
        %993 = vmatpush2.bf16.msra.mxu0 0
        %994 = vmatprep.subr.bf16.mxu0 0
        %995 = vmatpush2.bf16.msra.mxu0 0
        %996 = vmatprep.subr.bf16.mxu0 0
        %997 = vmatpush2.bf16.msra.mxu0 0
        %998 = vmatprep.mubr.bf16.mxu0 0
        %999 = vmatmul.mubr.bf16.gmra.mxu0 %v960
        %v1000 = vpop.f32.mrf.mxu0
        %v1001 = vadd.f32 0.0, %v1000
        %v1002 = vpop.f32.mrf.mxu0
        %v1003 = vpop.f32.mrf.mxu0
        %v1004 = vpop.f32.mrf.mxu0
        %1005 = vdwg.mxu0
        %vm1006 = vcmask 589312
        %v1007 = vsel %vm1006, %v883, 0.0
        %v1008 = vrot.slane %v1007, 4
        %v1009 = vadd.f32 %v1007, %v1008
        %v1010 = vrot.slane %v1009, 2
        %v1011 = vadd.f32 %v1009, %v1010
        %v1012 = vrot.slane %v1011, 1
        %v1013 = vadd.f32 %v1011, %v1012
        %v1014 = vrcp.pop 8.0
        %v1015 = vmul.f32 %v1013, %v1014
        %vm1016 = vcmp.gt.f32.partialorder %v766, 0.0
        %v1017 = vsel %vm1016, 1, 0
        %1018 = vset.pattern.permute.xlu0 0
        %1019 = vperm.xlu0 %1018, %v1017
        %v1020 = vpop.permute.xlu0 %1019
        %vm1021 = vcmp.eq.s32.totalorder %v1020, 1
        %1023 = vrot.lane.b32.xlu0 %v1015, 64
        %v1024 = vpop.permute.xlu0 %1023
        %v1026 = vsel %vm1021, %v1001, %v1024
        %1027 = vst.msk [vmem:[#allocation2] sm:$0xff] %vm898, %v1026
        %1028 = vrot.lane.b32.xlu0 %v888, 120
        %v1029 = vpop.permute.xlu0 %1028
        %1030 = vrot.lane.b32.xlu0 %v888, 88
        %v1031 = vpop.permute.xlu0 %1030
        %v1033 = vsel %vm898, %v1029, 0
        %v1036 = vsel %vm898, %v1031, 0
        %1038 = vmatprep.subr.bf16.mxu0 0
        %1039 = vmatpush1.bf16.xpose.msra.mxu0 0
        %1040 = vmatprep.subr.bf16.mxu0 0
        %1041 = vmatpush1.bf16.xpose.msra.mxu0 0
        %1042 = vmatprep.subr.bf16.mxu0 0
        %1043 = vmatpush1.bf16.xpose.msra.mxu0 0
        %1044 = vmatprep.subr.bf16.mxu0 0
        %1045 = vmatpush1.bf16.xpose.msra.mxu0 0
        %1046 = vmatprep.subr.bf16.mxu0 0
        %1047 = vmatpush1.bf16.xpose.msra.mxu0 0
        %1048 = vmatprep.subr.bf16.mxu0 0
        %1049 = vmatpush1.bf16.xpose.msra.mxu0 0
        %1050 = vmatprep.subr.bf16.mxu0 0
        %1051 = vmatpush1.bf16.xpose.msra.mxu0 0
        %1052 = vmatprep.subr.bf16.mxu0 0
        %1053 = vmatpush1.bf16.xpose.msra.mxu0 %v1036
        %1054 = vmatprep.subr.bf16.mxu0 0
        %1055 = vmatpush2.bf16.xpose.msra.mxu0 0
        %1056 = vmatprep.subr.bf16.mxu0 0
        %1057 = vmatpush2.bf16.xpose.msra.mxu0 0
        %1058 = vmatprep.subr.bf16.mxu0 0
        %1059 = vmatpush2.bf16.xpose.msra.mxu0 0
        %1060 = vmatprep.subr.bf16.mxu0 0
        %1061 = vmatpush2.bf16.xpose.msra.mxu0 0
        %1062 = vmatprep.subr.bf16.mxu0 0
        %1063 = vmatpush2.bf16.xpose.msra.mxu0 0
        %1064 = vmatprep.subr.bf16.mxu0 0
        %1065 = vmatpush2.bf16.xpose.msra.mxu0 0
        %1066 = vmatprep.subr.bf16.mxu0 0
        %1067 = vmatpush2.bf16.xpose.msra.mxu0 0
        %1068 = vmatprep.subr.bf16.mxu0 0
        %1069 = vmatpush2.bf16.xpose.msra.mxu0 0
        %1070 = vmatprep.mubr.bf16.mxu0 0
        %1071 = vmatmul.mubr.bf16.gmra.mxu0 %v1033
        %v1072 = vpop.f32.mrf.mxu0
        %v1073 = vadd.f32 %v893, %v1072
        %v1074 = vpop.f32.mrf.mxu0
        %v1075 = vpop.f32.mrf.mxu0
        %v1076 = vpop.f32.mrf.mxu0
        %1077 = vdwg.mxu0
        %v1078 = vsel %vm898, %v1073, -inf
        %1079 = vmax.xlane.f32.xlu0 %v1078
        %v1080 = vpop.xlane.xlu0 %1079
        %v1081 = vsub.f32 %v1073, %v1080
        %v1082 = vmul.f32 %v1081, 1.442695
        %v1083 = vpow.pop %v1082
        %v1084 = vsel %vm898, %v1083, 0.0
        %1085 = vadd.xlane.f32.xlu0 %v1084
        %v1086 = vpop.xlane.xlu0 %1085
        %v1087 = vrcp.pop %v1086
        %v1088 = vmul.f32 %v1083, %v1087
        %v1089 = vpack.c.bf16 %v1088, %v1088
        %1090 = vrot.lane.b32.xlu0 %v888, 56
        %v1091 = vpop.permute.xlu0 %1090
        %v1093 = vsel %vm898, %v1089, 0
        %v1096 = vsel %vm962, %v1091, 0
        %1098 = vmatprep.subr.bf16.mxu0 0
        %1099 = vmatpush1.bf16.msra.mxu0 0
        %1100 = vmatprep.subr.bf16.mxu0 0
        %1101 = vmatpush1.bf16.msra.mxu0 0
        %1102 = vmatprep.subr.bf16.mxu0 0
        %1103 = vmatpush1.bf16.msra.mxu0 0
        %1104 = vmatprep.subr.bf16.mxu0 0
        %1105 = vmatpush1.bf16.msra.mxu0 0
        %1106 = vmatprep.subr.bf16.mxu0 0
        %1107 = vmatpush1.bf16.msra.mxu0 0
        %1108 = vmatprep.subr.bf16.mxu0 0
        %1109 = vmatpush1.bf16.msra.mxu0 0
        %1110 = vmatprep.subr.bf16.mxu0 0
        %1111 = vmatpush1.bf16.msra.mxu0 0
        %1112 = vmatprep.subr.bf16.mxu0 0
        %1113 = vmatpush1.bf16.msra.mxu0 %v1096
        %1114 = vmatprep.subr.bf16.mxu0 0
        %1115 = vmatpush2.bf16.msra.mxu0 0
        %1116 = vmatprep.subr.bf16.mxu0 0
        %1117 = vmatpush2.bf16.msra.mxu0 0
        %1118 = vmatprep.subr.bf16.mxu0 0
        %1119 = vmatpush2.bf16.msra.mxu0 0
        %1120 = vmatprep.subr.bf16.mxu0 0
        %1121 = vmatpush2.bf16.msra.mxu0 0
        %1122 = vmatprep.subr.bf16.mxu0 0
        %1123 = vmatpush2.bf16.msra.mxu0 0
        %1124 = vmatprep.subr.bf16.mxu0 0
        %1125 = vmatpush2.bf16.msra.mxu0 0
        %1126 = vmatprep.subr.bf16.mxu0 0
        %1127 = vmatpush2.bf16.msra.mxu0 0
        %1128 = vmatprep.subr.bf16.mxu0 0
        %1129 = vmatpush2.bf16.msra.mxu0 0
        %1130 = vmatprep.mubr.bf16.mxu0 0
        %1131 = vmatmul.mubr.bf16.gmra.mxu0 %v1093
        %v1132 = vpop.f32.mrf.mxu0
        %v1133 = vadd.f32 0.0, %v1132
        %v1134 = vpop.f32.mrf.mxu0
        %v1135 = vpop.f32.mrf.mxu0
        %v1136 = vpop.f32.mrf.mxu0
        %1137 = vdwg.mxu0
        %vm1138 = vcmask 654912
        %v1139 = vsel %vm1138, %v883, 0.0
        %v1140 = vrot.slane %v1139, 4
        %v1141 = vadd.f32 %v1139, %v1140
        %v1142 = vrot.slane %v1141, 2
        %v1143 = vadd.f32 %v1141, %v1142
        %v1144 = vrot.slane %v1143, 1
        %v1145 = vadd.f32 %v1143, %v1144
        %v1146 = vmul.f32 %v1145, %v1014
        %1148 = vrot.lane.b32.xlu0 %v1146, 56
        %v1149 = vpop.permute.xlu0 %1148
        %v1151 = vsel %vm1021, %v1133, %v1149
        %1153 = vrot.lane.b32.xlu0 %v1151, 8
        %v1154 = vpop.permute.xlu0 %1153
        %vm1156 = vcmask 130112
        %1157 = vst.msk [vmem:[#allocation2] sm:$0xff] %vm1156, %v1154
        %1158 = vrot.lane.b32.xlu0 %v888, 112
        %v1159 = vpop.permute.xlu0 %1158
        %1160 = vrot.lane.b32.xlu0 %v888, 80
        %v1161 = vpop.permute.xlu0 %1160
        %v1163 = vsel %vm898, %v1159, 0
        %v1166 = vsel %vm898, %v1161, 0
        %1168 = vmatprep.subr.bf16.mxu0 0
        %1169 = vmatpush1.bf16.xpose.msra.mxu0 0
        %1170 = vmatprep.subr.bf16.mxu0 0
        %1171 = vmatpush1.bf16.xpose.msra.mxu0 0
        %1172 = vmatprep.subr.bf16.mxu0 0
        %1173 = vmatpush1.bf16.xpose.msra.mxu0 0
        %1174 = vmatprep.subr.bf16.mxu0 0
        %1175 = vmatpush1.bf16.xpose.msra.mxu0 0
        %1176 = vmatprep.subr.bf16.mxu0 0
        %1177 = vmatpush1.bf16.xpose.msra.mxu0 0
        %1178 = vmatprep.subr.bf16.mxu0 0
        %1179 = vmatpush1.bf16.xpose.msra.mxu0 0
        %1180 = vmatprep.subr.bf16.mxu0 0
        %1181 = vmatpush1.bf16.xpose.msra.mxu0 0
        %1182 = vmatprep.subr.bf16.mxu0 0
        %1183 = vmatpush1.bf16.xpose.msra.mxu0 %v1166
        %1184 = vmatprep.subr.bf16.mxu0 0
        %1185 = vmatpush2.bf16.xpose.msra.mxu0 0
        %1186 = vmatprep.subr.bf16.mxu0 0
        %1187 = vmatpush2.bf16.xpose.msra.mxu0 0
        %1188 = vmatprep.subr.bf16.mxu0 0
        %1189 = vmatpush2.bf16.xpose.msra.mxu0 0
        %1190 = vmatprep.subr.bf16.mxu0 0
        %1191 = vmatpush2.bf16.xpose.msra.mxu0 0
        %1192 = vmatprep.subr.bf16.mxu0 0
        %1193 = vmatpush2.bf16.xpose.msra.mxu0 0
        %1194 = vmatprep.subr.bf16.mxu0 0
        %1195 = vmatpush2.bf16.xpose.msra.mxu0 0
        %1196 = vmatprep.subr.bf16.mxu0 0
        %1197 = vmatpush2.bf16.xpose.msra.mxu0 0
        %1198 = vmatprep.subr.bf16.mxu0 0
        %1199 = vmatpush2.bf16.xpose.msra.mxu0 0
        %1200 = vmatprep.mubr.bf16.mxu0 0
        %1201 = vmatmul.mubr.bf16.gmra.mxu0 %v1163
        %v1202 = vpop.f32.mrf.mxu0
        %v1203 = vadd.f32 %v893, %v1202
        %v1204 = vpop.f32.mrf.mxu0
        %v1205 = vpop.f32.mrf.mxu0
        %v1206 = vpop.f32.mrf.mxu0
        %1207 = vdwg.mxu0
        %v1208 = vsel %vm898, %v1203, -inf
        %1209 = vmax.xlane.f32.xlu0 %v1208
        %v1210 = vpop.xlane.xlu0 %1209
        %v1211 = vsub.f32 %v1203, %v1210
        %v1212 = vmul.f32 %v1211, 1.442695
        %v1213 = vpow.pop %v1212
        %v1214 = vsel %vm898, %v1213, 0.0
        %1215 = vadd.xlane.f32.xlu0 %v1214
        %v1216 = vpop.xlane.xlu0 %1215
        %v1217 = vrcp.pop %v1216
        %v1218 = vmul.f32 %v1213, %v1217
        %v1219 = vpack.c.bf16 %v1218, %v1218
        %1220 = vrot.lane.b32.xlu0 %v888, 48
        %v1221 = vpop.permute.xlu0 %1220
        %v1223 = vsel %vm898, %v1219, 0
        %v1226 = vsel %vm962, %v1221, 0
        %1228 = vmatprep.subr.bf16.mxu0 0
        %1229 = vmatpush1.bf16.msra.mxu0 0
        %1230 = vmatprep.subr.bf16.mxu0 0
        %1231 = vmatpush1.bf16.msra.mxu0 0
        %1232 = vmatprep.subr.bf16.mxu0 0
        %1233 = vmatpush1.bf16.msra.mxu0 0
        %1234 = vmatprep.subr.bf16.mxu0 0
        %1235 = vmatpush1.bf16.msra.mxu0 0
        %1236 = vmatprep.subr.bf16.mxu0 0
        %1237 = vmatpush1.bf16.msra.mxu0 0
        %1238 = vmatprep.subr.bf16.mxu0 0
        %1239 = vmatpush1.bf16.msra.mxu0 0
        %1240 = vmatprep.subr.bf16.mxu0 0
        %1241 = vmatpush1.bf16.msra.mxu0 0
        %1242 = vmatprep.subr.bf16.mxu0 0
        %1243 = vmatpush1.bf16.msra.mxu0 %v1226
        %1244 = vmatprep.subr.bf16.mxu0 0
        %1245 = vmatpush2.bf16.msra.mxu0 0
        %1246 = vmatprep.subr.bf16.mxu0 0
        %1247 = vmatpush2.bf16.msra.mxu0 0
        %1248 = vmatprep.subr.bf16.mxu0 0
        %1249 = vmatpush2.bf16.msra.mxu0 0
        %1250 = vmatprep.subr.bf16.mxu0 0
        %1251 = vmatpush2.bf16.msra.mxu0 0
        %1252 = vmatprep.subr.bf16.mxu0 0
        %1253 = vmatpush2.bf16.msra.mxu0 0
        %1254 = vmatprep.subr.bf16.mxu0 0
        %1255 = vmatpush2.bf16.msra.mxu0 0
        %1256 = vmatprep.subr.bf16.mxu0 0
        %1257 = vmatpush2.bf16.msra.mxu0 0
        %1258 = vmatprep.subr.bf16.mxu0 0
        %1259 = vmatpush2.bf16.msra.mxu0 0
        %1260 = vmatprep.mubr.bf16.mxu0 0
        %1261 = vmatmul.mubr.bf16.gmra.mxu0 %v1223
        %v1262 = vpop.f32.mrf.mxu0
        %v1263 = vadd.f32 0.0, %v1262
        %v1264 = vpop.f32.mrf.mxu0
        %v1265 = vpop.f32.mrf.mxu0
        %v1266 = vpop.f32.mrf.mxu0
        %1267 = vdwg.mxu0
        %vm1268 = vcmask 720512
        %v1269 = vsel %vm1268, %v883, 0.0
        %v1270 = vrot.slane %v1269, 4
        %v1271 = vadd.f32 %v1269, %v1270
        %v1272 = vrot.slane %v1271, 2
        %v1273 = vadd.f32 %v1271, %v1272
        %v1274 = vrot.slane %v1273, 1
        %v1275 = vadd.f32 %v1273, %v1274
        %v1276 = vmul.f32 %v1275, %v1014
        %1278 = vrot.lane.b32.xlu0 %v1276, 48
        %v1279 = vpop.permute.xlu0 %1278
        %v1281 = vsel %vm1021, %v1263, %v1279
        %1283 = vrot.lane.b32.xlu0 %v1281, 16
        %v1284 = vpop.permute.xlu0 %1283
        %vm1286 = vcmask 195712
        %1287 = vst.msk [vmem:[#allocation2] sm:$0xff] %vm1286, %v1284
        %1288 = vrot.lane.b32.xlu0 %v888, 104
        %v1289 = vpop.permute.xlu0 %1288
        %1290 = vrot.lane.b32.xlu0 %v888, 72
        %v1291 = vpop.permute.xlu0 %1290
        %v1293 = vsel %vm898, %v1289, 0
        %v1296 = vsel %vm898, %v1291, 0
        %1298 = vmatprep.subr.bf16.mxu0 0
        %1299 = vmatpush1.bf16.xpose.msra.mxu0 0
        %1300 = vmatprep.subr.bf16.mxu0 0
        %1301 = vmatpush1.bf16.xpose.msra.mxu0 0
        %1302 = vmatprep.subr.bf16.mxu0 0
        %1303 = vmatpush1.bf16.xpose.msra.mxu0 0
        %1304 = vmatprep.subr.bf16.mxu0 0
        %1305 = vmatpush1.bf16.xpose.msra.mxu0 0
        %1306 = vmatprep.subr.bf16.mxu0 0
        %1307 = vmatpush1.bf16.xpose.msra.mxu0 0
        %1308 = vmatprep.subr.bf16.mxu0 0
        %1309 = vmatpush1.bf16.xpose.msra.mxu0 0
        %1310 = vmatprep.subr.bf16.mxu0 0
        %1311 = vmatpush1.bf16.xpose.msra.mxu0 0
        %1312 = vmatprep.subr.bf16.mxu0 0
        %1313 = vmatpush1.bf16.xpose.msra.mxu0 %v1296
        %1314 = vmatprep.subr.bf16.mxu0 0
        %1315 = vmatpush2.bf16.xpose.msra.mxu0 0
        %1316 = vmatprep.subr.bf16.mxu0 0
        %1317 = vmatpush2.bf16.xpose.msra.mxu0 0
        %1318 = vmatprep.subr.bf16.mxu0 0
        %1319 = vmatpush2.bf16.xpose.msra.mxu0 0
        %1320 = vmatprep.subr.bf16.mxu0 0
        %1321 = vmatpush2.bf16.xpose.msra.mxu0 0
        %1322 = vmatprep.subr.bf16.mxu0 0
        %1323 = vmatpush2.bf16.xpose.msra.mxu0 0
        %1324 = vmatprep.subr.bf16.mxu0 0
        %1325 = vmatpush2.bf16.xpose.msra.mxu0 0
        %1326 = vmatprep.subr.bf16.mxu0 0
        %1327 = vmatpush2.bf16.xpose.msra.mxu0 0
        %1328 = vmatprep.subr.bf16.mxu0 0
        %1329 = vmatpush2.bf16.xpose.msra.mxu0 0
        %1330 = vmatprep.mubr.bf16.mxu0 0
        %1331 = vmatmul.mubr.bf16.gmra.mxu0 %v1293
        %v1332 = vpop.f32.mrf.mxu0
        %v1333 = vadd.f32 %v893, %v1332
        %v1334 = vpop.f32.mrf.mxu0
        %v1335 = vpop.f32.mrf.mxu0
        %v1336 = vpop.f32.mrf.mxu0
        %1337 = vdwg.mxu0
        %v1338 = vsel %vm898, %v1333, -inf
        %1339 = vmax.xlane.f32.xlu0 %v1338
        %v1340 = vpop.xlane.xlu0 %1339
        %v1341 = vsub.f32 %v1333, %v1340
        %v1342 = vmul.f32 %v1341, 1.442695
        %v1343 = vpow.pop %v1342
        %v1344 = vsel %vm898, %v1343, 0.0
        %1345 = vadd.xlane.f32.xlu0 %v1344
        %v1346 = vpop.xlane.xlu0 %1345
        %v1347 = vrcp.pop %v1346
        %v1348 = vmul.f32 %v1343, %v1347
        %v1349 = vpack.c.bf16 %v1348, %v1348
        %1350 = vrot.lane.b32.xlu0 %v888, 40
        %v1351 = vpop.permute.xlu0 %1350
        %v1353 = vsel %vm898, %v1349, 0
        %v1356 = vsel %vm962, %v1351, 0
        %1358 = vmatprep.subr.bf16.mxu0 0
        %1359 = vmatpush1.bf16.msra.mxu0 0
        %1360 = vmatprep.subr.bf16.mxu0 0
        %1361 = vmatpush1.bf16.msra.mxu0 0
        %1362 = vmatprep.subr.bf16.mxu0 0
        %1363 = vmatpush1.bf16.msra.mxu0 0
        %1364 = vmatprep.subr.bf16.mxu0 0
        %1365 = vmatpush1.bf16.msra.mxu0 0
        %1366 = vmatprep.subr.bf16.mxu0 0
        %1367 = vmatpush1.bf16.msra.mxu0 0
        %1368 = vmatprep.subr.bf16.mxu0 0
        %1369 = vmatpush1.bf16.msra.mxu0 0
        %1370 = vmatprep.subr.bf16.mxu0 0
        %1371 = vmatpush1.bf16.msra.mxu0 0
        %1372 = vmatprep.subr.bf16.mxu0 0
        %1373 = vmatpush1.bf16.msra.mxu0 %v1356
        %1374 = vmatprep.subr.bf16.mxu0 0
        %1375 = vmatpush2.bf16.msra.mxu0 0
        %1376 = vmatprep.subr.bf16.mxu0 0
        %1377 = vmatpush2.bf16.msra.mxu0 0
        %1378 = vmatprep.subr.bf16.mxu0 0
        %1379 = vmatpush2.bf16.msra.mxu0 0
        %1380 = vmatprep.subr.bf16.mxu0 0
        %1381 = vmatpush2.bf16.msra.mxu0 0
        %1382 = vmatprep.subr.bf16.mxu0 0
        %1383 = vmatpush2.bf16.msra.mxu0 0
        %1384 = vmatprep.subr.bf16.mxu0 0
        %1385 = vmatpush2.bf16.msra.mxu0 0
        %1386 = vmatprep.subr.bf16.mxu0 0
        %1387 = vmatpush2.bf16.msra.mxu0 0
        %1388 = vmatprep.subr.bf16.mxu0 0
        %1389 = vmatpush2.bf16.msra.mxu0 0
        %1390 = vmatprep.mubr.bf16.mxu0 0
        %1391 = vmatmul.mubr.bf16.gmra.mxu0 %v1353
        %v1392 = vpop.f32.mrf.mxu0
        %v1393 = vadd.f32 0.0, %v1392
        %v1394 = vpop.f32.mrf.mxu0
        %v1395 = vpop.f32.mrf.mxu0
        %v1396 = vpop.f32.mrf.mxu0
        %1397 = vdwg.mxu0
        %vm1398 = vcmask 786112
        %v1399 = vsel %vm1398, %v883, 0.0
        %v1400 = vrot.slane %v1399, 4
        %v1401 = vadd.f32 %v1399, %v1400
        %v1402 = vrot.slane %v1401, 2
        %v1403 = vadd.f32 %v1401, %v1402
        %v1404 = vrot.slane %v1403, 1
        %v1405 = vadd.f32 %v1403, %v1404
        %v1406 = vmul.f32 %v1405, %v1014
        %1408 = vrot.lane.b32.xlu0 %v1406, 40
        %v1409 = vpop.permute.xlu0 %1408
        %v1411 = vsel %vm1021, %v1393, %v1409
        %1413 = vrot.lane.b32.xlu0 %v1411, 24
        %v1414 = vpop.permute.xlu0 %1413
        %vm1416 = vcmask 261312
        %1417 = vst.msk [vmem:[#allocation2] sm:$0xff] %vm1416, %v1414
        %v1418 = vld [vmem:[#allocation2] sm:$0xff]
        %v1419 = vpack.c.bf16 %v1418, %v1418
        %v1420 = vld [vmem:[%s711] sm:$0xf]
        %v1421 = vld [vmem:[%s711 + $0x4] sm:$0xf]
        %v1422 = vld [vmem:[%s711 + $0x8] sm:$0xf]
        %v1423 = vld [vmem:[%s711 + $0xc] sm:$0xf]
        %v1424 = vld [vmem:[%s714] sm:$0x1]
        %v1426 = vlaneseq
        %v1427 = vshrl.u32 %v1426, 7
        %v1428 = vsub.s32 0, %v1427
        %v1429 = vrot.slane %v1424, %v1428
        %v1435 = vunpack.c.l.b16 %v1420
        %v1436 = vunpack.c.l.b16 %v1421
        %v1437 = vunpack.c.l.b16 %v1422
        %v1438 = vunpack.c.l.b16 %v1423
        %v1439 = vpack.c.b16 %v1436, %v1435
        %v1440 = vpack.c.b16 %v1438, %v1437
        %v1444 = vsel %vm784, %v1419, 0
        %1446 = vmatprep.subr.bf16.mxu0 0
        %1447 = vmatpush1.bf16.msra.mxu0 0
        %1448 = vmatprep.subr.bf16.mxu0 0
        %1449 = vmatpush1.bf16.msra.mxu0 0
        %1450 = vmatprep.subr.bf16.mxu0 0
        %1451 = vmatpush1.bf16.msra.mxu0 0
        %1452 = vmatprep.subr.bf16.mxu0 0
        %1453 = vmatpush1.bf16.msra.mxu0 0
        %1454 = vmatprep.subr.bf16.mxu0 0
        %1455 = vmatpush1.bf16.msra.mxu0 0
        %1456 = vmatprep.subr.bf16.mxu0 0
        %1457 = vmatpush1.bf16.msra.mxu0 0
        %1458 = vmatprep.subr.bf16.mxu0 0
        %1459 = vmatpush1.bf16.msra.mxu0 %v1440
        %1460 = vmatprep.subr.bf16.mxu0 0
        %1461 = vmatpush1.bf16.msra.mxu0 %v1439
        %1462 = vmatprep.subr.bf16.mxu0 0
        %1463 = vmatpush2.bf16.msra.mxu0 0
        %1464 = vmatprep.subr.bf16.mxu0 0
        %1465 = vmatpush2.bf16.msra.mxu0 0
        %1466 = vmatprep.subr.bf16.mxu0 0
        %1467 = vmatpush2.bf16.msra.mxu0 0
        %1468 = vmatprep.subr.bf16.mxu0 0
        %1469 = vmatpush2.bf16.msra.mxu0 0
        %1470 = vmatprep.subr.bf16.mxu0 0
        %1471 = vmatpush2.bf16.msra.mxu0 0
        %1472 = vmatprep.subr.bf16.mxu0 0
        %1473 = vmatpush2.bf16.msra.mxu0 0
        %1474 = vmatprep.subr.bf16.mxu0 0
        %1475 = vmatpush2.bf16.msra.mxu0 0
        %1476 = vmatprep.subr.bf16.mxu0 0
        %1477 = vmatpush2.bf16.msra.mxu0 0
        %1478 = vmatprep.mubr.bf16.mxu0 0
        %1479 = vmatmul.mubr.bf16.gmra.mxu0 %v1444
        %v1480 = vpop.f32.mrf.mxu0
        %v1481 = vadd.f32 %v1429, %v1480
        %v1482 = vpop.f32.mrf.mxu0
        %v1483 = vpop.f32.mrf.mxu0
        %v1484 = vpop.f32.mrf.mxu0
        %1485 = vdwg.mxu0
        %v1486 = vadd.f32 %v746, %v1481
        %v1487 = vld [vmem:[%s717] sm:$0x1]
        %v1488 = vld [vmem:[%s720] sm:$0x1]
        %v1489 = vsel %vm784, %v1486, 0.0
        %1490 = vadd.xlane.f32.xlu0 %v1489
        %v1491 = vpop.xlane.xlu0 %1490
        %v1492 = vmul.f32 %v1491, %v788
        %v1493 = vsub.f32 %v1486, %v1492
        %v1494 = vmul.f32 %v1493, %v1493
        %v1495 = vsel %vm784, %v1494, 0.0
        %1496 = vadd.xlane.f32.xlu0 %v1495
        %v1497 = vpop.xlane.xlu0 %1496
        %v1498 = vmul.f32 %v1497, 0.032258064
        %v1499 = vrsqrt.pop %v1498
        %v1500 = vmul.f32 %v1498, %v1499
        %vm1501 = vcmp.eq.f32.partialorder %v1498, inf
        %v1502 = vsel %vm1501, %v1498, %v1500
        %vm1503 = vcmp.eq.f32.partialorder %v1498, 0.0
        %v1504 = vand.u32 %v1498, 2147483648
        %v1505 = vsel %vm1503, %v1504, %v1502
        %v1506 = vadd.f32 %v1505, 1e-06
        %v1507 = vrcp.pop %v1506
        %v1508 = vmul.f32 1.0, %v1507
        %v1509 = vmul.f32 %v1493, %v1508
        %v1511 = vlaneseq
        %v1512 = vshrl.u32 %v1511, 7
        %v1513 = vsub.s32 0, %v1512
        %v1514 = vrot.slane %v1487, %v1513
        %v1516 = vmul.f32 %v1514, %v1509
        %v1518 = vlaneseq
        %v1519 = vshrl.u32 %v1518, 7
        %v1520 = vsub.s32 0, %v1519
        %v1521 = vrot.slane %v1488, %v1520
        %v1523 = vadd.f32 %v1516, %v1521
        %v1524 = vpack.c.bf16 %v1523, %v1523
        %v1525 = vld [vmem:[%s725] sm:$0xff]
        %v1526 = vld [vmem:[%s725 + $0x8] sm:$0xff]
        %v1527 = vld [vmem:[%s725 + $0x40] sm:$0xff]
        %v1528 = vld [vmem:[%s725 + $0x48] sm:$0xff]
        %v1529 = vld [vmem:[%s725 + $0x80] sm:$0xff]
        %v1530 = vld [vmem:[%s725 + $0x88] sm:$0xff]
        %v1531 = vld [vmem:[%s725 + $0xc0] sm:$0xff]
        %v1532 = vld [vmem:[%s725 + $0xc8] sm:$0xff]
        %v1533 = vld [vmem:[%s729] sm:$0xf]
        %v1535 = vlaneseq
        %v1536 = vshrl.u32 %v1535, 7
        %v1537 = vsub.s32 0, %v1536
        %v1538 = vrot.slane %v1533, %v1537
        %v1539 = vlaneseq
        %v1540 = vshrl.u32 %v1539, 7
        %v1541 = vsub.s32 1, %v1540
        %v1542 = vrot.slane %v1533, %v1541
        %v1543 = vlaneseq
        %v1544 = vshrl.u32 %v1543, 7
        %v1545 = vsub.s32 2, %v1544
        %v1546 = vrot.slane %v1533, %v1545
        %v1547 = vlaneseq
        %v1548 = vshrl.u32 %v1547, 7
        %v1549 = vsub.s32 3, %v1548
        %v1550 = vrot.slane %v1533, %v1549
        %v1563 = vunpack.c.l.b16 %v1525
        %v1564 = vunpack.c.h.b16 %v1525
        %v1565 = vunpack.c.l.b16 %v1526
        %v1566 = vunpack.c.h.b16 %v1526
        %v1567 = vunpack.c.l.b16 %v1527
        %v1568 = vunpack.c.h.b16 %v1527
        %v1569 = vunpack.c.l.b16 %v1528
        %v1570 = vunpack.c.h.b16 %v1528
        %v1571 = vunpack.c.l.b16 %v1529
        %v1572 = vunpack.c.h.b16 %v1529
        %v1573 = vunpack.c.l.b16 %v1530
        %v1574 = vunpack.c.h.b16 %v1530
        %v1575 = vunpack.c.l.b16 %v1531
        %v1576 = vunpack.c.h.b16 %v1531
        %v1577 = vunpack.c.l.b16 %v1532
        %v1578 = vunpack.c.h.b16 %v1532
        %v1579 = vpack.c.b16 %v1567, %v1563
        %v1580 = vpack.c.b16 %v1568, %v1564
        %v1581 = vpack.c.b16 %v1569, %v1565
        %v1582 = vpack.c.b16 %v1570, %v1566
        %v1583 = vpack.c.b16 %v1575, %v1571
        %v1584 = vpack.c.b16 %v1576, %v1572
        %v1585 = vpack.c.b16 %v1577, %v1573
        %v1586 = vpack.c.b16 %v1578, %v1574
        %v1596 = vsel %vm784, %v1524, 0
        %1598 = vmatprep.subr.bf16.mxu0 0
        %1599 = vmatpush1.bf16.msra.mxu0 0
        %1600 = vmatprep.subr.bf16.mxu0 0
        %1601 = vmatpush1.bf16.msra.mxu0 0
        %1602 = vmatprep.subr.bf16.mxu0 0
        %1603 = vmatpush1.bf16.msra.mxu0 0
        %1604 = vmatprep.subr.bf16.mxu0 0
        %1605 = vmatpush1.bf16.msra.mxu0 0
        %1606 = vmatprep.subr.bf16.mxu0 0
        %1607 = vmatpush1.bf16.msra.mxu0 0
        %1608 = vmatprep.subr.bf16.mxu0 0
        %1609 = vmatpush1.bf16.msra.mxu0 0
        %1610 = vmatprep.subr.bf16.mxu0 %v1584
        %1611 = vmatpush1.bf16.msra.mxu0 %v1583
        %1612 = vmatprep.subr.bf16.mxu0 %v1580
        %1613 = vmatpush1.bf16.msra.mxu0 %v1579
        %1614 = vmatprep.subr.bf16.mxu0 0
        %1615 = vmatpush2.bf16.msra.mxu0 0
        %1616 = vmatprep.subr.bf16.mxu0 0
        %1617 = vmatpush2.bf16.msra.mxu0 0
        %1618 = vmatprep.subr.bf16.mxu0 0
        %1619 = vmatpush2.bf16.msra.mxu0 0
        %1620 = vmatprep.subr.bf16.mxu0 0
        %1621 = vmatpush2.bf16.msra.mxu0 0
        %1622 = vmatprep.subr.bf16.mxu0 0
        %1623 = vmatpush2.bf16.msra.mxu0 0
        %1624 = vmatprep.subr.bf16.mxu0 0
        %1625 = vmatpush2.bf16.msra.mxu0 0
        %1626 = vmatprep.subr.bf16.mxu0 0
        %1627 = vmatpush2.bf16.msra.mxu0 0
        %1628 = vmatprep.subr.bf16.mxu0 0
        %1629 = vmatpush2.bf16.msra.mxu0 0
        %1630 = vmatprep.mubr.bf16.mxu0 0
        %1631 = vmatmul.mubr.bf16.gmra.mxu0 %v1596
        %v1632 = vpop.f32.mrf.mxu0
        %v1633 = vadd.f32 %v1538, %v1632
        %v1634 = vpop.f32.mrf.mxu0
        %v1635 = vadd.f32 %v1542, %v1634
        %v1636 = vpop.f32.mrf.mxu0
        %v1637 = vpop.f32.mrf.mxu0
        %1638 = vdwg.mxu0
        %1639 = vmatprep.subr.bf16.mxu0 0
        %1640 = vmatpush1.bf16.msra.mxu0 0
        %1641 = vmatprep.subr.bf16.mxu0 0
        %1642 = vmatpush1.bf16.msra.mxu0 0
        %1643 = vmatprep.subr.bf16.mxu0 0
        %1644 = vmatpush1.bf16.msra.mxu0 0
        %1645 = vmatprep.subr.bf16.mxu0 0
        %1646 = vmatpush1.bf16.msra.mxu0 0
        %1647 = vmatprep.subr.bf16.mxu0 0
        %1648 = vmatpush1.bf16.msra.mxu0 0
        %1649 = vmatprep.subr.bf16.mxu0 0
        %1650 = vmatpush1.bf16.msra.mxu0 0
        %1651 = vmatprep.subr.bf16.mxu0 %v1586
        %1652 = vmatpush1.bf16.msra.mxu0 %v1585
        %1653 = vmatprep.subr.bf16.mxu0 %v1582
        %1654 = vmatpush1.bf16.msra.mxu0 %v1581
        %1655 = vmatprep.subr.bf16.mxu0 0
        %1656 = vmatpush2.bf16.msra.mxu0 0
        %1657 = vmatprep.subr.bf16.mxu0 0
        %1658 = vmatpush2.bf16.msra.mxu0 0
        %1659 = vmatprep.subr.bf16.mxu0 0
        %1660 = vmatpush2.bf16.msra.mxu0 0
        %1661 = vmatprep.subr.bf16.mxu0 0
        %1662 = vmatpush2.bf16.msra.mxu0 0
        %1663 = vmatprep.subr.bf16.mxu0 0
        %1664 = vmatpush2.bf16.msra.mxu0 0
        %1665 = vmatprep.subr.bf16.mxu0 0
        %1666 = vmatpush2.bf16.msra.mxu0 0
        %1667 = vmatprep.subr.bf16.mxu0 0
        %1668 = vmatpush2.bf16.msra.mxu0 0
        %1669 = vmatprep.subr.bf16.mxu0 0
        %1670 = vmatpush2.bf16.msra.mxu0 0
        %1671 = vmatprep.mubr.bf16.mxu0 0
        %1672 = vmatmul.mubr.bf16.gmra.mxu0 %v1596
        %v1673 = vpop.f32.mrf.mxu0
        %v1674 = vadd.f32 %v1546, %v1673
        %v1675 = vpop.f32.mrf.mxu0
        %v1676 = vadd.f32 %v1550, %v1675
        %v1677 = vpop.f32.mrf.mxu0
        %v1678 = vpop.f32.mrf.mxu0
        %1679 = vdwg.mxu0
        %v1680 = vmax.f32 %v1633, 0.0
        %v1681 = vmax.f32 %v1635, 0.0
        %v1682 = vmax.f32 %v1674, 0.0
        %v1683 = vmax.f32 %v1676, 0.0
        %v1684 = vpack.c.bf16 %v1680, %v1680
        %v1685 = vpack.c.bf16 %v1681, %v1681
        %v1686 = vpack.c.bf16 %v1682, %v1682
        %v1687 = vpack.c.bf16 %v1683, %v1683
        %v1688 = vld [vmem:[%s734] sm:$0xf]
        %v1689 = vld [vmem:[%s734 + $0x4] sm:$0xf]
        %v1690 = vld [vmem:[%s734 + $0x8] sm:$0xf]
        %v1691 = vld [vmem:[%s734 + $0xc] sm:$0xf]
        %v1692 = vld [vmem:[%s734 + $0x10] sm:$0xf]
        %v1693 = vld [vmem:[%s734 + $0x14] sm:$0xf]
        %v1694 = vld [vmem:[%s734 + $0x18] sm:$0xf]
        %v1695 = vld [vmem:[%s734 + $0x1c] sm:$0xf]
        %v1696 = vld [vmem:[%s734 + $0x20] sm:$0xf]
        %v1697 = vld [vmem:[%s734 + $0x24] sm:$0xf]
        %v1698 = vld [vmem:[%s734 + $0x28] sm:$0xf]
        %v1699 = vld [vmem:[%s734 + $0x2c] sm:$0xf]
        %v1700 = vld [vmem:[%s734 + $0x30] sm:$0xf]
        %v1701 = vld [vmem:[%s734 + $0x34] sm:$0xf]
        %v1702 = vld [vmem:[%s734 + $0x38] sm:$0xf]
        %v1703 = vld [vmem:[%s734 + $0x3c] sm:$0xf]
        %v1704 = vld [vmem:[%s734 + $0x40] sm:$0xf]
        %v1705 = vld [vmem:[%s734 + $0x44] sm:$0xf]
        %v1706 = vld [vmem:[%s734 + $0x48] sm:$0xf]
        %v1707 = vld [vmem:[%s734 + $0x4c] sm:$0xf]
        %v1708 = vld [vmem:[%s734 + $0x50] sm:$0xf]
        %v1709 = vld [vmem:[%s734 + $0x54] sm:$0xf]
        %v1710 = vld [vmem:[%s734 + $0x58] sm:$0xf]
        %v1711 = vld [vmem:[%s734 + $0x5c] sm:$0xf]
        %v1712 = vld [vmem:[%s734 + $0x60] sm:$0xf]
        %v1713 = vld [vmem:[%s734 + $0x64] sm:$0xf]
        %v1714 = vld [vmem:[%s734 + $0x68] sm:$0xf]
        %v1715 = vld [vmem:[%s734 + $0x6c] sm:$0xf]
        %v1716 = vld [vmem:[%s734 + $0x70] sm:$0xf]
        %v1717 = vld [vmem:[%s734 + $0x74] sm:$0xf]
        %v1718 = vld [vmem:[%s734 + $0x78] sm:$0xf]
        %v1719 = vld [vmem:[%s734 + $0x7c] sm:$0xf]
        %v1720 = vld [vmem:[%s734 + $0x80] sm:$0xf]
        %v1721 = vld [vmem:[%s734 + $0x84] sm:$0xf]
        %v1722 = vld [vmem:[%s734 + $0x88] sm:$0xf]
        %v1723 = vld [vmem:[%s734 + $0x8c] sm:$0xf]
        %v1724 = vld [vmem:[%s734 + $0x90] sm:$0xf]
        %v1725 = vld [vmem:[%s734 + $0x94] sm:$0xf]
        %v1726 = vld [vmem:[%s734 + $0x98] sm:$0xf]
        %v1727 = vld [vmem:[%s734 + $0x9c] sm:$0xf]
        %v1728 = vld [vmem:[%s734 + $0xa0] sm:$0xf]
        %v1729 = vld [vmem:[%s734 + $0xa4] sm:$0xf]
        %v1730 = vld [vmem:[%s734 + $0xa8] sm:$0xf]
        %v1731 = vld [vmem:[%s734 + $0xac] sm:$0xf]
        %v1732 = vld [vmem:[%s734 + $0xb0] sm:$0xf]
        %v1733 = vld [vmem:[%s734 + $0xb4] sm:$0xf]
        %v1734 = vld [vmem:[%s734 + $0xb8] sm:$0xf]
        %v1735 = vld [vmem:[%s734 + $0xbc] sm:$0xf]
        %v1736 = vld [vmem:[%s734 + $0xc0] sm:$0xf]
        %v1737 = vld [vmem:[%s734 + $0xc4] sm:$0xf]
        %v1738 = vld [vmem:[%s734 + $0xc8] sm:$0xf]
        %v1739 = vld [vmem:[%s734 + $0xcc] sm:$0xf]
        %v1740 = vld [vmem:[%s734 + $0xd0] sm:$0xf]
        %v1741 = vld [vmem:[%s734 + $0xd4] sm:$0xf]
        %v1742 = vld [vmem:[%s734 + $0xd8] sm:$0xf]
        %v1743 = vld [vmem:[%s734 + $0xdc] sm:$0xf]
        %v1744 = vld [vmem:[%s734 + $0xe0] sm:$0xf]
        %v1745 = vld [vmem:[%s734 + $0xe4] sm:$0xf]
        %v1746 = vld [vmem:[%s734 + $0xe8] sm:$0xf]
        %v1747 = vld [vmem:[%s734 + $0xec] sm:$0xf]
        %v1748 = vld [vmem:[%s734 + $0xf0] sm:$0xf]
        %v1749 = vld [vmem:[%s734 + $0xf4] sm:$0xf]
        %v1750 = vld [vmem:[%s734 + $0xf8] sm:$0xf]
        %v1751 = vld [vmem:[%s734 + $0xfc] sm:$0xf]
        %v1752 = vld [vmem:[%s725 + $0x10] sm:$0xff]
        %v1753 = vld [vmem:[%s725 + $0x18] sm:$0xff]
        %v1754 = vld [vmem:[%s725 + $0x50] sm:$0xff]
        %v1755 = vld [vmem:[%s725 + $0x58] sm:$0xff]
        %v1756 = vld [vmem:[%s725 + $0x90] sm:$0xff]
        %v1757 = vld [vmem:[%s725 + $0x98] sm:$0xff]
        %v1758 = vld [vmem:[%s725 + $0xd0] sm:$0xff]
        %v1759 = vld [vmem:[%s725 + $0xd8] sm:$0xff]
        %v1760 = vld [vmem:[%s729 + $0x4] sm:$0xf]
        %v1762 = vlaneseq
        %v1763 = vshrl.u32 %v1762, 7
        %v1764 = vsub.s32 0, %v1763
        %v1765 = vrot.slane %v1760, %v1764
        %v1766 = vlaneseq
        %v1767 = vshrl.u32 %v1766, 7
        %v1768 = vsub.s32 1, %v1767
        %v1769 = vrot.slane %v1760, %v1768
        %v1770 = vlaneseq
        %v1771 = vshrl.u32 %v1770, 7
        %v1772 = vsub.s32 2, %v1771
        %v1773 = vrot.slane %v1760, %v1772
        %v1774 = vlaneseq
        %v1775 = vshrl.u32 %v1774, 7
        %v1776 = vsub.s32 3, %v1775
        %v1777 = vrot.slane %v1760, %v1776
        %v1790 = vunpack.c.l.b16 %v1752
        %v1791 = vunpack.c.h.b16 %v1752
        %v1792 = vunpack.c.l.b16 %v1753
        %v1793 = vunpack.c.h.b16 %v1753
        %v1794 = vunpack.c.l.b16 %v1754
        %v1795 = vunpack.c.h.b16 %v1754
        %v1796 = vunpack.c.l.b16 %v1755
        %v1797 = vunpack.c.h.b16 %v1755
        %v1798 = vunpack.c.l.b16 %v1756
        %v1799 = vunpack.c.h.b16 %v1756
        %v1800 = vunpack.c.l.b16 %v1757
        %v1801 = vunpack.c.h.b16 %v1757
        %v1802 = vunpack.c.l.b16 %v1758
        %v1803 = vunpack.c.h.b16 %v1758
        %v1804 = vunpack.c.l.b16 %v1759
        %v1805 = vunpack.c.h.b16 %v1759
        %v1806 = vpack.c.b16 %v1794, %v1790
        %v1807 = vpack.c.b16 %v1795, %v1791
        %v1808 = vpack.c.b16 %v1796, %v1792
        %v1809 = vpack.c.b16 %v1797, %v1793
        %v1810 = vpack.c.b16 %v1802, %v1798
        %v1811 = vpack.c.b16 %v1803, %v1799
        %v1812 = vpack.c.b16 %v1804, %v1800
        %v1813 = vpack.c.b16 %v1805, %v1801
        %1822 = vmatprep.subr.bf16.mxu0 0
        %1823 = vmatpush1.bf16.msra.mxu0 0
        %1824 = vmatprep.subr.bf16.mxu0 0
        %1825 = vmatpush1.bf16.msra.mxu0 0
        %1826 = vmatprep.subr.bf16.mxu0 0
        %1827 = vmatpush1.bf16.msra.mxu0 0
        %1828 = vmatprep.subr.bf16.mxu0 0
        %1829 = vmatpush1.bf16.msra.mxu0 0
        %1830 = vmatprep.subr.bf16.mxu0 0
        %1831 = vmatpush1.bf16.msra.mxu0 0
        %1832 = vmatprep.subr.bf16.mxu0 0
        %1833 = vmatpush1.bf16.msra.mxu0 0
        %1834 = vmatprep.subr.bf16.mxu0 %v1811
        %1835 = vmatpush1.bf16.msra.mxu0 %v1810
        %1836 = vmatprep.subr.bf16.mxu0 %v1807
        %1837 = vmatpush1.bf16.msra.mxu0 %v1806
        %1838 = vmatprep.subr.bf16.mxu0 0
        %1839 = vmatpush2.bf16.msra.mxu0 0
        %1840 = vmatprep.subr.bf16.mxu0 0
        %1841 = vmatpush2.bf16.msra.mxu0 0
        %1842 = vmatprep.subr.bf16.mxu0 0
        %1843 = vmatpush2.bf16.msra.mxu0 0
        %1844 = vmatprep.subr.bf16.mxu0 0
        %1845 = vmatpush2.bf16.msra.mxu0 0
        %1846 = vmatprep.subr.bf16.mxu0 0
        %1847 = vmatpush2.bf16.msra.mxu0 0
        %1848 = vmatprep.subr.bf16.mxu0 0
        %1849 = vmatpush2.bf16.msra.mxu0 0
        %1850 = vmatprep.subr.bf16.mxu0 0
        %1851 = vmatpush2.bf16.msra.mxu0 0
        %1852 = vmatprep.subr.bf16.mxu0 0
        %1853 = vmatpush2.bf16.msra.mxu0 0
        %1854 = vmatprep.mubr.bf16.mxu0 0
        %1855 = vmatmul.mubr.bf16.gmra.mxu0 %v1596
        %v1856 = vpop.f32.mrf.mxu0
        %v1857 = vadd.f32 %v1765, %v1856
        %v1858 = vpop.f32.mrf.mxu0
        %v1859 = vadd.f32 %v1769, %v1858
        %v1860 = vpop.f32.mrf.mxu0
        %v1861 = vpop.f32.mrf.mxu0
        %1862 = vdwg.mxu0
        %1863 = vmatprep.subr.bf16.mxu0 0
        %1864 = vmatpush1.bf16.msra.mxu0 0
        %1865 = vmatprep.subr.bf16.mxu0 0
        %1866 = vmatpush1.bf16.msra.mxu0 0
        %1867 = vmatprep.subr.bf16.mxu0 0
        %1868 = vmatpush1.bf16.msra.mxu0 0
        %1869 = vmatprep.subr.bf16.mxu0 0
        %1870 = vmatpush1.bf16.msra.mxu0 0
        %1871 = vmatprep.subr.bf16.mxu0 0
        %1872 = vmatpush1.bf16.msra.mxu0 0
        %1873 = vmatprep.subr.bf16.mxu0 0
        %1874 = vmatpush1.bf16.msra.mxu0 0
        %1875 = vmatprep.subr.bf16.mxu0 %v1813
        %1876 = vmatpush1.bf16.msra.mxu0 %v1812
        %1877 = vmatprep.subr.bf16.mxu0 %v1809
        %1878 = vmatpush1.bf16.msra.mxu0 %v1808
        %1879 = vmatprep.subr.bf16.mxu0 0
        %1880 = vmatpush2.bf16.msra.mxu0 0
        %1881 = vmatprep.subr.bf16.mxu0 0
        %1882 = vmatpush2.bf16.msra.mxu0 0
        %1883 = vmatprep.subr.bf16.mxu0 0
        %1884 = vmatpush2.bf16.msra.mxu0 0
        %1885 = vmatprep.subr.bf16.mxu0 0
        %1886 = vmatpush2.bf16.msra.mxu0 0
        %1887 = vmatprep.subr.bf16.mxu0 0
        %1888 = vmatpush2.bf16.msra.mxu0 0
        %1889 = vmatprep.subr.bf16.mxu0 0
        %1890 = vmatpush2.bf16.msra.mxu0 0
        %1891 = vmatprep.subr.bf16.mxu0 0
        %1892 = vmatpush2.bf16.msra.mxu0 0
        %1893 = vmatprep.subr.bf16.mxu0 0
        %1894 = vmatpush2.bf16.msra.mxu0 0
        %1895 = vmatprep.mubr.bf16.mxu0 0
        %1896 = vmatmul.mubr.bf16.gmra.mxu0 %v1596
        %v1897 = vpop.f32.mrf.mxu0
        %v1898 = vadd.f32 %v1773, %v1897
        %v1899 = vpop.f32.mrf.mxu0
        %v1900 = vadd.f32 %v1777, %v1899
        %v1901 = vpop.f32.mrf.mxu0
        %v1902 = vpop.f32.mrf.mxu0
        %1903 = vdwg.mxu0
        %v1904 = vmax.f32 %v1857, 0.0
        %v1905 = vmax.f32 %v1859, 0.0
        %v1906 = vmax.f32 %v1898, 0.0
        %v1907 = vmax.f32 %v1900, 0.0
        %v1908 = vpack.c.bf16 %v1904, %v1904
        %v1909 = vpack.c.bf16 %v1905, %v1905
        %v1910 = vpack.c.bf16 %v1906, %v1906
        %v1911 = vpack.c.bf16 %v1907, %v1907
        %v1912 = vld [vmem:[%s734 + $0x100] sm:$0xf]
        %v1913 = vld [vmem:[%s734 + $0x104] sm:$0xf]
        %v1914 = vld [vmem:[%s734 + $0x108] sm:$0xf]
        %v1915 = vld [vmem:[%s734 + $0x10c] sm:$0xf]
        %v1916 = vld [vmem:[%s734 + $0x110] sm:$0xf]
        %v1917 = vld [vmem:[%s734 + $0x114] sm:$0xf]
        %v1918 = vld [vmem:[%s734 + $0x118] sm:$0xf]
        %v1919 = vld [vmem:[%s734 + $0x11c] sm:$0xf]
        %v1920 = vld [vmem:[%s734 + $0x120] sm:$0xf]
        %v1921 = vld [vmem:[%s734 + $0x124] sm:$0xf]
        %v1922 = vld [vmem:[%s734 + $0x128] sm:$0xf]
        %v1923 = vld [vmem:[%s734 + $0x12c] sm:$0xf]
        %v1924 = vld [vmem:[%s734 + $0x130] sm:$0xf]
        %v1925 = vld [vmem:[%s734 + $0x134] sm:$0xf]
        %v1926 = vld [vmem:[%s734 + $0x138] sm:$0xf]
        %v1927 = vld [vmem:[%s734 + $0x13c] sm:$0xf]
        %v1928 = vld [vmem:[%s734 + $0x140] sm:$0xf]
        %v1929 = vld [vmem:[%s734 + $0x144] sm:$0xf]
        %v1930 = vld [vmem:[%s734 + $0x148] sm:$0xf]
        %v1931 = vld [vmem:[%s734 + $0x14c] sm:$0xf]
        %v1932 = vld [vmem:[%s734 + $0x150] sm:$0xf]
        %v1933 = vld [vmem:[%s734 + $0x154] sm:$0xf]
        %v1934 = vld [vmem:[%s734 + $0x158] sm:$0xf]
        %v1935 = vld [vmem:[%s734 + $0x15c] sm:$0xf]
        %v1936 = vld [vmem:[%s734 + $0x160] sm:$0xf]
        %v1937 = vld [vmem:[%s734 + $0x164] sm:$0xf]
        %v1938 = vld [vmem:[%s734 + $0x168] sm:$0xf]
        %v1939 = vld [vmem:[%s734 + $0x16c] sm:$0xf]
        %v1940 = vld [vmem:[%s734 + $0x170] sm:$0xf]
        %v1941 = vld [vmem:[%s734 + $0x174] sm:$0xf]
        %v1942 = vld [vmem:[%s734 + $0x178] sm:$0xf]
        %v1943 = vld [vmem:[%s734 + $0x17c] sm:$0xf]
        %v1944 = vld [vmem:[%s734 + $0x180] sm:$0xf]
        %v1945 = vld [vmem:[%s734 + $0x184] sm:$0xf]
        %v1946 = vld [vmem:[%s734 + $0x188] sm:$0xf]
        %v1947 = vld [vmem:[%s734 + $0x18c] sm:$0xf]
        %v1948 = vld [vmem:[%s734 + $0x190] sm:$0xf]
        %v1949 = vld [vmem:[%s734 + $0x194] sm:$0xf]
        %v1950 = vld [vmem:[%s734 + $0x198] sm:$0xf]
        %v1951 = vld [vmem:[%s734 + $0x19c] sm:$0xf]
        %v1952 = vld [vmem:[%s734 + $0x1a0] sm:$0xf]
        %v1953 = vld [vmem:[%s734 + $0x1a4] sm:$0xf]
        %v1954 = vld [vmem:[%s734 + $0x1a8] sm:$0xf]
        %v1955 = vld [vmem:[%s734 + $0x1ac] sm:$0xf]
        %v1956 = vld [vmem:[%s734 + $0x1b0] sm:$0xf]
        %v1957 = vld [vmem:[%s734 + $0x1b4] sm:$0xf]
        %v1958 = vld [vmem:[%s734 + $0x1b8] sm:$0xf]
        %v1959 = vld [vmem:[%s734 + $0x1bc] sm:$0xf]
        %v1960 = vld [vmem:[%s734 + $0x1c0] sm:$0xf]
        %v1961 = vld [vmem:[%s734 + $0x1c4] sm:$0xf]
        %v1962 = vld [vmem:[%s734 + $0x1c8] sm:$0xf]
        %v1963 = vld [vmem:[%s734 + $0x1cc] sm:$0xf]
        %v1964 = vld [vmem:[%s734 + $0x1d0] sm:$0xf]
        %v1965 = vld [vmem:[%s734 + $0x1d4] sm:$0xf]
        %v1966 = vld [vmem:[%s734 + $0x1d8] sm:$0xf]
        %v1967 = vld [vmem:[%s734 + $0x1dc] sm:$0xf]
        %v1968 = vld [vmem:[%s734 + $0x1e0] sm:$0xf]
        %v1969 = vld [vmem:[%s734 + $0x1e4] sm:$0xf]
        %v1970 = vld [vmem:[%s734 + $0x1e8] sm:$0xf]
        %v1971 = vld [vmem:[%s734 + $0x1ec] sm:$0xf]
        %v1972 = vld [vmem:[%s734 + $0x1f0] sm:$0xf]
        %v1973 = vld [vmem:[%s734 + $0x1f4] sm:$0xf]
        %v1974 = vld [vmem:[%s734 + $0x1f8] sm:$0xf]
        %v1975 = vld [vmem:[%s734 + $0x1fc] sm:$0xf]
        %v2040 = vunpack.c.l.b16 %v1912
        %v2041 = vunpack.c.l.b16 %v1913
        %v2042 = vunpack.c.l.b16 %v1914
        %v2043 = vunpack.c.l.b16 %v1915
        %v2044 = vunpack.c.l.b16 %v1916
        %v2045 = vunpack.c.l.b16 %v1917
        %v2046 = vunpack.c.l.b16 %v1918
        %v2047 = vunpack.c.l.b16 %v1919
        %v2048 = vunpack.c.l.b16 %v1920
        %v2049 = vunpack.c.l.b16 %v1921
        %v2050 = vunpack.c.l.b16 %v1922
        %v2051 = vunpack.c.l.b16 %v1923
        %v2052 = vunpack.c.l.b16 %v1924
        %v2053 = vunpack.c.l.b16 %v1925
        %v2054 = vunpack.c.l.b16 %v1926
        %v2055 = vunpack.c.l.b16 %v1927
        %v2056 = vunpack.c.l.b16 %v1928
        %v2057 = vunpack.c.l.b16 %v1929
        %v2058 = vunpack.c.l.b16 %v1930
        %v2059 = vunpack.c.l.b16 %v1931
        %v2060 = vunpack.c.l.b16 %v1932
        %v2061 = vunpack.c.l.b16 %v1933
        %v2062 = vunpack.c.l.b16 %v1934
        %v2063 = vunpack.c.l.b16 %v1935
        %v2064 = vunpack.c.l.b16 %v1936
        %v2065 = vunpack.c.l.b16 %v1937
        %v2066 = vunpack.c.l.b16 %v1938
        %v2067 = vunpack.c.l.b16 %v1939
        %v2068 = vunpack.c.l.b16 %v1940
        %v2069 = vunpack.c.l.b16 %v1941
        %v2070 = vunpack.c.l.b16 %v1942
        %v2071 = vunpack.c.l.b16 %v1943
        %v2072 = vunpack.c.l.b16 %v1944
        %v2073 = vunpack.c.l.b16 %v1945
        %v2074 = vunpack.c.l.b16 %v1946
        %v2075 = vunpack.c.l.b16 %v1947
        %v2076 = vunpack.c.l.b16 %v1948
        %v2077 = vunpack.c.l.b16 %v1949
        %v2078 = vunpack.c.l.b16 %v1950
        %v2079 = vunpack.c.l.b16 %v1951
        %v2080 = vunpack.c.l.b16 %v1952
        %v2081 = vunpack.c.l.b16 %v1953
        %v2082 = vunpack.c.l.b16 %v1954
        %v2083 = vunpack.c.l.b16 %v1955
        %v2084 = vunpack.c.l.b16 %v1956
        %v2085 = vunpack.c.l.b16 %v1957
        %v2086 = vunpack.c.l.b16 %v1958
        %v2087 = vunpack.c.l.b16 %v1959
        %v2088 = vunpack.c.l.b16 %v1960
        %v2089 = vunpack.c.l.b16 %v1961
        %v2090 = vunpack.c.l.b16 %v1962
        %v2091 = vunpack.c.l.b16 %v1963
        %v2092 = vunpack.c.l.b16 %v1964
        %v2093 = vunpack.c.l.b16 %v1965
        %v2094 = vunpack.c.l.b16 %v1966
        %v2095 = vunpack.c.l.b16 %v1967
        %v2096 = vunpack.c.l.b16 %v1968
        %v2097 = vunpack.c.l.b16 %v1969
        %v2098 = vunpack.c.l.b16 %v1970
        %v2099 = vunpack.c.l.b16 %v1971
        %v2100 = vunpack.c.l.b16 %v1972
        %v2101 = vunpack.c.l.b16 %v1973
        %v2102 = vunpack.c.l.b16 %v1974
        %v2103 = vunpack.c.l.b16 %v1975
        %v2104 = vpack.c.b16 %v2041, %v2040
        %v2105 = vpack.c.b16 %v2043, %v2042
        %v2106 = vpack.c.b16 %v2045, %v2044
        %v2107 = vpack.c.b16 %v2047, %v2046
        %v2108 = vpack.c.b16 %v2049, %v2048
        %v2109 = vpack.c.b16 %v2051, %v2050
        %v2110 = vpack.c.b16 %v2053, %v2052
        %v2111 = vpack.c.b16 %v2055, %v2054
        %v2112 = vpack.c.b16 %v2057, %v2056
        %v2113 = vpack.c.b16 %v2059, %v2058
        %v2114 = vpack.c.b16 %v2061, %v2060
        %v2115 = vpack.c.b16 %v2063, %v2062
        %v2116 = vpack.c.b16 %v2065, %v2064
        %v2117 = vpack.c.b16 %v2067, %v2066
        %v2118 = vpack.c.b16 %v2069, %v2068
        %v2119 = vpack.c.b16 %v2071, %v2070
        %v2120 = vpack.c.b16 %v2073, %v2072
        %v2121 = vpack.c.b16 %v2075, %v2074
        %v2122 = vpack.c.b16 %v2077, %v2076
        %v2123 = vpack.c.b16 %v2079, %v2078
        %v2124 = vpack.c.b16 %v2081, %v2080
        %v2125 = vpack.c.b16 %v2083, %v2082
        %v2126 = vpack.c.b16 %v2085, %v2084
        %v2127 = vpack.c.b16 %v2087, %v2086
        %v2128 = vpack.c.b16 %v2089, %v2088
        %v2129 = vpack.c.b16 %v2091, %v2090
        %v2130 = vpack.c.b16 %v2093, %v2092
        %v2131 = vpack.c.b16 %v2095, %v2094
        %v2132 = vpack.c.b16 %v2097, %v2096
        %v2133 = vpack.c.b16 %v2099, %v2098
        %v2134 = vpack.c.b16 %v2101, %v2100
        %v2135 = vpack.c.b16 %v2103, %v2102
        %2168 = vmatprep.subr.bf16.mxu0 0
        %2169 = vmatpush1.bf16.msra.mxu0 %v2111
        %2170 = vmatprep.subr.bf16.mxu0 0
        %2171 = vmatpush1.bf16.msra.mxu0 %v2110
        %2172 = vmatprep.subr.bf16.mxu0 0
        %2173 = vmatpush1.bf16.msra.mxu0 %v2109
        %2174 = vmatprep.subr.bf16.mxu0 0
        %2175 = vmatpush1.bf16.msra.mxu0 %v2108
        %2176 = vmatprep.subr.bf16.mxu0 0
        %2177 = vmatpush1.bf16.msra.mxu0 %v2107
        %2178 = vmatprep.subr.bf16.mxu0 0
        %2179 = vmatpush1.bf16.msra.mxu0 %v2106
        %2180 = vmatprep.subr.bf16.mxu0 0
        %2181 = vmatpush1.bf16.msra.mxu0 %v2105
        %2182 = vmatprep.subr.bf16.mxu0 0
        %2183 = vmatpush1.bf16.msra.mxu0 %v2104
        %2184 = vmatprep.subr.bf16.mxu0 0
        %2185 = vmatpush2.bf16.msra.mxu0 %v2119
        %2186 = vmatprep.subr.bf16.mxu0 0
        %2187 = vmatpush2.bf16.msra.mxu0 %v2118
        %2188 = vmatprep.subr.bf16.mxu0 0
        %2189 = vmatpush2.bf16.msra.mxu0 %v2117
        %2190 = vmatprep.subr.bf16.mxu0 0
        %2191 = vmatpush2.bf16.msra.mxu0 %v2116
        %2192 = vmatprep.subr.bf16.mxu0 0
        %2193 = vmatpush2.bf16.msra.mxu0 %v2115
        %2194 = vmatprep.subr.bf16.mxu0 0
        %2195 = vmatpush2.bf16.msra.mxu0 %v2114
        %2196 = vmatprep.subr.bf16.mxu0 0
        %2197 = vmatpush2.bf16.msra.mxu0 %v2113
        %2198 = vmatprep.subr.bf16.mxu0 0
        %2199 = vmatpush2.bf16.msra.mxu0 %v2112
        %2200 = vmatprep.mubr.bf16.mxu0 %v1909
        %2201 = vmatmul.mubr.bf16.gmra.mxu0 %v1908
        %v2202 = vpop.f32.mrf.mxu0
        %v2203 = vadd.f32 0.0, %v2202
        %v2204 = vpop.f32.mrf.mxu0
        %v2205 = vpop.f32.mrf.mxu0
        %v2206 = vpop.f32.mrf.mxu0
        %2207 = vdwg.mxu0
        %2208 = vmatprep.subr.bf16.mxu0 0
        %2209 = vmatpush1.bf16.msra.mxu0 %v2127
        %2210 = vmatprep.subr.bf16.mxu0 0
        %2211 = vmatpush1.bf16.msra.mxu0 %v2126
        %2212 = vmatprep.subr.bf16.mxu0 0
        %2213 = vmatpush1.bf16.msra.mxu0 %v2125
        %2214 = vmatprep.subr.bf16.mxu0 0
        %2215 = vmatpush1.bf16.msra.mxu0 %v2124
        %2216 = vmatprep.subr.bf16.mxu0 0
        %2217 = vmatpush1.bf16.msra.mxu0 %v2123
        %2218 = vmatprep.subr.bf16.mxu0 0
        %2219 = vmatpush1.bf16.msra.mxu0 %v2122
        %2220 = vmatprep.subr.bf16.mxu0 0
        %2221 = vmatpush1.bf16.msra.mxu0 %v2121
        %2222 = vmatprep.subr.bf16.mxu0 0
        %2223 = vmatpush1.bf16.msra.mxu0 %v2120
        %2224 = vmatprep.subr.bf16.mxu0 0
        %2225 = vmatpush2.bf16.msra.mxu0 %v2135
        %2226 = vmatprep.subr.bf16.mxu0 0
        %2227 = vmatpush2.bf16.msra.mxu0 %v2134
        %2228 = vmatprep.subr.bf16.mxu0 0
        %2229 = vmatpush2.bf16.msra.mxu0 %v2133
        %2230 = vmatprep.subr.bf16.mxu0 0
        %2231 = vmatpush2.bf16.msra.mxu0 %v2132
        %2232 = vmatprep.subr.bf16.mxu0 0
        %2233 = vmatpush2.bf16.msra.mxu0 %v2131
        %2234 = vmatprep.subr.bf16.mxu0 0
        %2235 = vmatpush2.bf16.msra.mxu0 %v2130
        %2236 = vmatprep.subr.bf16.mxu0 0
        %2237 = vmatpush2.bf16.msra.mxu0 %v2129
        %2238 = vmatprep.subr.bf16.mxu0 0
        %2239 = vmatpush2.bf16.msra.mxu0 %v2128
        %2240 = vmatprep.mubr.bf16.mxu0 %v1911
        %2241 = vmatmul.mubr.bf16.gmra.mxu0 %v1910
        %v2242 = vpop.f32.mrf.mxu0
        %v2243 = vadd.f32 %v2203, %v2242
        %v2244 = vpop.f32.mrf.mxu0
        %v2245 = vpop.f32.mrf.mxu0
        %v2246 = vpop.f32.mrf.mxu0
        %2247 = vdwg.mxu0
        %v2312 = vunpack.c.l.b16 %v1688
        %v2313 = vunpack.c.l.b16 %v1689
        %v2314 = vunpack.c.l.b16 %v1690
        %v2315 = vunpack.c.l.b16 %v1691
        %v2316 = vunpack.c.l.b16 %v1692
        %v2317 = vunpack.c.l.b16 %v1693
        %v2318 = vunpack.c.l.b16 %v1694
        %v2319 = vunpack.c.l.b16 %v1695
        %v2320 = vunpack.c.l.b16 %v1696
        %v2321 = vunpack.c.l.b16 %v1697
        %v2322 = vunpack.c.l.b16 %v1698
        %v2323 = vunpack.c.l.b16 %v1699
        %v2324 = vunpack.c.l.b16 %v1700
        %v2325 = vunpack.c.l.b16 %v1701
        %v2326 = vunpack.c.l.b16 %v1702
        %v2327 = vunpack.c.l.b16 %v1703
        %v2328 = vunpack.c.l.b16 %v1704
        %v2329 = vunpack.c.l.b16 %v1705
        %v2330 = vunpack.c.l.b16 %v1706
        %v2331 = vunpack.c.l.b16 %v1707
        %v2332 = vunpack.c.l.b16 %v1708
        %v2333 = vunpack.c.l.b16 %v1709
        %v2334 = vunpack.c.l.b16 %v1710
        %v2335 = vunpack.c.l.b16 %v1711
        %v2336 = vunpack.c.l.b16 %v1712
        %v2337 = vunpack.c.l.b16 %v1713
        %v2338 = vunpack.c.l.b16 %v1714
        %v2339 = vunpack.c.l.b16 %v1715
        %v2340 = vunpack.c.l.b16 %v1716
        %v2341 = vunpack.c.l.b16 %v1717
        %v2342 = vunpack.c.l.b16 %v1718
        %v2343 = vunpack.c.l.b16 %v1719
        %v2344 = vunpack.c.l.b16 %v1720
        %v2345 = vunpack.c.l.b16 %v1721
        %v2346 = vunpack.c.l.b16 %v1722
        %v2347 = vunpack.c.l.b16 %v1723
        %v2348 = vunpack.c.l.b16 %v1724
        %v2349 = vunpack.c.l.b16 %v1725
        %v2350 = vunpack.c.l.b16 %v1726
        %v2351 = vunpack.c.l.b16 %v1727
        %v2352 = vunpack.c.l.b16 %v1728
        %v2353 = vunpack.c.l.b16 %v1729
        %v2354 = vunpack.c.l.b16 %v1730
        %v2355 = vunpack.c.l.b16 %v1731
        %v2356 = vunpack.c.l.b16 %v1732
        %v2357 = vunpack.c.l.b16 %v1733
        %v2358 = vunpack.c.l.b16 %v1734
        %v2359 = vunpack.c.l.b16 %v1735
        %v2360 = vunpack.c.l.b16 %v1736
        %v2361 = vunpack.c.l.b16 %v1737
        %v2362 = vunpack.c.l.b16 %v1738
        %v2363 = vunpack.c.l.b16 %v1739
        %v2364 = vunpack.c.l.b16 %v1740
        %v2365 = vunpack.c.l.b16 %v1741
        %v2366 = vunpack.c.l.b16 %v1742
        %v2367 = vunpack.c.l.b16 %v1743
        %v2368 = vunpack.c.l.b16 %v1744
        %v2369 = vunpack.c.l.b16 %v1745
        %v2370 = vunpack.c.l.b16 %v1746
        %v2371 = vunpack.c.l.b16 %v1747
        %v2372 = vunpack.c.l.b16 %v1748
        %v2373 = vunpack.c.l.b16 %v1749
        %v2374 = vunpack.c.l.b16 %v1750
        %v2375 = vunpack.c.l.b16 %v1751
        %v2376 = vpack.c.b16 %v2313, %v2312
        %v2377 = vpack.c.b16 %v2315, %v2314
        %v2378 = vpack.c.b16 %v2317, %v2316
        %v2379 = vpack.c.b16 %v2319, %v2318
        %v2380 = vpack.c.b16 %v2321, %v2320
        %v2381 = vpack.c.b16 %v2323, %v2322
        %v2382 = vpack.c.b16 %v2325, %v2324
        %v2383 = vpack.c.b16 %v2327, %v2326
        %v2384 = vpack.c.b16 %v2329, %v2328
        %v2385 = vpack.c.b16 %v2331, %v2330
        %v2386 = vpack.c.b16 %v2333, %v2332
        %v2387 = vpack.c.b16 %v2335, %v2334
        %v2388 = vpack.c.b16 %v2337, %v2336
        %v2389 = vpack.c.b16 %v2339, %v2338
        %v2390 = vpack.c.b16 %v2341, %v2340
        %v2391 = vpack.c.b16 %v2343, %v2342
        %v2392 = vpack.c.b16 %v2345, %v2344
        %v2393 = vpack.c.b16 %v2347, %v2346
        %v2394 = vpack.c.b16 %v2349, %v2348
        %v2395 = vpack.c.b16 %v2351, %v2350
        %v2396 = vpack.c.b16 %v2353, %v2352
        %v2397 = vpack.c.b16 %v2355, %v2354
        %v2398 = vpack.c.b16 %v2357, %v2356
        %v2399 = vpack.c.b16 %v2359, %v2358
        %v2400 = vpack.c.b16 %v2361, %v2360
        %v2401 = vpack.c.b16 %v2363, %v2362
        %v2402 = vpack.c.b16 %v2365, %v2364
        %v2403 = vpack.c.b16 %v2367, %v2366
        %v2404 = vpack.c.b16 %v2369, %v2368
        %v2405 = vpack.c.b16 %v2371, %v2370
        %v2406 = vpack.c.b16 %v2373, %v2372
        %v2407 = vpack.c.b16 %v2375, %v2374
        %2440 = vmatprep.subr.bf16.mxu0 0
        %2441 = vmatpush1.bf16.msra.mxu0 %v2383
        %2442 = vmatprep.subr.bf16.mxu0 0
        %2443 = vmatpush1.bf16.msra.mxu0 %v2382
        %2444 = vmatprep.subr.bf16.mxu0 0
        %2445 = vmatpush1.bf16.msra.mxu0 %v2381
        %2446 = vmatprep.subr.bf16.mxu0 0
        %2447 = vmatpush1.bf16.msra.mxu0 %v2380
        %2448 = vmatprep.subr.bf16.mxu0 0
        %2449 = vmatpush1.bf16.msra.mxu0 %v2379
        %2450 = vmatprep.subr.bf16.mxu0 0
        %2451 = vmatpush1.bf16.msra.mxu0 %v2378
        %2452 = vmatprep.subr.bf16.mxu0 0
        %2453 = vmatpush1.bf16.msra.mxu0 %v2377
        %2454 = vmatprep.subr.bf16.mxu0 0
        %2455 = vmatpush1.bf16.msra.mxu0 %v2376
        %2456 = vmatprep.subr.bf16.mxu0 0
        %2457 = vmatpush2.bf16.msra.mxu0 %v2391
        %2458 = vmatprep.subr.bf16.mxu0 0
        %2459 = vmatpush2.bf16.msra.mxu0 %v2390
        %2460 = vmatprep.subr.bf16.mxu0 0
        %2461 = vmatpush2.bf16.msra.mxu0 %v2389
        %2462 = vmatprep.subr.bf16.mxu0 0
        %2463 = vmatpush2.bf16.msra.mxu0 %v2388
        %2464 = vmatprep.subr.bf16.mxu0 0
        %2465 = vmatpush2.bf16.msra.mxu0 %v2387
        %2466 = vmatprep.subr.bf16.mxu0 0
        %2467 = vmatpush2.bf16.msra.mxu0 %v2386
        %2468 = vmatprep.subr.bf16.mxu0 0
        %2469 = vmatpush2.bf16.msra.mxu0 %v2385
        %2470 = vmatprep.subr.bf16.mxu0 0
        %2471 = vmatpush2.bf16.msra.mxu0 %v2384
        %2472 = vmatprep.mubr.bf16.mxu0 %v1685
        %2473 = vmatmul.mubr.bf16.gmra.mxu0 %v1684
        %v2474 = vpop.f32.mrf.mxu0
        %v2475 = vadd.f32 %v2243, %v2474
        %v2476 = vpop.f32.mrf.mxu0
        %v2477 = vpop.f32.mrf.mxu0
        %v2478 = vpop.f32.mrf.mxu0
        %2479 = vdwg.mxu0
        %2480 = vmatprep.subr.bf16.mxu0 0
        %2481 = vmatpush1.bf16.msra.mxu0 %v2399
        %2482 = vmatprep.subr.bf16.mxu0 0
        %2483 = vmatpush1.bf16.msra.mxu0 %v2398
        %2484 = vmatprep.subr.bf16.mxu0 0
        %2485 = vmatpush1.bf16.msra.mxu0 %v2397
        %2486 = vmatprep.subr.bf16.mxu0 0
        %2487 = vmatpush1.bf16.msra.mxu0 %v2396
        %2488 = vmatprep.subr.bf16.mxu0 0
        %2489 = vmatpush1.bf16.msra.mxu0 %v2395
        %2490 = vmatprep.subr.bf16.mxu0 0
        %2491 = vmatpush1.bf16.msra.mxu0 %v2394
        %2492 = vmatprep.subr.bf16.mxu0 0
        %2493 = vmatpush1.bf16.msra.mxu0 %v2393
        %2494 = vmatprep.subr.bf16.mxu0 0
        %2495 = vmatpush1.bf16.msra.mxu0 %v2392
        %2496 = vmatprep.subr.bf16.mxu0 0
        %2497 = vmatpush2.bf16.msra.mxu0 %v2407
        %2498 = vmatprep.subr.bf16.mxu0 0
        %2499 = vmatpush2.bf16.msra.mxu0 %v2406
        %2500 = vmatprep.subr.bf16.mxu0 0
        %2501 = vmatpush2.bf16.msra.mxu0 %v2405
        %2502 = vmatprep.subr.bf16.mxu0 0
        %2503 = vmatpush2.bf16.msra.mxu0 %v2404
        %2504 = vmatprep.subr.bf16.mxu0 0
        %2505 = vmatpush2.bf16.msra.mxu0 %v2403
        %2506 = vmatprep.subr.bf16.mxu0 0
        %2507 = vmatpush2.bf16.msra.mxu0 %v2402
        %2508 = vmatprep.subr.bf16.mxu0 0
        %2509 = vmatpush2.bf16.msra.mxu0 %v2401
        %2510 = vmatprep.subr.bf16.mxu0 0
        %2511 = vmatpush2.bf16.msra.mxu0 %v2400
        %2512 = vmatprep.mubr.bf16.mxu0 %v1687
        %2513 = vmatmul.mubr.bf16.gmra.mxu0 %v1686
        %v2514 = vpop.f32.mrf.mxu0
        %v2515 = vadd.f32 %v2475, %v2514
        %v2516 = vpop.f32.mrf.mxu0
        %v2517 = vpop.f32.mrf.mxu0
        %v2518 = vpop.f32.mrf.mxu0
        %2519 = vdwg.mxu0
        %v2520 = vld [vmem:[%s725 + $0x20] sm:$0xff]
        %v2521 = vld [vmem:[%s725 + $0x28] sm:$0xff]
        %v2522 = vld [vmem:[%s725 + $0x60] sm:$0xff]
        %v2523 = vld [vmem:[%s725 + $0x68] sm:$0xff]
        %v2524 = vld [vmem:[%s725 + $0xa0] sm:$0xff]
        %v2525 = vld [vmem:[%s725 + $0xa8] sm:$0xff]
        %v2526 = vld [vmem:[%s725 + $0xe0] sm:$0xff]
        %v2527 = vld [vmem:[%s725 + $0xe8] sm:$0xff]
        %v2528 = vld [vmem:[%s729 + $0x8] sm:$0xf]
        %v2530 = vlaneseq
        %v2531 = vshrl.u32 %v2530, 7
        %v2532 = vsub.s32 0, %v2531
        %v2533 = vrot.slane %v2528, %v2532
        %v2534 = vlaneseq
        %v2535 = vshrl.u32 %v2534, 7
        %v2536 = vsub.s32 1, %v2535
        %v2537 = vrot.slane %v2528, %v2536
        %v2538 = vlaneseq
        %v2539 = vshrl.u32 %v2538, 7
        %v2540 = vsub.s32 2, %v2539
        %v2541 = vrot.slane %v2528, %v2540
        %v2542 = vlaneseq
        %v2543 = vshrl.u32 %v2542, 7
        %v2544 = vsub.s32 3, %v2543
        %v2545 = vrot.slane %v2528, %v2544
        %v2558 = vunpack.c.l.b16 %v2520
        %v2559 = vunpack.c.h.b16 %v2520
        %v2560 = vunpack.c.l.b16 %v2521
        %v2561 = vunpack.c.h.b16 %v2521
        %v2562 = vunpack.c.l.b16 %v2522
        %v2563 = vunpack.c.h.b16 %v2522
        %v2564 = vunpack.c.l.b16 %v2523
        %v2565 = vunpack.c.h.b16 %v2523
        %v2566 = vunpack.c.l.b16 %v2524
        %v2567 = vunpack.c.h.b16 %v2524
        %v2568 = vunpack.c.l.b16 %v2525
        %v2569 = vunpack.c.h.b16 %v2525
        %v2570 = vunpack.c.l.b16 %v2526
        %v2571 = vunpack.c.h.b16 %v2526
        %v2572 = vunpack.c.l.b16 %v2527
        %v2573 = vunpack.c.h.b16 %v2527
        %v2574 = vpack.c.b16 %v2562, %v2558
        %v2575 = vpack.c.b16 %v2563, %v2559
        %v2576 = vpack.c.b16 %v2564, %v2560
        %v2577 = vpack.c.b16 %v2565, %v2561
        %v2578 = vpack.c.b16 %v2570, %v2566
        %v2579 = vpack.c.b16 %v2571, %v2567
        %v2580 = vpack.c.b16 %v2572, %v2568
        %v2581 = vpack.c.b16 %v2573, %v2569
        %2590 = vmatprep.subr.bf16.mxu0 0
        %2591 = vmatpush1.bf16.msra.mxu0 0
        %2592 = vmatprep.subr.bf16.mxu0 0
        %2593 = vmatpush1.bf16.msra.mxu0 0
        %2594 = vmatprep.subr.bf16.mxu0 0
        %2595 = vmatpush1.bf16.msra.mxu0 0
        %2596 = vmatprep.subr.bf16.mxu0 0
        %2597 = vmatpush1.bf16.msra.mxu0 0
        %2598 = vmatprep.subr.bf16.mxu0 0
        %2599 = vmatpush1.bf16.msra.mxu0 0
        %2600 = vmatprep.subr.bf16.mxu0 0
        %2601 = vmatpush1.bf16.msra.mxu0 0
        %2602 = vmatprep.subr.bf16.mxu0 %v2579
        %2603 = vmatpush1.bf16.msra.mxu0 %v2578
        %2604 = vmatprep.subr.bf16.mxu0 %v2575
        %2605 = vmatpush1.bf16.msra.mxu0 %v2574
        %2606 = vmatprep.subr.bf16.mxu0 0
        %2607 = vmatpush2.bf16.msra.mxu0 0
        %2608 = vmatprep.subr.bf16.mxu0 0
        %2609 = vmatpush2.bf16.msra.mxu0 0
        %2610 = vmatprep.subr.bf16.mxu0 0
        %2611 = vmatpush2.bf16.msra.mxu0 0
        %2612 = vmatprep.subr.bf16.mxu0 0
        %2613 = vmatpush2.bf16.msra.mxu0 0
        %2614 = vmatprep.subr.bf16.mxu0 0
        %2615 = vmatpush2.bf16.msra.mxu0 0
        %2616 = vmatprep.subr.bf16.mxu0 0
        %2617 = vmatpush2.bf16.msra.mxu0 0
        %2618 = vmatprep.subr.bf16.mxu0 0
        %2619 = vmatpush2.bf16.msra.mxu0 0
        %2620 = vmatprep.subr.bf16.mxu0 0
        %2621 = vmatpush2.bf16.msra.mxu0 0
        %2622 = vmatprep.mubr.bf16.mxu0 0
        %2623 = vmatmul.mubr.bf16.gmra.mxu0 %v1596
        %v2624 = vpop.f32.mrf.mxu0
        %v2625 = vadd.f32 %v2533, %v2624
        %v2626 = vpop.f32.mrf.mxu0
        %v2627 = vadd.f32 %v2537, %v2626
        %v2628 = vpop.f32.mrf.mxu0
        %v2629 = vpop.f32.mrf.mxu0
        %2630 = vdwg.mxu0
        %2631 = vmatprep.subr.bf16.mxu0 0
        %2632 = vmatpush1.bf16.msra.mxu0 0
        %2633 = vmatprep.subr.bf16.mxu0 0
        %2634 = vmatpush1.bf16.msra.mxu0 0
        %2635 = vmatprep.subr.bf16.mxu0 0
        %2636 = vmatpush1.bf16.msra.mxu0 0
        %2637 = vmatprep.subr.bf16.mxu0 0
        %2638 = vmatpush1.bf16.msra.mxu0 0
        %2639 = vmatprep.subr.bf16.mxu0 0
        %2640 = vmatpush1.bf16.msra.mxu0 0
        %2641 = vmatprep.subr.bf16.mxu0 0
        %2642 = vmatpush1.bf16.msra.mxu0 0
        %2643 = vmatprep.subr.bf16.mxu0 %v2581
        %2644 = vmatpush1.bf16.msra.mxu0 %v2580
        %2645 = vmatprep.subr.bf16.mxu0 %v2577
        %2646 = vmatpush1.bf16.msra.mxu0 %v2576
        %2647 = vmatprep.subr.bf16.mxu0 0
        %2648 = vmatpush2.bf16.msra.mxu0 0
        %2649 = vmatprep.subr.bf16.mxu0 0
        %2650 = vmatpush2.bf16.msra.mxu0 0
        %2651 = vmatprep.subr.bf16.mxu0 0
        %2652 = vmatpush2.bf16.msra.mxu0 0
        %2653 = vmatprep.subr.bf16.mxu0 0
        %2654 = vmatpush2.bf16.msra.mxu0 0
        %2655 = vmatprep.subr.bf16.mxu0 0
        %2656 = vmatpush2.bf16.msra.mxu0 0
        %2657 = vmatprep.subr.bf16.mxu0 0
        %2658 = vmatpush2.bf16.msra.mxu0 0
        %2659 = vmatprep.subr.bf16.mxu0 0
        %2660 = vmatpush2.bf16.msra.mxu0 0
        %2661 = vmatprep.subr.bf16.mxu0 0
        %2662 = vmatpush2.bf16.msra.mxu0 0
        %2663 = vmatprep.mubr.bf16.mxu0 0
        %2664 = vmatmul.mubr.bf16.gmra.mxu0 %v1596
        %v2665 = vpop.f32.mrf.mxu0
        %v2666 = vadd.f32 %v2541, %v2665
        %v2667 = vpop.f32.mrf.mxu0
        %v2668 = vadd.f32 %v2545, %v2667
        %v2669 = vpop.f32.mrf.mxu0
        %v2670 = vpop.f32.mrf.mxu0
        %2671 = vdwg.mxu0
        %v2672 = vmax.f32 %v2625, 0.0
        %v2673 = vmax.f32 %v2627, 0.0
        %v2674 = vmax.f32 %v2666, 0.0
        %v2675 = vmax.f32 %v2668, 0.0
        %v2676 = vpack.c.bf16 %v2672, %v2672
        %v2677 = vpack.c.bf16 %v2673, %v2673
        %v2678 = vpack.c.bf16 %v2674, %v2674
        %v2679 = vpack.c.bf16 %v2675, %v2675
        %v2680 = vld [vmem:[%s734 + $0x200] sm:$0xf]
        %v2681 = vld [vmem:[%s734 + $0x204] sm:$0xf]
        %v2682 = vld [vmem:[%s734 + $0x208] sm:$0xf]
        %v2683 = vld [vmem:[%s734 + $0x20c] sm:$0xf]
        %v2684 = vld [vmem:[%s734 + $0x210] sm:$0xf]
        %v2685 = vld [vmem:[%s734 + $0x214] sm:$0xf]
        %v2686 = vld [vmem:[%s734 + $0x218] sm:$0xf]
        %v2687 = vld [vmem:[%s734 + $0x21c] sm:$0xf]
        %v2688 = vld [vmem:[%s734 + $0x220] sm:$0xf]
        %v2689 = vld [vmem:[%s734 + $0x224] sm:$0xf]
        %v2690 = vld [vmem:[%s734 + $0x228] sm:$0xf]
        %v2691 = vld [vmem:[%s734 + $0x22c] sm:$0xf]
        %v2692 = vld [vmem:[%s734 + $0x230] sm:$0xf]
        %v2693 = vld [vmem:[%s734 + $0x234] sm:$0xf]
        %v2694 = vld [vmem:[%s734 + $0x238] sm:$0xf]
        %v2695 = vld [vmem:[%s734 + $0x23c] sm:$0xf]
        %v2696 = vld [vmem:[%s734 + $0x240] sm:$0xf]
        %v2697 = vld [vmem:[%s734 + $0x244] sm:$0xf]
        %v2698 = vld [vmem:[%s734 + $0x248] sm:$0xf]
        %v2699 = vld [vmem:[%s734 + $0x24c] sm:$0xf]
        %v2700 = vld [vmem:[%s734 + $0x250] sm:$0xf]
        %v2701 = vld [vmem:[%s734 + $0x254] sm:$0xf]
        %v2702 = vld [vmem:[%s734 + $0x258] sm:$0xf]
        %v2703 = vld [vmem:[%s734 + $0x25c] sm:$0xf]
        %v2704 = vld [vmem:[%s734 + $0x260] sm:$0xf]
        %v2705 = vld [vmem:[%s734 + $0x264] sm:$0xf]
        %v2706 = vld [vmem:[%s734 + $0x268] sm:$0xf]
        %v2707 = vld [vmem:[%s734 + $0x26c] sm:$0xf]
        %v2708 = vld [vmem:[%s734 + $0x270] sm:$0xf]
        %v2709 = vld [vmem:[%s734 + $0x274] sm:$0xf]
        %v2710 = vld [vmem:[%s734 + $0x278] sm:$0xf]
        %v2711 = vld [vmem:[%s734 + $0x27c] sm:$0xf]
        %v2712 = vld [vmem:[%s734 + $0x280] sm:$0xf]
        %v2713 = vld [vmem:[%s734 + $0x284] sm:$0xf]
        %v2714 = vld [vmem:[%s734 + $0x288] sm:$0xf]
        %v2715 = vld [vmem:[%s734 + $0x28c] sm:$0xf]
        %v2716 = vld [vmem:[%s734 + $0x290] sm:$0xf]
        %v2717 = vld [vmem:[%s734 + $0x294] sm:$0xf]
        %v2718 = vld [vmem:[%s734 + $0x298] sm:$0xf]
        %v2719 = vld [vmem:[%s734 + $0x29c] sm:$0xf]
        %v2720 = vld [vmem:[%s734 + $0x2a0] sm:$0xf]
        %v2721 = vld [vmem:[%s734 + $0x2a4] sm:$0xf]
        %v2722 = vld [vmem:[%s734 + $0x2a8] sm:$0xf]
        %v2723 = vld [vmem:[%s734 + $0x2ac] sm:$0xf]
        %v2724 = vld [vmem:[%s734 + $0x2b0] sm:$0xf]
        %v2725 = vld [vmem:[%s734 + $0x2b4] sm:$0xf]
        %v2726 = vld [vmem:[%s734 + $0x2b8] sm:$0xf]
        %v2727 = vld [vmem:[%s734 + $0x2bc] sm:$0xf]
        %v2728 = vld [vmem:[%s734 + $0x2c0] sm:$0xf]
        %v2729 = vld [vmem:[%s734 + $0x2c4] sm:$0xf]
        %v2730 = vld [vmem:[%s734 + $0x2c8] sm:$0xf]
        %v2731 = vld [vmem:[%s734 + $0x2cc] sm:$0xf]
        %v2732 = vld [vmem:[%s734 + $0x2d0] sm:$0xf]
        %v2733 = vld [vmem:[%s734 + $0x2d4] sm:$0xf]
        %v2734 = vld [vmem:[%s734 + $0x2d8] sm:$0xf]
        %v2735 = vld [vmem:[%s734 + $0x2dc] sm:$0xf]
        %v2736 = vld [vmem:[%s734 + $0x2e0] sm:$0xf]
        %v2737 = vld [vmem:[%s734 + $0x2e4] sm:$0xf]
        %v2738 = vld [vmem:[%s734 + $0x2e8] sm:$0xf]
        %v2739 = vld [vmem:[%s734 + $0x2ec] sm:$0xf]
        %v2740 = vld [vmem:[%s734 + $0x2f0] sm:$0xf]
        %v2741 = vld [vmem:[%s734 + $0x2f4] sm:$0xf]
        %v2742 = vld [vmem:[%s734 + $0x2f8] sm:$0xf]
        %v2743 = vld [vmem:[%s734 + $0x2fc] sm:$0xf]
        %v2808 = vunpack.c.l.b16 %v2680
        %v2809 = vunpack.c.l.b16 %v2681
        %v2810 = vunpack.c.l.b16 %v2682
        %v2811 = vunpack.c.l.b16 %v2683
        %v2812 = vunpack.c.l.b16 %v2684
        %v2813 = vunpack.c.l.b16 %v2685
        %v2814 = vunpack.c.l.b16 %v2686
        %v2815 = vunpack.c.l.b16 %v2687
        %v2816 = vunpack.c.l.b16 %v2688
        %v2817 = vunpack.c.l.b16 %v2689
        %v2818 = vunpack.c.l.b16 %v2690
        %v2819 = vunpack.c.l.b16 %v2691
        %v2820 = vunpack.c.l.b16 %v2692
        %v2821 = vunpack.c.l.b16 %v2693
        %v2822 = vunpack.c.l.b16 %v2694
        %v2823 = vunpack.c.l.b16 %v2695
        %v2824 = vunpack.c.l.b16 %v2696
        %v2825 = vunpack.c.l.b16 %v2697
        %v2826 = vunpack.c.l.b16 %v2698
        %v2827 = vunpack.c.l.b16 %v2699
        %v2828 = vunpack.c.l.b16 %v2700
        %v2829 = vunpack.c.l.b16 %v2701
        %v2830 = vunpack.c.l.b16 %v2702
        %v2831 = vunpack.c.l.b16 %v2703
        %v2832 = vunpack.c.l.b16 %v2704
        %v2833 = vunpack.c.l.b16 %v2705
        %v2834 = vunpack.c.l.b16 %v2706
        %v2835 = vunpack.c.l.b16 %v2707
        %v2836 = vunpack.c.l.b16 %v2708
        %v2837 = vunpack.c.l.b16 %v2709
        %v2838 = vunpack.c.l.b16 %v2710
        %v2839 = vunpack.c.l.b16 %v2711
        %v2840 = vunpack.c.l.b16 %v2712
        %v2841 = vunpack.c.l.b16 %v2713
        %v2842 = vunpack.c.l.b16 %v2714
        %v2843 = vunpack.c.l.b16 %v2715
        %v2844 = vunpack.c.l.b16 %v2716
        %v2845 = vunpack.c.l.b16 %v2717
        %v2846 = vunpack.c.l.b16 %v2718
        %v2847 = vunpack.c.l.b16 %v2719
        %v2848 = vunpack.c.l.b16 %v2720
        %v2849 = vunpack.c.l.b16 %v2721
        %v2850 = vunpack.c.l.b16 %v2722
        %v2851 = vunpack.c.l.b16 %v2723
        %v2852 = vunpack.c.l.b16 %v2724
        %v2853 = vunpack.c.l.b16 %v2725
        %v2854 = vunpack.c.l.b16 %v2726
        %v2855 = vunpack.c.l.b16 %v2727
        %v2856 = vunpack.c.l.b16 %v2728
        %v2857 = vunpack.c.l.b16 %v2729
        %v2858 = vunpack.c.l.b16 %v2730
        %v2859 = vunpack.c.l.b16 %v2731
        %v2860 = vunpack.c.l.b16 %v2732
        %v2861 = vunpack.c.l.b16 %v2733
        %v2862 = vunpack.c.l.b16 %v2734
        %v2863 = vunpack.c.l.b16 %v2735
        %v2864 = vunpack.c.l.b16 %v2736
        %v2865 = vunpack.c.l.b16 %v2737
        %v2866 = vunpack.c.l.b16 %v2738
        %v2867 = vunpack.c.l.b16 %v2739
        %v2868 = vunpack.c.l.b16 %v2740
        %v2869 = vunpack.c.l.b16 %v2741
        %v2870 = vunpack.c.l.b16 %v2742
        %v2871 = vunpack.c.l.b16 %v2743
        %v2872 = vpack.c.b16 %v2809, %v2808
        %v2873 = vpack.c.b16 %v2811, %v2810
        %v2874 = vpack.c.b16 %v2813, %v2812
        %v2875 = vpack.c.b16 %v2815, %v2814
        %v2876 = vpack.c.b16 %v2817, %v2816
        %v2877 = vpack.c.b16 %v2819, %v2818
        %v2878 = vpack.c.b16 %v2821, %v2820
        %v2879 = vpack.c.b16 %v2823, %v2822
        %v2880 = vpack.c.b16 %v2825, %v2824
        %v2881 = vpack.c.b16 %v2827, %v2826
        %v2882 = vpack.c.b16 %v2829, %v2828
        %v2883 = vpack.c.b16 %v2831, %v2830
        %v2884 = vpack.c.b16 %v2833, %v2832
        %v2885 = vpack.c.b16 %v2835, %v2834
        %v2886 = vpack.c.b16 %v2837, %v2836
        %v2887 = vpack.c.b16 %v2839, %v2838
        %v2888 = vpack.c.b16 %v2841, %v2840
        %v2889 = vpack.c.b16 %v2843, %v2842
        %v2890 = vpack.c.b16 %v2845, %v2844
        %v2891 = vpack.c.b16 %v2847, %v2846
        %v2892 = vpack.c.b16 %v2849, %v2848
        %v2893 = vpack.c.b16 %v2851, %v2850
        %v2894 = vpack.c.b16 %v2853, %v2852
        %v2895 = vpack.c.b16 %v2855, %v2854
        %v2896 = vpack.c.b16 %v2857, %v2856
        %v2897 = vpack.c.b16 %v2859, %v2858
        %v2898 = vpack.c.b16 %v2861, %v2860
        %v2899 = vpack.c.b16 %v2863, %v2862
        %v2900 = vpack.c.b16 %v2865, %v2864
        %v2901 = vpack.c.b16 %v2867, %v2866
        %v2902 = vpack.c.b16 %v2869, %v2868
        %v2903 = vpack.c.b16 %v2871, %v2870
        %2936 = vmatprep.subr.bf16.mxu0 0
        %2937 = vmatpush1.bf16.msra.mxu0 %v2879
        %2938 = vmatprep.subr.bf16.mxu0 0
        %2939 = vmatpush1.bf16.msra.mxu0 %v2878
        %2940 = vmatprep.subr.bf16.mxu0 0
        %2941 = vmatpush1.bf16.msra.mxu0 %v2877
        %2942 = vmatprep.subr.bf16.mxu0 0
        %2943 = vmatpush1.bf16.msra.mxu0 %v2876
        %2944 = vmatprep.subr.bf16.mxu0 0
        %2945 = vmatpush1.bf16.msra.mxu0 %v2875
        %2946 = vmatprep.subr.bf16.mxu0 0
        %2947 = vmatpush1.bf16.msra.mxu0 %v2874
        %2948 = vmatprep.subr.bf16.mxu0 0
        %2949 = vmatpush1.bf16.msra.mxu0 %v2873
        %2950 = vmatprep.subr.bf16.mxu0 0
        %2951 = vmatpush1.bf16.msra.mxu0 %v2872
        %2952 = vmatprep.subr.bf16.mxu0 0
        %2953 = vmatpush2.bf16.msra.mxu0 %v2887
        %2954 = vmatprep.subr.bf16.mxu0 0
        %2955 = vmatpush2.bf16.msra.mxu0 %v2886
        %2956 = vmatprep.subr.bf16.mxu0 0
        %2957 = vmatpush2.bf16.msra.mxu0 %v2885
        %2958 = vmatprep.subr.bf16.mxu0 0
        %2959 = vmatpush2.bf16.msra.mxu0 %v2884
        %2960 = vmatprep.subr.bf16.mxu0 0
        %2961 = vmatpush2.bf16.msra.mxu0 %v2883
        %2962 = vmatprep.subr.bf16.mxu0 0
        %2963 = vmatpush2.bf16.msra.mxu0 %v2882
        %2964 = vmatprep.subr.bf16.mxu0 0
        %2965 = vmatpush2.bf16.msra.mxu0 %v2881
        %2966 = vmatprep.subr.bf16.mxu0 0
        %2967 = vmatpush2.bf16.msra.mxu0 %v2880
        %2968 = vmatprep.mubr.bf16.mxu0 %v2677
        %2969 = vmatmul.mubr.bf16.gmra.mxu0 %v2676
        %v2970 = vpop.f32.mrf.mxu0
        %v2971 = vadd.f32 0.0, %v2970
        %v2972 = vpop.f32.mrf.mxu0
        %v2973 = vpop.f32.mrf.mxu0
        %v2974 = vpop.f32.mrf.mxu0
        %2975 = vdwg.mxu0
        %2976 = vmatprep.subr.bf16.mxu0 0
        %2977 = vmatpush1.bf16.msra.mxu0 %v2895
        %2978 = vmatprep.subr.bf16.mxu0 0
        %2979 = vmatpush1.bf16.msra.mxu0 %v2894
        %2980 = vmatprep.subr.bf16.mxu0 0
        %2981 = vmatpush1.bf16.msra.mxu0 %v2893
        %2982 = vmatprep.subr.bf16.mxu0 0
        %2983 = vmatpush1.bf16.msra.mxu0 %v2892
        %2984 = vmatprep.subr.bf16.mxu0 0
        %2985 = vmatpush1.bf16.msra.mxu0 %v2891
        %2986 = vmatprep.subr.bf16.mxu0 0
        %2987 = vmatpush1.bf16.msra.mxu0 %v2890
        %2988 = vmatprep.subr.bf16.mxu0 0
        %2989 = vmatpush1.bf16.msra.mxu0 %v2889
        %2990 = vmatprep.subr.bf16.mxu0 0
        %2991 = vmatpush1.bf16.msra.mxu0 %v2888
        %2992 = vmatprep.subr.bf16.mxu0 0
        %2993 = vmatpush2.bf16.msra.mxu0 %v2903
        %2994 = vmatprep.subr.bf16.mxu0 0
        %2995 = vmatpush2.bf16.msra.mxu0 %v2902
        %2996 = vmatprep.subr.bf16.mxu0 0
        %2997 = vmatpush2.bf16.msra.mxu0 %v2901
        %2998 = vmatprep.subr.bf16.mxu0 0
        %2999 = vmatpush2.bf16.msra.mxu0 %v2900
        %3000 = vmatprep.subr.bf16.mxu0 0
        %3001 = vmatpush2.bf16.msra.mxu0 %v2899
        %3002 = vmatprep.subr.bf16.mxu0 0
        %3003 = vmatpush2.bf16.msra.mxu0 %v2898
        %3004 = vmatprep.subr.bf16.mxu0 0
        %3005 = vmatpush2.bf16.msra.mxu0 %v2897
        %3006 = vmatprep.subr.bf16.mxu0 0
        %3007 = vmatpush2.bf16.msra.mxu0 %v2896
        %3008 = vmatprep.mubr.bf16.mxu0 %v2679
        %3009 = vmatmul.mubr.bf16.gmra.mxu0 %v2678
        %v3010 = vpop.f32.mrf.mxu0
        %v3011 = vadd.f32 %v2971, %v3010
        %v3012 = vpop.f32.mrf.mxu0
        %v3013 = vpop.f32.mrf.mxu0
        %v3014 = vpop.f32.mrf.mxu0
        %3015 = vdwg.mxu0
        %v3016 = vadd.f32 %v2515, %v3011
        %v3017 = vld [vmem:[%s725 + $0x30] sm:$0xff]
        %v3018 = vld [vmem:[%s725 + $0x38] sm:$0xff]
        %v3019 = vld [vmem:[%s725 + $0x70] sm:$0xff]
        %v3020 = vld [vmem:[%s725 + $0x78] sm:$0xff]
        %v3021 = vld [vmem:[%s725 + $0xb0] sm:$0xff]
        %v3022 = vld [vmem:[%s725 + $0xb8] sm:$0xff]
        %v3023 = vld [vmem:[%s725 + $0xf0] sm:$0xff]
        %v3024 = vld [vmem:[%s725 + $0xf8] sm:$0xff]
        %v3025 = vld [vmem:[%s729 + $0xc] sm:$0xf]
        %v3027 = vlaneseq
        %v3028 = vshrl.u32 %v3027, 7
        %v3029 = vsub.s32 0, %v3028
        %v3030 = vrot.slane %v3025, %v3029
        %v3031 = vlaneseq
        %v3032 = vshrl.u32 %v3031, 7
        %v3033 = vsub.s32 1, %v3032
        %v3034 = vrot.slane %v3025, %v3033
        %v3035 = vlaneseq
        %v3036 = vshrl.u32 %v3035, 7
        %v3037 = vsub.s32 2, %v3036
        %v3038 = vrot.slane %v3025, %v3037
        %v3039 = vlaneseq
        %v3040 = vshrl.u32 %v3039, 7
        %v3041 = vsub.s32 3, %v3040
        %v3042 = vrot.slane %v3025, %v3041
        %v3055 = vunpack.c.l.b16 %v3017
        %v3056 = vunpack.c.h.b16 %v3017
        %v3057 = vunpack.c.l.b16 %v3018
        %v3058 = vunpack.c.h.b16 %v3018
        %v3059 = vunpack.c.l.b16 %v3019
        %v3060 = vunpack.c.h.b16 %v3019
        %v3061 = vunpack.c.l.b16 %v3020
        %v3062 = vunpack.c.h.b16 %v3020
        %v3063 = vunpack.c.l.b16 %v3021
        %v3064 = vunpack.c.h.b16 %v3021
        %v3065 = vunpack.c.l.b16 %v3022
        %v3066 = vunpack.c.h.b16 %v3022
        %v3067 = vunpack.c.l.b16 %v3023
        %v3068 = vunpack.c.h.b16 %v3023
        %v3069 = vunpack.c.l.b16 %v3024
        %v3070 = vunpack.c.h.b16 %v3024
        %v3071 = vpack.c.b16 %v3059, %v3055
        %v3072 = vpack.c.b16 %v3060, %v3056
        %v3073 = vpack.c.b16 %v3061, %v3057
        %v3074 = vpack.c.b16 %v3062, %v3058
        %v3075 = vpack.c.b16 %v3067, %v3063
        %v3076 = vpack.c.b16 %v3068, %v3064
        %v3077 = vpack.c.b16 %v3069, %v3065
        %v3078 = vpack.c.b16 %v3070, %v3066
        %3087 = vmatprep.subr.bf16.mxu0 0
        %3088 = vmatpush1.bf16.msra.mxu0 0
        %3089 = vmatprep.subr.bf16.mxu0 0
        %3090 = vmatpush1.bf16.msra.mxu0 0
        %3091 = vmatprep.subr.bf16.mxu0 0
        %3092 = vmatpush1.bf16.msra.mxu0 0
        %3093 = vmatprep.subr.bf16.mxu0 0
        %3094 = vmatpush1.bf16.msra.mxu0 0
        %3095 = vmatprep.subr.bf16.mxu0 0
        %3096 = vmatpush1.bf16.msra.mxu0 0
        %3097 = vmatprep.subr.bf16.mxu0 0
        %3098 = vmatpush1.bf16.msra.mxu0 0
        %3099 = vmatprep.subr.bf16.mxu0 %v3076
        %3100 = vmatpush1.bf16.msra.mxu0 %v3075
        %3101 = vmatprep.subr.bf16.mxu0 %v3072
        %3102 = vmatpush1.bf16.msra.mxu0 %v3071
        %3103 = vmatprep.subr.bf16.mxu0 0
        %3104 = vmatpush2.bf16.msra.mxu0 0
        %3105 = vmatprep.subr.bf16.mxu0 0
        %3106 = vmatpush2.bf16.msra.mxu0 0
        %3107 = vmatprep.subr.bf16.mxu0 0
        %3108 = vmatpush2.bf16.msra.mxu0 0
        %3109 = vmatprep.subr.bf16.mxu0 0
        %3110 = vmatpush2.bf16.msra.mxu0 0
        %3111 = vmatprep.subr.bf16.mxu0 0
        %3112 = vmatpush2.bf16.msra.mxu0 0
        %3113 = vmatprep.subr.bf16.mxu0 0
        %3114 = vmatpush2.bf16.msra.mxu0 0
        %3115 = vmatprep.subr.bf16.mxu0 0
        %3116 = vmatpush2.bf16.msra.mxu0 0
        %3117 = vmatprep.subr.bf16.mxu0 0
        %3118 = vmatpush2.bf16.msra.mxu0 0
        %3119 = vmatprep.mubr.bf16.mxu0 0
        %3120 = vmatmul.mubr.bf16.gmra.mxu0 %v1596
        %v3121 = vpop.f32.mrf.mxu0
        %v3122 = vadd.f32 %v3030, %v3121
        %v3123 = vpop.f32.mrf.mxu0
        %v3124 = vadd.f32 %v3034, %v3123
        %v3125 = vpop.f32.mrf.mxu0
        %v3126 = vpop.f32.mrf.mxu0
        %3127 = vdwg.mxu0
        %3128 = vmatprep.subr.bf16.mxu0 0
        %3129 = vmatpush1.bf16.msra.mxu0 0
        %3130 = vmatprep.subr.bf16.mxu0 0
        %3131 = vmatpush1.bf16.msra.mxu0 0
        %3132 = vmatprep.subr.bf16.mxu0 0
        %3133 = vmatpush1.bf16.msra.mxu0 0
        %3134 = vmatprep.subr.bf16.mxu0 0
        %3135 = vmatpush1.bf16.msra.mxu0 0
        %3136 = vmatprep.subr.bf16.mxu0 0
        %3137 = vmatpush1.bf16.msra.mxu0 0
        %3138 = vmatprep.subr.bf16.mxu0 0
        %3139 = vmatpush1.bf16.msra.mxu0 0
        %3140 = vmatprep.subr.bf16.mxu0 %v3078
        %3141 = vmatpush1.bf16.msra.mxu0 %v3077
        %3142 = vmatprep.subr.bf16.mxu0 %v3074
        %3143 = vmatpush1.bf16.msra.mxu0 %v3073
        %3144 = vmatprep.subr.bf16.mxu0 0
        %3145 = vmatpush2.bf16.msra.mxu0 0
        %3146 = vmatprep.subr.bf16.mxu0 0
        %3147 = vmatpush2.bf16.msra.mxu0 0
        %3148 = vmatprep.subr.bf16.mxu0 0
        %3149 = vmatpush2.bf16.msra.mxu0 0
        %3150 = vmatprep.subr.bf16.mxu0 0
        %3151 = vmatpush2.bf16.msra.mxu0 0
        %3152 = vmatprep.subr.bf16.mxu0 0
        %3153 = vmatpush2.bf16.msra.mxu0 0
        %3154 = vmatprep.subr.bf16.mxu0 0
        %3155 = vmatpush2.bf16.msra.mxu0 0
        %3156 = vmatprep.subr.bf16.mxu0 0
        %3157 = vmatpush2.bf16.msra.mxu0 0
        %3158 = vmatprep.subr.bf16.mxu0 0
        %3159 = vmatpush2.bf16.msra.mxu0 0
        %3160 = vmatprep.mubr.bf16.mxu0 0
        %3161 = vmatmul.mubr.bf16.gmra.mxu0 %v1596
        %v3162 = vpop.f32.mrf.mxu0
        %v3163 = vadd.f32 %v3038, %v3162
        %v3164 = vpop.f32.mrf.mxu0
        %v3165 = vadd.f32 %v3042, %v3164
        %v3166 = vpop.f32.mrf.mxu0
        %v3167 = vpop.f32.mrf.mxu0
        %3168 = vdwg.mxu0
        %v3169 = vmax.f32 %v3122, 0.0
        %v3170 = vmax.f32 %v3124, 0.0
        %v3171 = vmax.f32 %v3163, 0.0
        %v3172 = vmax.f32 %v3165, 0.0
        %v3173 = vpack.c.bf16 %v3169, %v3169
        %v3174 = vpack.c.bf16 %v3170, %v3170
        %v3175 = vpack.c.bf16 %v3171, %v3171
        %v3176 = vpack.c.bf16 %v3172, %v3172
        %v3177 = vld [vmem:[%s734 + $0x300] sm:$0xf]
        %v3178 = vld [vmem:[%s734 + $0x304] sm:$0xf]
        %v3179 = vld [vmem:[%s734 + $0x308] sm:$0xf]
        %v3180 = vld [vmem:[%s734 + $0x30c] sm:$0xf]
        %v3181 = vld [vmem:[%s734 + $0x310] sm:$0xf]
        %v3182 = vld [vmem:[%s734 + $0x314] sm:$0xf]
        %v3183 = vld [vmem:[%s734 + $0x318] sm:$0xf]
        %v3184 = vld [vmem:[%s734 + $0x31c] sm:$0xf]
        %v3185 = vld [vmem:[%s734 + $0x320] sm:$0xf]
        %v3186 = vld [vmem:[%s734 + $0x324] sm:$0xf]
        %v3187 = vld [vmem:[%s734 + $0x328] sm:$0xf]
        %v3188 = vld [vmem:[%s734 + $0x32c] sm:$0xf]
        %v3189 = vld [vmem:[%s734 + $0x330] sm:$0xf]
        %v3190 = vld [vmem:[%s734 + $0x334] sm:$0xf]
        %v3191 = vld [vmem:[%s734 + $0x338] sm:$0xf]
        %v3192 = vld [vmem:[%s734 + $0x33c] sm:$0xf]
        %v3193 = vld [vmem:[%s734 + $0x340] sm:$0xf]
        %v3194 = vld [vmem:[%s734 + $0x344] sm:$0xf]
        %v3195 = vld [vmem:[%s734 + $0x348] sm:$0xf]
        %v3196 = vld [vmem:[%s734 + $0x34c] sm:$0xf]
        %v3197 = vld [vmem:[%s734 + $0x350] sm:$0xf]
        %v3198 = vld [vmem:[%s734 + $0x354] sm:$0xf]
        %v3199 = vld [vmem:[%s734 + $0x358] sm:$0xf]
        %v3200 = vld [vmem:[%s734 + $0x35c] sm:$0xf]
        %v3201 = vld [vmem:[%s734 + $0x360] sm:$0xf]
        %v3202 = vld [vmem:[%s734 + $0x364] sm:$0xf]
        %v3203 = vld [vmem:[%s734 + $0x368] sm:$0xf]
        %v3204 = vld [vmem:[%s734 + $0x36c] sm:$0xf]
        %v3205 = vld [vmem:[%s734 + $0x370] sm:$0xf]
        %v3206 = vld [vmem:[%s734 + $0x374] sm:$0xf]
        %v3207 = vld [vmem:[%s734 + $0x378] sm:$0xf]
        %v3208 = vld [vmem:[%s734 + $0x37c] sm:$0xf]
        %v3209 = vld [vmem:[%s734 + $0x380] sm:$0xf]
        %v3210 = vld [vmem:[%s734 + $0x384] sm:$0xf]
        %v3211 = vld [vmem:[%s734 + $0x388] sm:$0xf]
        %v3212 = vld [vmem:[%s734 + $0x38c] sm:$0xf]
        %v3213 = vld [vmem:[%s734 + $0x390] sm:$0xf]
        %v3214 = vld [vmem:[%s734 + $0x394] sm:$0xf]
        %v3215 = vld [vmem:[%s734 + $0x398] sm:$0xf]
        %v3216 = vld [vmem:[%s734 + $0x39c] sm:$0xf]
        %v3217 = vld [vmem:[%s734 + $0x3a0] sm:$0xf]
        %v3218 = vld [vmem:[%s734 + $0x3a4] sm:$0xf]
        %v3219 = vld [vmem:[%s734 + $0x3a8] sm:$0xf]
        %v3220 = vld [vmem:[%s734 + $0x3ac] sm:$0xf]
        %v3221 = vld [vmem:[%s734 + $0x3b0] sm:$0xf]
        %v3222 = vld [vmem:[%s734 + $0x3b4] sm:$0xf]
        %v3223 = vld [vmem:[%s734 + $0x3b8] sm:$0xf]
        %v3224 = vld [vmem:[%s734 + $0x3bc] sm:$0xf]
        %v3225 = vld [vmem:[%s734 + $0x3c0] sm:$0xf]
        %v3226 = vld [vmem:[%s734 + $0x3c4] sm:$0xf]
        %v3227 = vld [vmem:[%s734 + $0x3c8] sm:$0xf]
        %v3228 = vld [vmem:[%s734 + $0x3cc] sm:$0xf]
        %v3229 = vld [vmem:[%s734 + $0x3d0] sm:$0xf]
        %v3230 = vld [vmem:[%s734 + $0x3d4] sm:$0xf]
        %v3231 = vld [vmem:[%s734 + $0x3d8] sm:$0xf]
        %v3232 = vld [vmem:[%s734 + $0x3dc] sm:$0xf]
        %v3233 = vld [vmem:[%s734 + $0x3e0] sm:$0xf]
        %v3234 = vld [vmem:[%s734 + $0x3e4] sm:$0xf]
        %v3235 = vld [vmem:[%s734 + $0x3e8] sm:$0xf]
        %v3236 = vld [vmem:[%s734 + $0x3ec] sm:$0xf]
        %v3237 = vld [vmem:[%s734 + $0x3f0] sm:$0xf]
        %v3238 = vld [vmem:[%s734 + $0x3f4] sm:$0xf]
        %v3239 = vld [vmem:[%s734 + $0x3f8] sm:$0xf]
        %v3240 = vld [vmem:[%s734 + $0x3fc] sm:$0xf]
        %v3305 = vunpack.c.l.b16 %v3177
        %v3306 = vunpack.c.l.b16 %v3178
        %v3307 = vunpack.c.l.b16 %v3179
        %v3308 = vunpack.c.l.b16 %v3180
        %v3309 = vunpack.c.l.b16 %v3181
        %v3310 = vunpack.c.l.b16 %v3182
        %v3311 = vunpack.c.l.b16 %v3183
        %v3312 = vunpack.c.l.b16 %v3184
        %v3313 = vunpack.c.l.b16 %v3185
        %v3314 = vunpack.c.l.b16 %v3186
        %v3315 = vunpack.c.l.b16 %v3187
        %v3316 = vunpack.c.l.b16 %v3188
        %v3317 = vunpack.c.l.b16 %v3189
        %v3318 = vunpack.c.l.b16 %v3190
        %v3319 = vunpack.c.l.b16 %v3191
        %v3320 = vunpack.c.l.b16 %v3192
        %v3321 = vunpack.c.l.b16 %v3193
        %v3322 = vunpack.c.l.b16 %v3194
        %v3323 = vunpack.c.l.b16 %v3195
        %v3324 = vunpack.c.l.b16 %v3196
        %v3325 = vunpack.c.l.b16 %v3197
        %v3326 = vunpack.c.l.b16 %v3198
        %v3327 = vunpack.c.l.b16 %v3199
        %v3328 = vunpack.c.l.b16 %v3200
        %v3329 = vunpack.c.l.b16 %v3201
        %v3330 = vunpack.c.l.b16 %v3202
        %v3331 = vunpack.c.l.b16 %v3203
        %v3332 = vunpack.c.l.b16 %v3204
        %v3333 = vunpack.c.l.b16 %v3205
        %v3334 = vunpack.c.l.b16 %v3206
        %v3335 = vunpack.c.l.b16 %v3207
        %v3336 = vunpack.c.l.b16 %v3208
        %v3337 = vunpack.c.l.b16 %v3209
        %v3338 = vunpack.c.l.b16 %v3210
        %v3339 = vunpack.c.l.b16 %v3211
        %v3340 = vunpack.c.l.b16 %v3212
        %v3341 = vunpack.c.l.b16 %v3213
        %v3342 = vunpack.c.l.b16 %v3214
        %v3343 = vunpack.c.l.b16 %v3215
        %v3344 = vunpack.c.l.b16 %v3216
        %v3345 = vunpack.c.l.b16 %v3217
        %v3346 = vunpack.c.l.b16 %v3218
        %v3347 = vunpack.c.l.b16 %v3219
        %v3348 = vunpack.c.l.b16 %v3220
        %v3349 = vunpack.c.l.b16 %v3221
        %v3350 = vunpack.c.l.b16 %v3222
        %v3351 = vunpack.c.l.b16 %v3223
        %v3352 = vunpack.c.l.b16 %v3224
        %v3353 = vunpack.c.l.b16 %v3225
        %v3354 = vunpack.c.l.b16 %v3226
        %v3355 = vunpack.c.l.b16 %v3227
        %v3356 = vunpack.c.l.b16 %v3228
        %v3357 = vunpack.c.l.b16 %v3229
        %v3358 = vunpack.c.l.b16 %v3230
        %v3359 = vunpack.c.l.b16 %v3231
        %v3360 = vunpack.c.l.b16 %v3232
        %v3361 = vunpack.c.l.b16 %v3233
        %v3362 = vunpack.c.l.b16 %v3234
        %v3363 = vunpack.c.l.b16 %v3235
        %v3364 = vunpack.c.l.b16 %v3236
        %v3365 = vunpack.c.l.b16 %v3237
        %v3366 = vunpack.c.l.b16 %v3238
        %v3367 = vunpack.c.l.b16 %v3239
        %v3368 = vunpack.c.l.b16 %v3240
        %v3369 = vpack.c.b16 %v3306, %v3305
        %v3370 = vpack.c.b16 %v3308, %v3307
        %v3371 = vpack.c.b16 %v3310, %v3309
        %v3372 = vpack.c.b16 %v3312, %v3311
        %v3373 = vpack.c.b16 %v3314, %v3313
        %v3374 = vpack.c.b16 %v3316, %v3315
        %v3375 = vpack.c.b16 %v3318, %v3317
        %v3376 = vpack.c.b16 %v3320, %v3319
        %v3377 = vpack.c.b16 %v3322, %v3321
        %v3378 = vpack.c.b16 %v3324, %v3323
        %v3379 = vpack.c.b16 %v3326, %v3325
        %v3380 = vpack.c.b16 %v3328, %v3327
        %v3381 = vpack.c.b16 %v3330, %v3329
        %v3382 = vpack.c.b16 %v3332, %v3331
        %v3383 = vpack.c.b16 %v3334, %v3333
        %v3384 = vpack.c.b16 %v3336, %v3335
        %v3385 = vpack.c.b16 %v3338, %v3337
        %v3386 = vpack.c.b16 %v3340, %v3339
        %v3387 = vpack.c.b16 %v3342, %v3341
        %v3388 = vpack.c.b16 %v3344, %v3343
        %v3389 = vpack.c.b16 %v3346, %v3345
        %v3390 = vpack.c.b16 %v3348, %v3347
        %v3391 = vpack.c.b16 %v3350, %v3349
        %v3392 = vpack.c.b16 %v3352, %v3351
        %v3393 = vpack.c.b16 %v3354, %v3353
        %v3394 = vpack.c.b16 %v3356, %v3355
        %v3395 = vpack.c.b16 %v3358, %v3357
        %v3396 = vpack.c.b16 %v3360, %v3359
        %v3397 = vpack.c.b16 %v3362, %v3361
        %v3398 = vpack.c.b16 %v3364, %v3363
        %v3399 = vpack.c.b16 %v3366, %v3365
        %v3400 = vpack.c.b16 %v3368, %v3367
        %3433 = vmatprep.subr.bf16.mxu0 0
        %3434 = vmatpush1.bf16.msra.mxu0 %v3376
        %3435 = vmatprep.subr.bf16.mxu0 0
        %3436 = vmatpush1.bf16.msra.mxu0 %v3375
        %3437 = vmatprep.subr.bf16.mxu0 0
        %3438 = vmatpush1.bf16.msra.mxu0 %v3374
        %3439 = vmatprep.subr.bf16.mxu0 0
        %3440 = vmatpush1.bf16.msra.mxu0 %v3373
        %3441 = vmatprep.subr.bf16.mxu0 0
        %3442 = vmatpush1.bf16.msra.mxu0 %v3372
        %3443 = vmatprep.subr.bf16.mxu0 0
        %3444 = vmatpush1.bf16.msra.mxu0 %v3371
        %3445 = vmatprep.subr.bf16.mxu0 0
        %3446 = vmatpush1.bf16.msra.mxu0 %v3370
        %3447 = vmatprep.subr.bf16.mxu0 0
        %3448 = vmatpush1.bf16.msra.mxu0 %v3369
        %3449 = vmatprep.subr.bf16.mxu0 0
        %3450 = vmatpush2.bf16.msra.mxu0 %v3384
        %3451 = vmatprep.subr.bf16.mxu0 0
        %3452 = vmatpush2.bf16.msra.mxu0 %v3383
        %3453 = vmatprep.subr.bf16.mxu0 0
        %3454 = vmatpush2.bf16.msra.mxu0 %v3382
        %3455 = vmatprep.subr.bf16.mxu0 0
        %3456 = vmatpush2.bf16.msra.mxu0 %v3381
        %3457 = vmatprep.subr.bf16.mxu0 0
        %3458 = vmatpush2.bf16.msra.mxu0 %v3380
        %3459 = vmatprep.subr.bf16.mxu0 0
        %3460 = vmatpush2.bf16.msra.mxu0 %v3379
        %3461 = vmatprep.subr.bf16.mxu0 0
        %3462 = vmatpush2.bf16.msra.mxu0 %v3378
        %3463 = vmatprep.subr.bf16.mxu0 0
        %3464 = vmatpush2.bf16.msra.mxu0 %v3377
        %3465 = vmatprep.mubr.bf16.mxu0 %v3174
        %3466 = vmatmul.mubr.bf16.gmra.mxu0 %v3173
        %v3467 = vpop.f32.mrf.mxu0
        %v3468 = vadd.f32 0.0, %v3467
        %v3469 = vpop.f32.mrf.mxu0
        %v3470 = vpop.f32.mrf.mxu0
        %v3471 = vpop.f32.mrf.mxu0
        %3472 = vdwg.mxu0
        %3473 = vmatprep.subr.bf16.mxu0 0
        %3474 = vmatpush1.bf16.msra.mxu0 %v3392
        %3475 = vmatprep.subr.bf16.mxu0 0
        %3476 = vmatpush1.bf16.msra.mxu0 %v3391
        %3477 = vmatprep.subr.bf16.mxu0 0
        %3478 = vmatpush1.bf16.msra.mxu0 %v3390
        %3479 = vmatprep.subr.bf16.mxu0 0
        %3480 = vmatpush1.bf16.msra.mxu0 %v3389
        %3481 = vmatprep.subr.bf16.mxu0 0
        %3482 = vmatpush1.bf16.msra.mxu0 %v3388
        %3483 = vmatprep.subr.bf16.mxu0 0
        %3484 = vmatpush1.bf16.msra.mxu0 %v3387
        %3485 = vmatprep.subr.bf16.mxu0 0
        %3486 = vmatpush1.bf16.msra.mxu0 %v3386
        %3487 = vmatprep.subr.bf16.mxu0 0
        %3488 = vmatpush1.bf16.msra.mxu0 %v3385
        %3489 = vmatprep.subr.bf16.mxu0 0
        %3490 = vmatpush2.bf16.msra.mxu0 %v3400
        %3491 = vmatprep.subr.bf16.mxu0 0
        %3492 = vmatpush2.bf16.msra.mxu0 %v3399
        %3493 = vmatprep.subr.bf16.mxu0 0
        %3494 = vmatpush2.bf16.msra.mxu0 %v3398
        %3495 = vmatprep.subr.bf16.mxu0 0
        %3496 = vmatpush2.bf16.msra.mxu0 %v3397
        %3497 = vmatprep.subr.bf16.mxu0 0
        %3498 = vmatpush2.bf16.msra.mxu0 %v3396
        %3499 = vmatprep.subr.bf16.mxu0 0
        %3500 = vmatpush2.bf16.msra.mxu0 %v3395
        %3501 = vmatprep.subr.bf16.mxu0 0
        %3502 = vmatpush2.bf16.msra.mxu0 %v3394
        %3503 = vmatprep.subr.bf16.mxu0 0
        %3504 = vmatpush2.bf16.msra.mxu0 %v3393
        %3505 = vmatprep.mubr.bf16.mxu0 %v3176
        %3506 = vmatmul.mubr.bf16.gmra.mxu0 %v3175
        %v3507 = vpop.f32.mrf.mxu0
        %v3508 = vadd.f32 %v3468, %v3507
        %v3509 = vpop.f32.mrf.mxu0
        %v3510 = vpop.f32.mrf.mxu0
        %v3511 = vpop.f32.mrf.mxu0
        %3512 = vdwg.mxu0
        %v3513 = vadd.f32 %v3016, %v3508
        %v3514 = vadd.f32 %v1486, %v3513
        %v3515 = vld [vmem:[%s737] sm:$0x1]
        %v3517 = vlaneseq
        %v3518 = vshrl.u32 %v3517, 7
        %v3519 = vsub.s32 0, %v3518
        %v3520 = vrot.slane %v3515, %v3519
        %v3522 = vadd.f32 %v3514, %v3520
        %3523 = vst.msk [vmem:[%s685] sm:$0xff] %vm784, %v3522
        %p3524 = scmp.eq.s32.totalorder %s35, 1
        // Predicated region
        $region89: #{tpu_custom_call.1} parent=83 // pred_check
          %p3525 = pneg %p3524
        $region90: #{tpu_custom_call.1} parent=83 // pred_check_branch
          %3527 = sbr.rel (%p3525) target = $region92
        $region91: #{tpu_custom_call.1} parent=83 // pred_region
          %v3528 = vld [vmem:[%s14] sm:$0x1]
          %v3529 = vld [vmem:[%s15] sm:$0x1]
          %v3530 = vsel %vm784, %v3522, 0.0
          %3531 = vadd.xlane.f32.xlu0 %v3530
          %v3532 = vpop.xlane.xlu0 %3531
          %v3533 = vmul.f32 %v3532, %v788
          %v3534 = vsub.f32 %v3522, %v3533
          %v3535 = vmul.f32 %v3534, %v3534
          %v3536 = vsel %vm784, %v3535, 0.0
          %3537 = vadd.xlane.f32.xlu0 %v3536
          %v3538 = vpop.xlane.xlu0 %3537
          %v3539 = vmul.f32 %v3538, 0.032258064
          %v3540 = vrsqrt.pop %v3539
          %v3541 = vmul.f32 %v3539, %v3540
          %vm3542 = vcmp.eq.f32.partialorder %v3539, inf
          %v3543 = vsel %vm3542, %v3539, %v3541
          %vm3544 = vcmp.eq.f32.partialorder %v3539, 0.0
          %v3545 = vand.u32 %v3539, 2147483648
          %v3546 = vsel %vm3544, %v3545, %v3543
          %v3547 = vadd.f32 %v3546, 1e-06
          %v3548 = vrcp.pop %v3547
          %v3549 = vmul.f32 1.0, %v3548
          %v3550 = vmul.f32 %v3534, %v3549
          %v3552 = vlaneseq
          %v3553 = vshrl.u32 %v3552, 7
          %v3554 = vsub.s32 0, %v3553
          %v3555 = vrot.slane %v3528, %v3554
          %v3557 = vmul.f32 %v3555, %v3550
          %v3559 = vlaneseq
          %v3560 = vshrl.u32 %v3559, 7
          %v3561 = vsub.s32 0, %v3560
          %v3562 = vrot.slane %v3529, %v3561
          %v3564 = vadd.f32 %v3557, %v3562
          %3565 = vst.msk [vmem:[%s685] sm:$0xff] %vm784, %v3564
        $region92: #{tpu_custom_call.1} parent=83 // pred_fallthru
          _
        %s3566 = sand.u32 %s456, 1
        %s3567 = scalar_lea.sflag [#allocation4], %s3566
        %s3568 = sand.u32 %s456, 1
        %s3569 = smul.addr %s3568, 8
        %s3570 = scalar_lea.vmem [#allocation3], %s3569
        // Predicated region
        $region93: #{tpu_custom_call.1} parent=83 // pred_check
          %p3571 = pneg %p466
        $region94: #{tpu_custom_call.1} parent=83 // pred_check_branch
          %3573 = sbr.rel (%p3571) target = $region96
        $region95: #{tpu_custom_call.1} parent=83 // pred_region
          %s3575 = ssub.s32 128, 128
          %3576 = vsyncadd %s3567, %s3575
          %s3577 = smul.addr %s34, 128
          %s3578 = scalar_lea.hbm %s16, %s3577
          %s3580 = sshll.u32 %s3570, 4
          %s3581 = int_to_ptr.vmem [resolvable:$true] %s3580
          %3583 = dma.vmem_to_hbm [thread:$0]  %s3581, 128, %s3578, %s3567
        $region96: #{tpu_custom_call.1} parent=83 // pred_fallthru
          _
      $region84: #{tpu_custom_call.1} parent=5 // pred_fallthru
        _
      %p3584 = scmp.le.s32.totalorder 2, %s25
      // Predicated region
      $region97: #{tpu_custom_call.1} parent=5 // pred_check
        %p3585 = pneg %p3584
      $region98: #{tpu_custom_call.1} parent=5 // pred_check_branch
        %3587 = sbr.rel (%p3585) target = $region100
      $region99: #{tpu_custom_call.1} parent=5 // pred_region
        %s3588 = ssub.s32 %s25, 2
        // Predicated region
        $region101: #{tpu_custom_call.1} parent=99 // pred_check
          %p3589 = pneg %p472
        $region102: #{tpu_custom_call.1} parent=99 // pred_check_branch
          %3591 = sbr.rel (%p3589) target = $region104
        $region103: #{tpu_custom_call.1} parent=99 // pred_region
          %s3592 = sand.u32 %s457, 1
          %s3593 = scalar_lea.sflag [#allocation4], %s3592
          %s3594 = sand.u32 %s457, 1
          %s3595 = smul.addr %s3594, 8
          %s3596 = scalar_lea.vmem [#allocation3], %s3595
          %3597 = dma.done %s3593, 128
        $region104: #{tpu_custom_call.1} parent=99 // pred_fallthru
          _
      $region100: #{tpu_custom_call.1} parent=5 // pred_fallthru
        _
    $region6: #{tpu_custom_call.1} parent=1 // loop_footer
      %s29 = sadd.s32 1, %s25
    $region7: #{tpu_custom_call.1} parent=1 // loop_footer_branch
      %24 = sbr.rel target = $region3
    $region8: #{tpu_custom_call.1} parent=1 // loop_exit
      _
    %3598 = vsyncpa [#allocation4], 1
    %s3599 = scalar_lea.sflag [#allocation4], 1
    %3600 = vsyncpa %s3599, 1

</llo_original>
